<compile_context>
chip_gen: v6e
topology: v6e:2x2x1
jax: 0.10.0
libtpu: 0.0.40
codegen_flags: <defaults>
</compile_context>

<pallas_src>
import math
from functools import partial

import jax
import jax.numpy as jnp
from jax.experimental import pallas as pl
from jax.experimental.pallas import tpu as pltpu

# LeNet-5 C3 connection table (output feature map -> input feature maps).
CONNECTIONS = {
    0: [0, 1, 2], 1: [1, 2, 3], 2: [2, 3, 4], 3: [3, 4, 5],
    4: [0, 2, 3], 5: [0, 4, 5], 6: [0, 1, 2, 3], 7: [1, 2, 3, 4],
    8: [2, 3, 4, 5], 9: [0, 2, 3, 4], 10: [1, 3, 4, 5], 11: [0, 1, 4, 5],
    12: [0, 2, 4, 5], 13: [0, 1, 3, 5], 14: [1, 2, 4, 5],
    15: [0, 1, 2, 3, 4, 5],
}


def _round_up(n, m):
    return ((n + m - 1) // m) * m


# --------------------------- Pallas kernel -----------------------------------
def _make_c3_kernel(C, K, KDIM, KP, OH, OW):
    """Builds the per-batch-element kernel (all sizes are Python ints)."""

    def kernel(x_ref, w_ref, o_ref, p_ref):
        # x_ref: (1, H, C, W)    raw input, one batch element, (h, c, w) layout
        # w_ref: (O, KP)         dense weights flattened in (dy, dx, c) order,
        #                        bias folded into column KDIM, zeros after
        # o_ref: (1, OH, O, OW)  output rows for this batch element
        # p_ref: (OH, KP, OW)    VMEM scratch: per-output-row im2col patches

        # Bias row (ones) and zero padding rows so the folded-bias matmul is
        # exact and no uninitialized VMEM is ever read (0 * garbage hazard).
        p_ref[:, KDIM:KDIM + 1, :] = jnp.ones((OH, 1, OW), jnp.float32)
        if KP > KDIM + 1:
            p_ref[:, KDIM + 1:KP, :] = jnp.zeros((OH, KP - KDIM - 1, OW),
                                                 jnp.float32)

        # In-kernel im2col: K*K static shifted copies (no HBM expansion).
        # Patch row index = (dy*K + dx)*C + c  <->  x[b, c, oh+dy, ow+dx].
        for dy in range(K):
            for dx in range(K):
                r0 = (dy * K + dx) * C
                p_ref[:, r0:r0 + C, :] = x_ref[0, dy:dy + OH, :, dx:dx + OW]

        # One small MXU matmul per output row: (O, KP) @ (KP, OW).
        w = w_ref[...]
        for oh in range(OH):
            o_ref[0, oh] = jnp.dot(w, p_ref[oh],
                                   preferred_element_type=jnp.float32)

    return kernel


# --------------------------- wrapper ------------------------------------------
@partial(jax.jit, static_argnums=(3,))
def c3_forward(x_nchw, w_dense, bias, kernel_size):
    """x_nchw: (B, C, H, W) f32; w_dense: (O, C, K, K) f32; bias: (O,) f32."""
    B, C, H, W = x_nchw.shape
    O = w_dense.shape[0]
    K = kernel_size
    OH, OW = H - K + 1, W - K + 1

    KDIM = C * K * K                      # 150 for LeNet C3
    KP = _round_up(KDIM + 1, 8)           # +1 folded-bias column -> 152

    # Cheap layout prep only (x is ~12 KiB); no patch-matrix expansion in HBM.
    x_t = x_nchw.transpose(0, 2, 1, 3)    # (B, H, C, W)

    # Weights flattened in (dy, dx, c) order to match in-kernel patch rows;
    # bias folded as one extra column; zero-pad to KP via concatenate.
    w_flat = w_dense.transpose(0, 2, 3, 1).reshape(O, KDIM)
    w_aug = jnp.concatenate(
        [w_flat, bias[:, None],
         jnp.zeros((O, KP - KDIM - 1), jnp.float32)], axis=1)   # (O, KP)

    kernel = _make_c3_kernel(C, K, KDIM, KP, OH, OW)

    out = pl.pallas_call(
        kernel,
        out_shape=jax.ShapeDtypeStruct((B, OH, O, OW), jnp.float32),
        grid=(B,),
        in_specs=[
            pl.BlockSpec((1, H, C, W), lambda b: (b, 0, 0, 0)),   # per-batch x
            pl.BlockSpec((O, KP), lambda b: (0, 0)),              # resident W
        ],
        out_specs=pl.BlockSpec((1, OH, O, OW), lambda b: (b, 0, 0, 0)),
        scratch_shapes=[pltpu.VMEM((OH, KP, OW), jnp.float32)],
        compiler_params=pltpu.CompilerParams(
            dimension_semantics=("parallel",)),   # v7x: 2 TCs split the batch
    )(x_t, w_aug)

    # (B, OH, O, OW) -> NCHW (B, O, OH, OW); tiny (~18 KiB) transpose.
    return out.transpose(0, 2, 1, 3)


# --------------------------- deterministic params -----------------------------
def init_params(key, in_channels, out_channels, kernel_size):
    """Mimics PyTorch Conv2d default init per filter; unconnected inputs get 0."""
    Wd = jnp.zeros((out_channels, in_channels, kernel_size, kernel_size),
                   jnp.float32)
    b = jnp.zeros((out_channels,), jnp.float32)
    for i in range(out_channels):
        conn = CONNECTIONS[i]
        fan_in = len(conn) * kernel_size * kernel_size
        bound = 1.0 / math.sqrt(fan_in)
        key, k1, k2 = jax.random.split(key, 3)
        w_i = jax.random.uniform(k1, (len(conn), kernel_size, kernel_size),
                                 jnp.float32, -bound, bound)
        b_i = jax.random.uniform(k2, (), jnp.float32, -bound, bound)
        Wd = Wd.at[i, jnp.array(conn)].set(w_i)
        b = b.at[i].set(b_i)
    return Wd, b


# --------------------------- pure-JAX reference (mirrors the PyTorch loop) -----
def reference_c3(x, Wt, b, kernel_size):
    B, C, H, Wd = x.shape
    K = kernel_size
    OH, OW = H - K + 1, Wd - K + 1
    outs = []
    for i in range(Wt.shape[0]):
        conn = CONNECTIONS[i]
        subset = x[:, conn, :, :]                      # (B, len(conn), H, W)
        w_i = Wt[i][jnp.array(conn)]                   # (len(conn), K, K)
        acc = jnp.zeros((B, OH, OW), jnp.float32)
        for dy in range(K):
            for dx in range(K):
                acc = acc + jnp.sum(
                    subset[:, :, dy:dy + OH, dx:dx + OW]
                    * w_i[:, dy, dx][None, :, None, None], axis=1)
        outs.append(acc + b[i])
    return jnp.stack(outs, axis=1)                     # (B, O, OH, OW)


if __name__ == "__main__":
    IN_CHANNELS = 6      # connection table references input maps 0..5
    OUT_CHANNELS = 16
    KERNEL_SIZE = 5
    BATCH = 2
    SPATIAL = 16

    key = jax.random.PRNGKey(0)
    key, kx, kp = jax.random.split(key, 3)
    x = jax.random.normal(kx, (BATCH, IN_CHANNELS, SPATIAL, SPATIAL),
                          jnp.float32)
    W_dense, bias = init_params(kp, IN_CHANNELS, OUT_CHANNELS, KERNEL_SIZE)

    out = c3_forward(x, W_dense, bias, KERNEL_SIZE)
    out = jax.block_until_ready(out)

    expected_shape = (BATCH, OUT_CHANNELS, SPATIAL - KERNEL_SIZE + 1,
                      SPATIAL - KERNEL_SIZE + 1)
    assert out.shape == expected_shape, (out.shape, expected_shape)
    assert out.dtype == jnp.float32

    ref = reference_c3(x, W_dense, bias, KERNEL_SIZE)
    # Tolerance covers MXU default-precision (bf16-pass) rounding of the
    # ~150-term f32 dot products vs. the exact VPU reference.
    max_err = float(jnp.max(jnp.abs(out - ref)))
    assert jnp.allclose(out, ref, atol=2e-3, rtol=2e-3), max_err

    print("KERNEL_OK")
</pallas_src>

<mosaic_0001>
module attributes {stable_mosaic.version = 11 : i64} {
  func.func @kernel(%arg0: i32, %arg1: memref<1x16x6x16xf32, #tpu.memory_space<vmem>>, %arg2: memref<16x152xf32, #tpu.memory_space<vmem>>, %arg3: memref<1x12x16x12xf32, #tpu.memory_space<vmem>>, %arg4: memref<12x152x12xf32, #tpu.memory_space<vmem>>) attributes {dimension_semantics = [#tpu.dimension_semantics<parallel>], iteration_bounds = array<i64: 2>, scalar_prefetch = 0 : i64, scratch_operands = 1 : i64, tpu.core_type = #tpu.core_type<tc>, window_params = [{transform_indices = @transform_0, window_bounds = array<i64: 1, 16, 6, 16>}, {pipeline_mode = #tpu.pipeline_mode<synchronous>, transform_indices = @transform_1, window_bounds = array<i64: 16, 152>}, {transform_indices = @transform_2, window_bounds = array<i64: 1, 12, 16, 12>}]} {
    %cst = arith.constant 1.000000e+00 : f32
    %0 = vector.broadcast %cst : f32 to vector<12x1x12xf32>
    %c0 = arith.constant 0 : index
    %c150 = arith.constant 150 : index
    %c0_0 = arith.constant 0 : index
    %1 = vector.load %arg4[%c0, %c150, %c0_0] : memref<12x152x12xf32, #tpu.memory_space<vmem>>, vector<12x1x12xf32>
    tpu.vector_store %arg4[%c0, %c150, %c0_0], %0 {strides = array<i32>} : memref<12x152x12xf32, #tpu.memory_space<vmem>>, vector<12x1x12xf32>,
    %cst_1 = arith.constant 0.000000e+00 : f32
    %2 = vector.broadcast %cst_1 : f32 to vector<12x1x12xf32>
    %c0_2 = arith.constant 0 : index
    %c151 = arith.constant 151 : index
    %c0_3 = arith.constant 0 : index
    %3 = vector.load %arg4[%c0_2, %c151, %c0_3] : memref<12x152x12xf32, #tpu.memory_space<vmem>>, vector<12x1x12xf32>
    tpu.vector_store %arg4[%c0_2, %c151, %c0_3], %2 {strides = array<i32>} : memref<12x152x12xf32, #tpu.memory_space<vmem>>, vector<12x1x12xf32>,
    %c0_4 = arith.constant 0 : index
    %c0_5 = arith.constant 0 : index
    %c0_6 = arith.constant 0 : index
    %c0_7 = arith.constant 0 : index
    %4 = vector.load %arg1[%c0_4, %c0_5, %c0_6, %c0_7] : memref<1x16x6x16xf32, #tpu.memory_space<vmem>>, vector<1x12x6x12xf32>
    %5 = vector.shape_cast %4 : vector<1x12x6x12xf32> to vector<12x6x12xf32>
    %c0_8 = arith.constant 0 : index
    %c0_9 = arith.constant 0 : index
    %c0_10 = arith.constant 0 : index
    %6 = vector.load %arg4[%c0_8, %c0_9, %c0_10] : memref<12x152x12xf32, #tpu.memory_space<vmem>>, vector<12x6x12xf32>
    tpu.vector_store %arg4[%c0_8, %c0_9, %c0_10], %5 {strides = array<i32>} : memref<12x152x12xf32, #tpu.memory_space<vmem>>, vector<12x6x12xf32>,
    %c0_11 = arith.constant 0 : index
    %c0_12 = arith.constant 0 : index
    %c0_13 = arith.constant 0 : index
    %c1 = arith.constant 1 : index
    %7 = vector.load %arg1[%c0_11, %c0_12, %c0_13, %c1] : memref<1x16x6x16xf32, #tpu.memory_space<vmem>>, vector<1x12x6x12xf32>
    %8 = vector.shape_cast %7 : vector<1x12x6x12xf32> to vector<12x6x12xf32>
    %c0_14 = arith.constant 0 : index
    %c6 = arith.constant 6 : index
    %c0_15 = arith.constant 0 : index
    %9 = vector.load %arg4[%c0_14, %c6, %c0_15] : memref<12x152x12xf32, #tpu.memory_space<vmem>>, vector<12x6x12xf32>
    tpu.vector_store %arg4[%c0_14, %c6, %c0_15], %8 {strides = array<i32>} : memref<12x152x12xf32, #tpu.memory_space<vmem>>, vector<12x6x12xf32>,
    %c0_16 = arith.constant 0 : index
    %c0_17 = arith.constant 0 : index
    %c0_18 = arith.constant 0 : index
    %c2 = arith.constant 2 : index
    %10 = vector.load %arg1[%c0_16, %c0_17, %c0_18, %c2] : memref<1x16x6x16xf32, #tpu.memory_space<vmem>>, vector<1x12x6x12xf32>
    %11 = vector.shape_cast %10 : vector<1x12x6x12xf32> to vector<12x6x12xf32>
    %c0_19 = arith.constant 0 : index
    %c12 = arith.constant 12 : index
    %c0_20 = arith.constant 0 : index
    %12 = vector.load %arg4[%c0_19, %c12, %c0_20] : memref<12x152x12xf32, #tpu.memory_space<vmem>>, vector<12x6x12xf32>
    tpu.vector_store %arg4[%c0_19, %c12, %c0_20], %11 {strides = array<i32>} : memref<12x152x12xf32, #tpu.memory_space<vmem>>, vector<12x6x12xf32>,
    %c0_21 = arith.constant 0 : index
    %c0_22 = arith.constant 0 : index
    %c0_23 = arith.constant 0 : index
    %c3 = arith.constant 3 : index
    %13 = vector.load %arg1[%c0_21, %c0_22, %c0_23, %c3] : memref<1x16x6x16xf32, #tpu.memory_space<vmem>>, vector<1x12x6x12xf32>
    %14 = vector.shape_cast %13 : vector<1x12x6x12xf32> to vector<12x6x12xf32>
    %c0_24 = arith.constant 0 : index
    %c18 = arith.constant 18 : index
    %c0_25 = arith.constant 0 : index
    %15 = vector.load %arg4[%c0_24, %c18, %c0_25] : memref<12x152x12xf32, #tpu.memory_space<vmem>>, vector<12x6x12xf32>
    tpu.vector_store %arg4[%c0_24, %c18, %c0_25], %14 {strides = array<i32>} : memref<12x152x12xf32, #tpu.memory_space<vmem>>, vector<12x6x12xf32>,
    %c0_26 = arith.constant 0 : index
    %c0_27 = arith.constant 0 : index
    %c0_28 = arith.constant 0 : index
    %c4 = arith.constant 4 : index
    %16 = vector.load %arg1[%c0_26, %c0_27, %c0_28, %c4] : memref<1x16x6x16xf32, #tpu.memory_space<vmem>>, vector<1x12x6x12xf32>
    %17 = vector.shape_cast %16 : vector<1x12x6x12xf32> to vector<12x6x12xf32>
    %c0_29 = arith.constant 0 : index
    %c24 = arith.constant 24 : index
    %c0_30 = arith.constant 0 : index
    %18 = vector.load %arg4[%c0_29, %c24, %c0_30] : memref<12x152x12xf32, #tpu.memory_space<vmem>>, vector<12x6x12xf32>
    tpu.vector_store %arg4[%c0_29, %c24, %c0_30], %17 {strides = array<i32>} : memref<12x152x12xf32, #tpu.memory_space<vmem>>, vector<12x6x12xf32>,
    %c0_31 = arith.constant 0 : index
    %c1_32 = arith.constant 1 : index
    %c0_33 = arith.constant 0 : index
    %c0_34 = arith.constant 0 : index
    %19 = vector.load %arg1[%c0_31, %c1_32, %c0_33, %c0_34] : memref<1x16x6x16xf32, #tpu.memory_space<vmem>>, vector<1x12x6x12xf32>
    %20 = vector.shape_cast %19 : vector<1x12x6x12xf32> to vector<12x6x12xf32>
    %c0_35 = arith.constant 0 : index
    %c30 = arith.constant 30 : index
    %c0_36 = arith.constant 0 : index
    %21 = vector.load %arg4[%c0_35, %c30, %c0_36] : memref<12x152x12xf32, #tpu.memory_space<vmem>>, vector<12x6x12xf32>
    tpu.vector_store %arg4[%c0_35, %c30, %c0_36], %20 {strides = array<i32>} : memref<12x152x12xf32, #tpu.memory_space<vmem>>, vector<12x6x12xf32>,
    %c0_37 = arith.constant 0 : index
    %c1_38 = arith.constant 1 : index
    %c0_39 = arith.constant 0 : index
    %c1_40 = arith.constant 1 : index
    %22 = vector.load %arg1[%c0_37, %c1_38, %c0_39, %c1_40] : memref<1x16x6x16xf32, #tpu.memory_space<vmem>>, vector<1x12x6x12xf32>
    %23 = vector.shape_cast %22 : vector<1x12x6x12xf32> to vector<12x6x12xf32>
    %c0_41 = arith.constant 0 : index
    %c36 = arith.constant 36 : index
    %c0_42 = arith.constant 0 : index
    %24 = vector.load %arg4[%c0_41, %c36, %c0_42] : memref<12x152x12xf32, #tpu.memory_space<vmem>>, vector<12x6x12xf32>
    tpu.vector_store %arg4[%c0_41, %c36, %c0_42], %23 {strides = array<i32>} : memref<12x152x12xf32, #tpu.memory_space<vmem>>, vector<12x6x12xf32>,
    %c0_43 = arith.constant 0 : index
    %c1_44 = arith.constant 1 : index
    %c0_45 = arith.constant 0 : index
    %c2_46 = arith.constant 2 : index
    %25 = vector.load %arg1[%c0_43, %c1_44, %c0_45, %c2_46] : memref<1x16x6x16xf32, #tpu.memory_space<vmem>>, vector<1x12x6x12xf32>
    %26 = vector.shape_cast %25 : vector<1x12x6x12xf32> to vector<12x6x12xf32>
    %c0_47 = arith.constant 0 : index
    %c42 = arith.constant 42 : index
    %c0_48 = arith.constant 0 : index
    %27 = vector.load %arg4[%c0_47, %c42, %c0_48] : memref<12x152x12xf32, #tpu.memory_space<vmem>>, vector<12x6x12xf32>
    tpu.vector_store %arg4[%c0_47, %c42, %c0_48], %26 {strides = array<i32>} : memref<12x152x12xf32, #tpu.memory_space<vmem>>, vector<12x6x12xf32>,
    %c0_49 = arith.constant 0 : index
    %c1_50 = arith.constant 1 : index
    %c0_51 = arith.constant 0 : index
    %c3_52 = arith.constant 3 : index
    %28 = vector.load %arg1[%c0_49, %c1_50, %c0_51, %c3_52] : memref<1x16x6x16xf32, #tpu.memory_space<vmem>>, vector<1x12x6x12xf32>
    %29 = vector.shape_cast %28 : vector<1x12x6x12xf32> to vector<12x6x12xf32>
    %c0_53 = arith.constant 0 : index
    %c48 = arith.constant 48 : index
    %c0_54 = arith.constant 0 : index
    %30 = vector.load %arg4[%c0_53, %c48, %c0_54] : memref<12x152x12xf32, #tpu.memory_space<vmem>>, vector<12x6x12xf32>
    tpu.vector_store %arg4[%c0_53, %c48, %c0_54], %29 {strides = array<i32>} : memref<12x152x12xf32, #tpu.memory_space<vmem>>, vector<12x6x12xf32>,
    %c0_55 = arith.constant 0 : index
    %c1_56 = arith.constant 1 : index
    %c0_57 = arith.constant 0 : index
    %c4_58 = arith.constant 4 : index
    %31 = vector.load %arg1[%c0_55, %c1_56, %c0_57, %c4_58] : memref<1x16x6x16xf32, #tpu.memory_space<vmem>>, vector<1x12x6x12xf32>
    %32 = vector.shape_cast %31 : vector<1x12x6x12xf32> to vector<12x6x12xf32>
    %c0_59 = arith.constant 0 : index
    %c54 = arith.constant 54 : index
    %c0_60 = arith.constant 0 : index
    %33 = vector.load %arg4[%c0_59, %c54, %c0_60] : memref<12x152x12xf32, #tpu.memory_space<vmem>>, vector<12x6x12xf32>
    tpu.vector_store %arg4[%c0_59, %c54, %c0_60], %32 {strides = array<i32>} : memref<12x152x12xf32, #tpu.memory_space<vmem>>, vector<12x6x12xf32>,
    %c0_61 = arith.constant 0 : index
    %c2_62 = arith.constant 2 : index
    %c0_63 = arith.constant 0 : index
    %c0_64 = arith.constant 0 : index
    %34 = vector.load %arg1[%c0_61, %c2_62, %c0_63, %c0_64] : memref<1x16x6x16xf32, #tpu.memory_space<vmem>>, vector<1x12x6x12xf32>
    %35 = vector.shape_cast %34 : vector<1x12x6x12xf32> to vector<12x6x12xf32>
    %c0_65 = arith.constant 0 : index
    %c60 = arith.constant 60 : index
    %c0_66 = arith.constant 0 : index
    %36 = vector.load %arg4[%c0_65, %c60, %c0_66] : memref<12x152x12xf32, #tpu.memory_space<vmem>>, vector<12x6x12xf32>
    tpu.vector_store %arg4[%c0_65, %c60, %c0_66], %35 {strides = array<i32>} : memref<12x152x12xf32, #tpu.memory_space<vmem>>, vector<12x6x12xf32>,
    %c0_67 = arith.constant 0 : index
    %c2_68 = arith.constant 2 : index
    %c0_69 = arith.constant 0 : index
    %c1_70 = arith.constant 1 : index
    %37 = vector.load %arg1[%c0_67, %c2_68, %c0_69, %c1_70] : memref<1x16x6x16xf32, #tpu.memory_space<vmem>>, vector<1x12x6x12xf32>
    %38 = vector.shape_cast %37 : vector<1x12x6x12xf32> to vector<12x6x12xf32>
    %c0_71 = arith.constant 0 : index
    %c66 = arith.constant 66 : index
    %c0_72 = arith.constant 0 : index
    %39 = vector.load %arg4[%c0_71, %c66, %c0_72] : memref<12x152x12xf32, #tpu.memory_space<vmem>>, vector<12x6x12xf32>
    tpu.vector_store %arg4[%c0_71, %c66, %c0_72], %38 {strides = array<i32>} : memref<12x152x12xf32, #tpu.memory_space<vmem>>, vector<12x6x12xf32>,
    %c0_73 = arith.constant 0 : index
    %c2_74 = arith.constant 2 : index
    %c0_75 = arith.constant 0 : index
    %c2_76 = arith.constant 2 : index
    %40 = vector.load %arg1[%c0_73, %c2_74, %c0_75, %c2_76] : memref<1x16x6x16xf32, #tpu.memory_space<vmem>>, vector<1x12x6x12xf32>
    %41 = vector.shape_cast %40 : vector<1x12x6x12xf32> to vector<12x6x12xf32>
    %c0_77 = arith.constant 0 : index
    %c72 = arith.constant 72 : index
    %c0_78 = arith.constant 0 : index
    %42 = vector.load %arg4[%c0_77, %c72, %c0_78] : memref<12x152x12xf32, #tpu.memory_space<vmem>>, vector<12x6x12xf32>
    tpu.vector_store %arg4[%c0_77, %c72, %c0_78], %41 {strides = array<i32>} : memref<12x152x12xf32, #tpu.memory_space<vmem>>, vector<12x6x12xf32>,
    %c0_79 = arith.constant 0 : index
    %c2_80 = arith.constant 2 : index
    %c0_81 = arith.constant 0 : index
    %c3_82 = arith.constant 3 : index
    %43 = vector.load %arg1[%c0_79, %c2_80, %c0_81, %c3_82] : memref<1x16x6x16xf32, #tpu.memory_space<vmem>>, vector<1x12x6x12xf32>
    %44 = vector.shape_cast %43 : vector<1x12x6x12xf32> to vector<12x6x12xf32>
    %c0_83 = arith.constant 0 : index
    %c78 = arith.constant 78 : index
    %c0_84 = arith.constant 0 : index
    %45 = vector.load %arg4[%c0_83, %c78, %c0_84] : memref<12x152x12xf32, #tpu.memory_space<vmem>>, vector<12x6x12xf32>
    tpu.vector_store %arg4[%c0_83, %c78, %c0_84], %44 {strides = array<i32>} : memref<12x152x12xf32, #tpu.memory_space<vmem>>, vector<12x6x12xf32>,
    %c0_85 = arith.constant 0 : index
    %c2_86 = arith.constant 2 : index
    %c0_87 = arith.constant 0 : index
    %c4_88 = arith.constant 4 : index
    %46 = vector.load %arg1[%c0_85, %c2_86, %c0_87, %c4_88] : memref<1x16x6x16xf32, #tpu.memory_space<vmem>>, vector<1x12x6x12xf32>
    %47 = vector.shape_cast %46 : vector<1x12x6x12xf32> to vector<12x6x12xf32>
    %c0_89 = arith.constant 0 : index
    %c84 = arith.constant 84 : index
    %c0_90 = arith.constant 0 : index
    %48 = vector.load %arg4[%c0_89, %c84, %c0_90] : memref<12x152x12xf32, #tpu.memory_space<vmem>>, vector<12x6x12xf32>
    tpu.vector_store %arg4[%c0_89, %c84, %c0_90], %47 {strides = array<i32>} : memref<12x152x12xf32, #tpu.memory_space<vmem>>, vector<12x6x12xf32>,
    %c0_91 = arith.constant 0 : index
    %c3_92 = arith.constant 3 : index
    %c0_93 = arith.constant 0 : index
    %c0_94 = arith.constant 0 : index
    %49 = vector.load %arg1[%c0_91, %c3_92, %c0_93, %c0_94] : memref<1x16x6x16xf32, #tpu.memory_space<vmem>>, vector<1x12x6x12xf32>
    %50 = vector.shape_cast %49 : vector<1x12x6x12xf32> to vector<12x6x12xf32>
    %c0_95 = arith.constant 0 : index
    %c90 = arith.constant 90 : index
    %c0_96 = arith.constant 0 : index
    %51 = vector.load %arg4[%c0_95, %c90, %c0_96] : memref<12x152x12xf32, #tpu.memory_space<vmem>>, vector<12x6x12xf32>
    tpu.vector_store %arg4[%c0_95, %c90, %c0_96], %50 {strides = array<i32>} : memref<12x152x12xf32, #tpu.memory_space<vmem>>, vector<12x6x12xf32>,
    %c0_97 = arith.constant 0 : index
    %c3_98 = arith.constant 3 : index
    %c0_99 = arith.constant 0 : index
    %c1_100 = arith.constant 1 : index
    %52 = vector.load %arg1[%c0_97, %c3_98, %c0_99, %c1_100] : memref<1x16x6x16xf32, #tpu.memory_space<vmem>>, vector<1x12x6x12xf32>
    %53 = vector.shape_cast %52 : vector<1x12x6x12xf32> to vector<12x6x12xf32>
    %c0_101 = arith.constant 0 : index
    %c96 = arith.constant 96 : index
    %c0_102 = arith.constant 0 : index
    %54 = vector.load %arg4[%c0_101, %c96, %c0_102] : memref<12x152x12xf32, #tpu.memory_space<vmem>>, vector<12x6x12xf32>
    tpu.vector_store %arg4[%c0_101, %c96, %c0_102], %53 {strides = array<i32>} : memref<12x152x12xf32, #tpu.memory_space<vmem>>, vector<12x6x12xf32>,
    %c0_103 = arith.constant 0 : index
    %c3_104 = arith.constant 3 : index
    %c0_105 = arith.constant 0 : index
    %c2_106 = arith.constant 2 : index
    %55 = vector.load %arg1[%c0_103, %c3_104, %c0_105, %c2_106] : memref<1x16x6x16xf32, #tpu.memory_space<vmem>>, vector<1x12x6x12xf32>
    %56 = vector.shape_cast %55 : vector<1x12x6x12xf32> to vector<12x6x12xf32>
    %c0_107 = arith.constant 0 : index
    %c102 = arith.constant 102 : index
    %c0_108 = arith.constant 0 : index
    %57 = vector.load %arg4[%c0_107, %c102, %c0_108] : memref<12x152x12xf32, #tpu.memory_space<vmem>>, vector<12x6x12xf32>
    tpu.vector_store %arg4[%c0_107, %c102, %c0_108], %56 {strides = array<i32>} : memref<12x152x12xf32, #tpu.memory_space<vmem>>, vector<12x6x12xf32>,
    %c0_109 = arith.constant 0 : index
    %c3_110 = arith.constant 3 : index
    %c0_111 = arith.constant 0 : index
    %c3_112 = arith.constant 3 : index
    %58 = vector.load %arg1[%c0_109, %c3_110, %c0_111, %c3_112] : memref<1x16x6x16xf32, #tpu.memory_space<vmem>>, vector<1x12x6x12xf32>
    %59 = vector.shape_cast %58 : vector<1x12x6x12xf32> to vector<12x6x12xf32>
    %c0_113 = arith.constant 0 : index
    %c108 = arith.constant 108 : index
    %c0_114 = arith.constant 0 : index
    %60 = vector.load %arg4[%c0_113, %c108, %c0_114] : memref<12x152x12xf32, #tpu.memory_space<vmem>>, vector<12x6x12xf32>
    tpu.vector_store %arg4[%c0_113, %c108, %c0_114], %59 {strides = array<i32>} : memref<12x152x12xf32, #tpu.memory_space<vmem>>, vector<12x6x12xf32>,
    %c0_115 = arith.constant 0 : index
    %c3_116 = arith.constant 3 : index
    %c0_117 = arith.constant 0 : index
    %c4_118 = arith.constant 4 : index
    %61 = vector.load %arg1[%c0_115, %c3_116, %c0_117, %c4_118] : memref<1x16x6x16xf32, #tpu.memory_space<vmem>>, vector<1x12x6x12xf32>
    %62 = vector.shape_cast %61 : vector<1x12x6x12xf32> to vector<12x6x12xf32>
    %c0_119 = arith.constant 0 : index
    %c114 = arith.constant 114 : index
    %c0_120 = arith.constant 0 : index
    %63 = vector.load %arg4[%c0_119, %c114, %c0_120] : memref<12x152x12xf32, #tpu.memory_space<vmem>>, vector<12x6x12xf32>
    tpu.vector_store %arg4[%c0_119, %c114, %c0_120], %62 {strides = array<i32>} : memref<12x152x12xf32, #tpu.memory_space<vmem>>, vector<12x6x12xf32>,
    %c0_121 = arith.constant 0 : index
    %c4_122 = arith.constant 4 : index
    %c0_123 = arith.constant 0 : index
    %c0_124 = arith.constant 0 : index
    %64 = vector.load %arg1[%c0_121, %c4_122, %c0_123, %c0_124] : memref<1x16x6x16xf32, #tpu.memory_space<vmem>>, vector<1x12x6x12xf32>
    %65 = vector.shape_cast %64 : vector<1x12x6x12xf32> to vector<12x6x12xf32>
    %c0_125 = arith.constant 0 : index
    %c120 = arith.constant 120 : index
    %c0_126 = arith.constant 0 : index
    %66 = vector.load %arg4[%c0_125, %c120, %c0_126] : memref<12x152x12xf32, #tpu.memory_space<vmem>>, vector<12x6x12xf32>
    tpu.vector_store %arg4[%c0_125, %c120, %c0_126], %65 {strides = array<i32>} : memref<12x152x12xf32, #tpu.memory_space<vmem>>, vector<12x6x12xf32>,
    %c0_127 = arith.constant 0 : index
    %c4_128 = arith.constant 4 : index
    %c0_129 = arith.constant 0 : index
    %c1_130 = arith.constant 1 : index
    %67 = vector.load %arg1[%c0_127, %c4_128, %c0_129, %c1_130] : memref<1x16x6x16xf32, #tpu.memory_space<vmem>>, vector<1x12x6x12xf32>
    %68 = vector.shape_cast %67 : vector<1x12x6x12xf32> to vector<12x6x12xf32>
    %c0_131 = arith.constant 0 : index
    %c126 = arith.constant 126 : index
    %c0_132 = arith.constant 0 : index
    %69 = vector.load %arg4[%c0_131, %c126, %c0_132] : memref<12x152x12xf32, #tpu.memory_space<vmem>>, vector<12x6x12xf32>
    tpu.vector_store %arg4[%c0_131, %c126, %c0_132], %68 {strides = array<i32>} : memref<12x152x12xf32, #tpu.memory_space<vmem>>, vector<12x6x12xf32>,
    %c0_133 = arith.constant 0 : index
    %c4_134 = arith.constant 4 : index
    %c0_135 = arith.constant 0 : index
    %c2_136 = arith.constant 2 : index
    %70 = vector.load %arg1[%c0_133, %c4_134, %c0_135, %c2_136] : memref<1x16x6x16xf32, #tpu.memory_space<vmem>>, vector<1x12x6x12xf32>
    %71 = vector.shape_cast %70 : vector<1x12x6x12xf32> to vector<12x6x12xf32>
    %c0_137 = arith.constant 0 : index
    %c132 = arith.constant 132 : index
    %c0_138 = arith.constant 0 : index
    %72 = vector.load %arg4[%c0_137, %c132, %c0_138] : memref<12x152x12xf32, #tpu.memory_space<vmem>>, vector<12x6x12xf32>
    tpu.vector_store %arg4[%c0_137, %c132, %c0_138], %71 {strides = array<i32>} : memref<12x152x12xf32, #tpu.memory_space<vmem>>, vector<12x6x12xf32>,
    %c0_139 = arith.constant 0 : index
    %c4_140 = arith.constant 4 : index
    %c0_141 = arith.constant 0 : index
    %c3_142 = arith.constant 3 : index
    %73 = vector.load %arg1[%c0_139, %c4_140, %c0_141, %c3_142] : memref<1x16x6x16xf32, #tpu.memory_space<vmem>>, vector<1x12x6x12xf32>
    %74 = vector.shape_cast %73 : vector<1x12x6x12xf32> to vector<12x6x12xf32>
    %c0_143 = arith.constant 0 : index
    %c138 = arith.constant 138 : index
    %c0_144 = arith.constant 0 : index
    %75 = vector.load %arg4[%c0_143, %c138, %c0_144] : memref<12x152x12xf32, #tpu.memory_space<vmem>>, vector<12x6x12xf32>
    tpu.vector_store %arg4[%c0_143, %c138, %c0_144], %74 {strides = array<i32>} : memref<12x152x12xf32, #tpu.memory_space<vmem>>, vector<12x6x12xf32>,
    %c0_145 = arith.constant 0 : index
    %c4_146 = arith.constant 4 : index
    %c0_147 = arith.constant 0 : index
    %c4_148 = arith.constant 4 : index
    %76 = vector.load %arg1[%c0_145, %c4_146, %c0_147, %c4_148] : memref<1x16x6x16xf32, #tpu.memory_space<vmem>>, vector<1x12x6x12xf32>
    %77 = vector.shape_cast %76 : vector<1x12x6x12xf32> to vector<12x6x12xf32>
    %c0_149 = arith.constant 0 : index
    %c144 = arith.constant 144 : index
    %c0_150 = arith.constant 0 : index
    %78 = vector.load %arg4[%c0_149, %c144, %c0_150] : memref<12x152x12xf32, #tpu.memory_space<vmem>>, vector<12x6x12xf32>
    tpu.vector_store %arg4[%c0_149, %c144, %c0_150], %77 {strides = array<i32>} : memref<12x152x12xf32, #tpu.memory_space<vmem>>, vector<12x6x12xf32>,
    %c0_151 = arith.constant 0 : index
    %c0_152 = arith.constant 0 : index
    %79 = vector.load %arg2[%c0_151, %c0_152] : memref<16x152xf32, #tpu.memory_space<vmem>>, vector<16x152xf32>
    %c0_153 = arith.constant 0 : index
    %c0_154 = arith.constant 0 : index
    %c0_155 = arith.constant 0 : index
    %80 = vector.load %arg4[%c0_153, %c0_154, %c0_155] : memref<12x152x12xf32, #tpu.memory_space<vmem>>, vector<1x152x12xf32>
    %81 = vector.shape_cast %80 : vector<1x152x12xf32> to vector<152x12xf32>
    %cst_156 = arith.constant dense<0.000000e+00> : vector<16x12xf32>
    %82 = tpu.matmul %79, %81, %cst_156 {dimension_numbers = #tpu.dot_dimension_numbers<[1], [0], [0], [1], [0, 0, 1, 1], [], []>} : vector<16x152xf32>, vector<152x12xf32>, vector<16x12xf32> -> vector<16x12xf32>
    %c0_157 = arith.constant 0 : index
    %c0_158 = arith.constant 0 : index
    %c0_159 = arith.constant 0 : index
    %c0_160 = arith.constant 0 : index
    %83 = vector.load %arg3[%c0_157, %c0_158, %c0_159, %c0_160] : memref<1x12x16x12xf32, #tpu.memory_space<vmem>>, vector<1x1x16x12xf32>
    %84 = vector.shape_cast %83 : vector<1x1x16x12xf32> to vector<16x12xf32>
    %85 = vector.shape_cast %82 : vector<16x12xf32> to vector<1x1x16x12xf32>
    tpu.vector_store %arg3[%c0_157, %c0_158, %c0_159, %c0_160], %85 {strides = array<i32>} : memref<1x12x16x12xf32, #tpu.memory_space<vmem>>, vector<1x1x16x12xf32>,
    %c1_161 = arith.constant 1 : index
    %c0_162 = arith.constant 0 : index
    %c0_163 = arith.constant 0 : index
    %86 = vector.load %arg4[%c1_161, %c0_162, %c0_163] : memref<12x152x12xf32, #tpu.memory_space<vmem>>, vector<1x152x12xf32>
    %87 = vector.shape_cast %86 : vector<1x152x12xf32> to vector<152x12xf32>
    %cst_164 = arith.constant dense<0.000000e+00> : vector<16x12xf32>
    %88 = tpu.matmul %79, %87, %cst_164 {dimension_numbers = #tpu.dot_dimension_numbers<[1], [0], [0], [1], [0, 0, 1, 1], [], []>} : vector<16x152xf32>, vector<152x12xf32>, vector<16x12xf32> -> vector<16x12xf32>
    %c0_165 = arith.constant 0 : index
    %c1_166 = arith.constant 1 : index
    %c0_167 = arith.constant 0 : index
    %c0_168 = arith.constant 0 : index
    %89 = vector.load %arg3[%c0_165, %c1_166, %c0_167, %c0_168] : memref<1x12x16x12xf32, #tpu.memory_space<vmem>>, vector<1x1x16x12xf32>
    %90 = vector.shape_cast %89 : vector<1x1x16x12xf32> to vector<16x12xf32>
    %91 = vector.shape_cast %88 : vector<16x12xf32> to vector<1x1x16x12xf32>
    tpu.vector_store %arg3[%c0_165, %c1_166, %c0_167, %c0_168], %91 {strides = array<i32>} : memref<1x12x16x12xf32, #tpu.memory_space<vmem>>, vector<1x1x16x12xf32>,
    %c2_169 = arith.constant 2 : index
    %c0_170 = arith.constant 0 : index
    %c0_171 = arith.constant 0 : index
    %92 = vector.load %arg4[%c2_169, %c0_170, %c0_171] : memref<12x152x12xf32, #tpu.memory_space<vmem>>, vector<1x152x12xf32>
    %93 = vector.shape_cast %92 : vector<1x152x12xf32> to vector<152x12xf32>
    %cst_172 = arith.constant dense<0.000000e+00> : vector<16x12xf32>
    %94 = tpu.matmul %79, %93, %cst_172 {dimension_numbers = #tpu.dot_dimension_numbers<[1], [0], [0], [1], [0, 0, 1, 1], [], []>} : vector<16x152xf32>, vector<152x12xf32>, vector<16x12xf32> -> vector<16x12xf32>
    %c0_173 = arith.constant 0 : index
    %c2_174 = arith.constant 2 : index
    %c0_175 = arith.constant 0 : index
    %c0_176 = arith.constant 0 : index
    %95 = vector.load %arg3[%c0_173, %c2_174, %c0_175, %c0_176] : memref<1x12x16x12xf32, #tpu.memory_space<vmem>>, vector<1x1x16x12xf32>
    %96 = vector.shape_cast %95 : vector<1x1x16x12xf32> to vector<16x12xf32>
    %97 = vector.shape_cast %94 : vector<16x12xf32> to vector<1x1x16x12xf32>
    tpu.vector_store %arg3[%c0_173, %c2_174, %c0_175, %c0_176], %97 {strides = array<i32>} : memref<1x12x16x12xf32, #tpu.memory_space<vmem>>, vector<1x1x16x12xf32>,
    %c3_177 = arith.constant 3 : index
    %c0_178 = arith.constant 0 : index
    %c0_179 = arith.constant 0 : index
    %98 = vector.load %arg4[%c3_177, %c0_178, %c0_179] : memref<12x152x12xf32, #tpu.memory_space<vmem>>, vector<1x152x12xf32>
    %99 = vector.shape_cast %98 : vector<1x152x12xf32> to vector<152x12xf32>
    %cst_180 = arith.constant dense<0.000000e+00> : vector<16x12xf32>
    %100 = tpu.matmul %79, %99, %cst_180 {dimension_numbers = #tpu.dot_dimension_numbers<[1], [0], [0], [1], [0, 0, 1, 1], [], []>} : vector<16x152xf32>, vector<152x12xf32>, vector<16x12xf32> -> vector<16x12xf32>
    %c0_181 = arith.constant 0 : index
    %c3_182 = arith.constant 3 : index
    %c0_183 = arith.constant 0 : index
    %c0_184 = arith.constant 0 : index
    %101 = vector.load %arg3[%c0_181, %c3_182, %c0_183, %c0_184] : memref<1x12x16x12xf32, #tpu.memory_space<vmem>>, vector<1x1x16x12xf32>
    %102 = vector.shape_cast %101 : vector<1x1x16x12xf32> to vector<16x12xf32>
    %103 = vector.shape_cast %100 : vector<16x12xf32> to vector<1x1x16x12xf32>
    tpu.vector_store %arg3[%c0_181, %c3_182, %c0_183, %c0_184], %103 {strides = array<i32>} : memref<1x12x16x12xf32, #tpu.memory_space<vmem>>, vector<1x1x16x12xf32>,
    %c4_185 = arith.constant 4 : index
    %c0_186 = arith.constant 0 : index
    %c0_187 = arith.constant 0 : index
    %104 = vector.load %arg4[%c4_185, %c0_186, %c0_187] : memref<12x152x12xf32, #tpu.memory_space<vmem>>, vector<1x152x12xf32>
    %105 = vector.shape_cast %104 : vector<1x152x12xf32> to vector<152x12xf32>
    %cst_188 = arith.constant dense<0.000000e+00> : vector<16x12xf32>
    %106 = tpu.matmul %79, %105, %cst_188 {dimension_numbers = #tpu.dot_dimension_numbers<[1], [0], [0], [1], [0, 0, 1, 1], [], []>} : vector<16x152xf32>, vector<152x12xf32>, vector<16x12xf32> -> vector<16x12xf32>
    %c0_189 = arith.constant 0 : index
    %c4_190 = arith.constant 4 : index
    %c0_191 = arith.constant 0 : index
    %c0_192 = arith.constant 0 : index
    %107 = vector.load %arg3[%c0_189, %c4_190, %c0_191, %c0_192] : memref<1x12x16x12xf32, #tpu.memory_space<vmem>>, vector<1x1x16x12xf32>
    %108 = vector.shape_cast %107 : vector<1x1x16x12xf32> to vector<16x12xf32>
    %109 = vector.shape_cast %106 : vector<16x12xf32> to vector<1x1x16x12xf32>
    tpu.vector_store %arg3[%c0_189, %c4_190, %c0_191, %c0_192], %109 {strides = array<i32>} : memref<1x12x16x12xf32, #tpu.memory_space<vmem>>, vector<1x1x16x12xf32>,
    %c5 = arith.constant 5 : index
    %c0_193 = arith.constant 0 : index
    %c0_194 = arith.constant 0 : index
    %110 = vector.load %arg4[%c5, %c0_193, %c0_194] : memref<12x152x12xf32, #tpu.memory_space<vmem>>, vector<1x152x12xf32>
    %111 = vector.shape_cast %110 : vector<1x152x12xf32> to vector<152x12xf32>
    %cst_195 = arith.constant dense<0.000000e+00> : vector<16x12xf32>
    %112 = tpu.matmul %79, %111, %cst_195 {dimension_numbers = #tpu.dot_dimension_numbers<[1], [0], [0], [1], [0, 0, 1, 1], [], []>} : vector<16x152xf32>, vector<152x12xf32>, vector<16x12xf32> -> vector<16x12xf32>
    %c0_196 = arith.constant 0 : index
    %c5_197 = arith.constant 5 : index
    %c0_198 = arith.constant 0 : index
    %c0_199 = arith.constant 0 : index
    %113 = vector.load %arg3[%c0_196, %c5_197, %c0_198, %c0_199] : memref<1x12x16x12xf32, #tpu.memory_space<vmem>>, vector<1x1x16x12xf32>
    %114 = vector.shape_cast %113 : vector<1x1x16x12xf32> to vector<16x12xf32>
    %115 = vector.shape_cast %112 : vector<16x12xf32> to vector<1x1x16x12xf32>
    tpu.vector_store %arg3[%c0_196, %c5_197, %c0_198, %c0_199], %115 {strides = array<i32>} : memref<1x12x16x12xf32, #tpu.memory_space<vmem>>, vector<1x1x16x12xf32>,
    %c6_200 = arith.constant 6 : index
    %c0_201 = arith.constant 0 : index
    %c0_202 = arith.constant 0 : index
    %116 = vector.load %arg4[%c6_200, %c0_201, %c0_202] : memref<12x152x12xf32, #tpu.memory_space<vmem>>, vector<1x152x12xf32>
    %117 = vector.shape_cast %116 : vector<1x152x12xf32> to vector<152x12xf32>
    %cst_203 = arith.constant dense<0.000000e+00> : vector<16x12xf32>
    %118 = tpu.matmul %79, %117, %cst_203 {dimension_numbers = #tpu.dot_dimension_numbers<[1], [0], [0], [1], [0, 0, 1, 1], [], []>} : vector<16x152xf32>, vector<152x12xf32>, vector<16x12xf32> -> vector<16x12xf32>
    %c0_204 = arith.constant 0 : index
    %c6_205 = arith.constant 6 : index
    %c0_206 = arith.constant 0 : index
    %c0_207 = arith.constant 0 : index
    %119 = vector.load %arg3[%c0_204, %c6_205, %c0_206, %c0_207] : memref<1x12x16x12xf32, #tpu.memory_space<vmem>>, vector<1x1x16x12xf32>
    %120 = vector.shape_cast %119 : vector<1x1x16x12xf32> to vector<16x12xf32>
    %121 = vector.shape_cast %118 : vector<16x12xf32> to vector<1x1x16x12xf32>
    tpu.vector_store %arg3[%c0_204, %c6_205, %c0_206, %c0_207], %121 {strides = array<i32>} : memref<1x12x16x12xf32, #tpu.memory_space<vmem>>, vector<1x1x16x12xf32>,
    %c7 = arith.constant 7 : index
    %c0_208 = arith.constant 0 : index
    %c0_209 = arith.constant 0 : index
    %122 = vector.load %arg4[%c7, %c0_208, %c0_209] : memref<12x152x12xf32, #tpu.memory_space<vmem>>, vector<1x152x12xf32>
    %123 = vector.shape_cast %122 : vector<1x152x12xf32> to vector<152x12xf32>
    %cst_210 = arith.constant dense<0.000000e+00> : vector<16x12xf32>
    %124 = tpu.matmul %79, %123, %cst_210 {dimension_numbers = #tpu.dot_dimension_numbers<[1], [0], [0], [1], [0, 0, 1, 1], [], []>} : vector<16x152xf32>, vector<152x12xf32>, vector<16x12xf32> -> vector<16x12xf32>
    %c0_211 = arith.constant 0 : index
    %c7_212 = arith.constant 7 : index
    %c0_213 = arith.constant 0 : index
    %c0_214 = arith.constant 0 : index
    %125 = vector.load %arg3[%c0_211, %c7_212, %c0_213, %c0_214] : memref<1x12x16x12xf32, #tpu.memory_space<vmem>>, vector<1x1x16x12xf32>
    %126 = vector.shape_cast %125 : vector<1x1x16x12xf32> to vector<16x12xf32>
    %127 = vector.shape_cast %124 : vector<16x12xf32> to vector<1x1x16x12xf32>
    tpu.vector_store %arg3[%c0_211, %c7_212, %c0_213, %c0_214], %127 {strides = array<i32>} : memref<1x12x16x12xf32, #tpu.memory_space<vmem>>, vector<1x1x16x12xf32>,
    %c8 = arith.constant 8 : index
    %c0_215 = arith.constant 0 : index
    %c0_216 = arith.constant 0 : index
    %128 = vector.load %arg4[%c8, %c0_215, %c0_216] : memref<12x152x12xf32, #tpu.memory_space<vmem>>, vector<1x152x12xf32>
    %129 = vector.shape_cast %128 : vector<1x152x12xf32> to vector<152x12xf32>
    %cst_217 = arith.constant dense<0.000000e+00> : vector<16x12xf32>
    %130 = tpu.matmul %79, %129, %cst_217 {dimension_numbers = #tpu.dot_dimension_numbers<[1], [0], [0], [1], [0, 0, 1, 1], [], []>} : vector<16x152xf32>, vector<152x12xf32>, vector<16x12xf32> -> vector<16x12xf32>
    %c0_218 = arith.constant 0 : index
    %c8_219 = arith.constant 8 : index
    %c0_220 = arith.constant 0 : index
    %c0_221 = arith.constant 0 : index
    %131 = vector.load %arg3[%c0_218, %c8_219, %c0_220, %c0_221] : memref<1x12x16x12xf32, #tpu.memory_space<vmem>>, vector<1x1x16x12xf32>
    %132 = vector.shape_cast %131 : vector<1x1x16x12xf32> to vector<16x12xf32>
    %133 = vector.shape_cast %130 : vector<16x12xf32> to vector<1x1x16x12xf32>
    tpu.vector_store %arg3[%c0_218, %c8_219, %c0_220, %c0_221], %133 {strides = array<i32>} : memref<1x12x16x12xf32, #tpu.memory_space<vmem>>, vector<1x1x16x12xf32>,
    %c9 = arith.constant 9 : index
    %c0_222 = arith.constant 0 : index
    %c0_223 = arith.constant 0 : index
    %134 = vector.load %arg4[%c9, %c0_222, %c0_223] : memref<12x152x12xf32, #tpu.memory_space<vmem>>, vector<1x152x12xf32>
    %135 = vector.shape_cast %134 : vector<1x152x12xf32> to vector<152x12xf32>
    %cst_224 = arith.constant dense<0.000000e+00> : vector<16x12xf32>
    %136 = tpu.matmul %79, %135, %cst_224 {dimension_numbers = #tpu.dot_dimension_numbers<[1], [0], [0], [1], [0, 0, 1, 1], [], []>} : vector<16x152xf32>, vector<152x12xf32>, vector<16x12xf32> -> vector<16x12xf32>
    %c0_225 = arith.constant 0 : index
    %c9_226 = arith.constant 9 : index
    %c0_227 = arith.constant 0 : index
    %c0_228 = arith.constant 0 : index
    %137 = vector.load %arg3[%c0_225, %c9_226, %c0_227, %c0_228] : memref<1x12x16x12xf32, #tpu.memory_space<vmem>>, vector<1x1x16x12xf32>
    %138 = vector.shape_cast %137 : vector<1x1x16x12xf32> to vector<16x12xf32>
    %139 = vector.shape_cast %136 : vector<16x12xf32> to vector<1x1x16x12xf32>
    tpu.vector_store %arg3[%c0_225, %c9_226, %c0_227, %c0_228], %139 {strides = array<i32>} : memref<1x12x16x12xf32, #tpu.memory_space<vmem>>, vector<1x1x16x12xf32>,
    %c10 = arith.constant 10 : index
    %c0_229 = arith.constant 0 : index
    %c0_230 = arith.constant 0 : index
    %140 = vector.load %arg4[%c10, %c0_229, %c0_230] : memref<12x152x12xf32, #tpu.memory_space<vmem>>, vector<1x152x12xf32>
    %141 = vector.shape_cast %140 : vector<1x152x12xf32> to vector<152x12xf32>
    %cst_231 = arith.constant dense<0.000000e+00> : vector<16x12xf32>
    %142 = tpu.matmul %79, %141, %cst_231 {dimension_numbers = #tpu.dot_dimension_numbers<[1], [0], [0], [1], [0, 0, 1, 1], [], []>} : vector<16x152xf32>, vector<152x12xf32>, vector<16x12xf32> -> vector<16x12xf32>
    %c0_232 = arith.constant 0 : index
    %c10_233 = arith.constant 10 : index
    %c0_234 = arith.constant 0 : index
    %c0_235 = arith.constant 0 : index
    %143 = vector.load %arg3[%c0_232, %c10_233, %c0_234, %c0_235] : memref<1x12x16x12xf32, #tpu.memory_space<vmem>>, vector<1x1x16x12xf32>
    %144 = vector.shape_cast %143 : vector<1x1x16x12xf32> to vector<16x12xf32>
    %145 = vector.shape_cast %142 : vector<16x12xf32> to vector<1x1x16x12xf32>
    tpu.vector_store %arg3[%c0_232, %c10_233, %c0_234, %c0_235], %145 {strides = array<i32>} : memref<1x12x16x12xf32, #tpu.memory_space<vmem>>, vector<1x1x16x12xf32>,
    %c11 = arith.constant 11 : index
    %c0_236 = arith.constant 0 : index
    %c0_237 = arith.constant 0 : index
    %146 = vector.load %arg4[%c11, %c0_236, %c0_237] : memref<12x152x12xf32, #tpu.memory_space<vmem>>, vector<1x152x12xf32>
    %147 = vector.shape_cast %146 : vector<1x152x12xf32> to vector<152x12xf32>
    %cst_238 = arith.constant dense<0.000000e+00> : vector<16x12xf32>
    %148 = tpu.matmul %79, %147, %cst_238 {dimension_numbers = #tpu.dot_dimension_numbers<[1], [0], [0], [1], [0, 0, 1, 1], [], []>} : vector<16x152xf32>, vector<152x12xf32>, vector<16x12xf32> -> vector<16x12xf32>
    %c0_239 = arith.constant 0 : index
    %c11_240 = arith.constant 11 : index
    %c0_241 = arith.constant 0 : index
    %c0_242 = arith.constant 0 : index
    %149 = vector.load %arg3[%c0_239, %c11_240, %c0_241, %c0_242] : memref<1x12x16x12xf32, #tpu.memory_space<vmem>>, vector<1x1x16x12xf32>
    %150 = vector.shape_cast %149 : vector<1x1x16x12xf32> to vector<16x12xf32>
    %151 = vector.shape_cast %148 : vector<16x12xf32> to vector<1x1x16x12xf32>
    tpu.vector_store %arg3[%c0_239, %c11_240, %c0_241, %c0_242], %151 {strides = array<i32>} : memref<1x12x16x12xf32, #tpu.memory_space<vmem>>, vector<1x1x16x12xf32>,
    return
  }
  func.func @transform_0(%arg0: i32) -> (i32, i32, i32, i32) {
    %c0_i32 = arith.constant 0 : i32
    %c0_i32_0 = arith.constant 0 : i32
    %c0_i32_1 = arith.constant 0 : i32
    %c0_i32_2 = arith.constant 0 : i32
    return %arg0, %c0_i32, %c0_i32_0, %c0_i32_1 : i32, i32, i32, i32
  }
  func.func @transform_1(%arg0: i32) -> (i32, i32) {
    %c0_i32 = arith.constant 0 : i32
    %c0_i32_0 = arith.constant 0 : i32
    %c0_i32_1 = arith.constant 0 : i32
    return %c0_i32, %c0_i32_0 : i32, i32
  }
  func.func @transform_2(%arg0: i32) -> (i32, i32, i32, i32) {
    %c0_i32 = arith.constant 0 : i32
    %c0_i32_0 = arith.constant 0 : i32
    %c0_i32_1 = arith.constant 0 : i32
    %c0_i32_2 = arith.constant 0 : i32
    return %arg0, %c0_i32, %c0_i32_0, %c0_i32_1 : i32, i32, i32, i32
  }
}

</mosaic_0001>

<llo_original>
// kernel: c3_forward.1
$region0: #{c3_forward.1}
  #allocation0 [shape = 'u32[]', space=smem, size = 0x4, offset = 0x4, fixed_abs, tag = 'smem constant byte address 0x4 - core index']
  #allocation1 [shape = 'u32[144,128]{1,0:T(1,128)}', space=vmem, size = 0x12000, scoped, tag = 'internal scratch']
  #allocation2 [shape = 'f32[12,152,12]{2,1,0:T(8,128)}', space=vmem, size = 0xe4000, scoped, tag = 'scratch operand']
  %s0 = inlined_call_operand.vmem [shape: f32[2,16,6,16], index: 0, kind: input, shape index: {}]
  %s1 = inlined_call_operand.vmem [shape: f32[16,152], index: 1, kind: input, shape index: {}]
  %s2 = inlined_call_operand.vmem [shape: f32[2,12,16,12], index: 2, kind: output, shape index: {}]
  %s3 = sld [smem:[#allocation0]]
  $region41: #{c3_forward.1} parent=0
    _
  %s5 = ssub.s32 1, %s3
  %s6 = scalar_select 0, %s5, %s3
  loop: start=0, step=1, limit=4
  $region2: #{c3_forward.1} parent=0 // loop_pre_header
    _
  $region3: #{c3_forward.1} parent=0 // loop_header
    %s8 = sphi 0, %s12
    %p9 = scmp.ge.s32.totalorder %s8, 4
    %s18 = sphi 0, %s20
    %s21 = sphi 0, %s18
    %s22 = sphi 0, %s21
    %s38 = sphi 0, %s22
    %s42 = sphi 0, %s42
    %s44 = sphi 0, %s42
    %s45 = sphi 0, %s44
    %s59 = sphi 0, %s45
    %s65 = sphi 0, %s67
    %s68 = sphi 0, %s65
    %s69 = sphi 0, %s68
    %s85 = sphi 0, %s69
  $region4: #{c3_forward.1} parent=0 // loop_header_branch
    %11 = sbr.rel (%p9) target = $region8
  $region5: #{c3_forward.1} parent=0 // loop_body
    %s13 = ssub.s32 %s8, 1
    %s14 = ssub.s32 %s8, 2
    %s15 = sadd.s32 %s8, 1
    %s16 = ssub.s32 %s8, %s15
    %p17 = scmp.eq.s32.totalorder %s16, 0
    %s19 = sadd.s32 %s18, 1
    %s20 = scalar_select %p17, %s18, %s19
    %p23 = pneg %p17
    %p24 = scmp.eq.s32.totalorder %s8, 1
    %p25 = por %p23, %p24
    %p26 = scmp.ne.s32.totalorder %s18, %s21
    %p27 = scmp.eq.s32.totalorder %s8, 0
    %p28 = por %p26, %p27
    %p29 = scmp.ne.s32.totalorder %s18, %s21
    %p30 = scmp.eq.s32.totalorder %s13, 1
    %p31 = por %p29, %p30
    %p32 = scmp.ne.s32.totalorder %s21, %s22
    %p33 = scmp.eq.s32.totalorder %s13, 0
    %p34 = por %p32, %p33
    %p35 = scmp.ne.s32.totalorder %s21, %s22
    %p36 = scmp.eq.s32.totalorder %s14, 1
    %p37 = por %p35, %p36
    %p39 = scmp.ne.s32.totalorder %s22, %s38
    %p40 = scmp.eq.s32.totalorder %s14, 0
    %p41 = por %p39, %p40
    %s43 = sadd.s32 %s42, 1
    %p46 = scmp.eq.s32.totalorder %s8, 1
    %p47 = scmp.ne.s32.totalorder %s42, %s44
    %p48 = scmp.eq.s32.totalorder %s8, 0
    %p49 = por %p47, %p48
    %p50 = scmp.ne.s32.totalorder %s42, %s44
    %p51 = scmp.eq.s32.totalorder %s13, 1
    %p52 = por %p50, %p51
    %p53 = scmp.ne.s32.totalorder %s44, %s45
    %p54 = scmp.eq.s32.totalorder %s13, 0
    %p55 = por %p53, %p54
    %p56 = scmp.ne.s32.totalorder %s44, %s45
    %p57 = scmp.eq.s32.totalorder %s14, 1
    %p58 = por %p56, %p57
    %p60 = scmp.ne.s32.totalorder %s45, %s59
    %p61 = scmp.eq.s32.totalorder %s14, 0
    %p62 = por %p60, %p61
    %s63 = ssub.s32 %s8, %s15
    %p64 = scmp.eq.s32.totalorder %s63, 0
    %s66 = sadd.s32 %s65, 1
    %s67 = scalar_select %p64, %s65, %s66
    %p70 = pneg %p64
    %p71 = scmp.eq.s32.totalorder %s8, 1
    %p72 = por %p70, %p71
    %p73 = scmp.ne.s32.totalorder %s65, %s68
    %p74 = scmp.eq.s32.totalorder %s8, 0
    %p75 = por %p73, %p74
    %p76 = scmp.ne.s32.totalorder %s65, %s68
    %p77 = scmp.eq.s32.totalorder %s13, 1
    %p78 = por %p76, %p77
    %p79 = scmp.ne.s32.totalorder %s68, %s69
    %p80 = scmp.eq.s32.totalorder %s13, 0
    %p81 = por %p79, %p80
    %p82 = scmp.ne.s32.totalorder %s68, %s69
    %p83 = scmp.eq.s32.totalorder %s14, 1
    %p84 = por %p82, %p83
    %p86 = scmp.ne.s32.totalorder %s69, %s85
    %p87 = scmp.eq.s32.totalorder %s14, 0
    %p88 = por %p86, %p87
    %p89 = scmp.le.s32.totalorder 1, %s8
    %p90 = scmp.lt.s32.totalorder %s8, 3
    %p91 = pnand %p89, %p90
    %p92 = pneg %p91
    // Predicated region
    $region9: #{c3_forward.1} parent=5 // pred_check
      _
    $region10: #{c3_forward.1} parent=5 // pred_check_branch
      %94 = sbr.rel (%p91) target = $region12
    $region11: #{c3_forward.1} parent=5 // pred_region
      %s95 = ssub.s32 %s8, 1
      // Predicated region
      $region13: #{c3_forward.1} parent=11 // pred_check
        %p96 = pneg %p55
      $region14: #{c3_forward.1} parent=11 // pred_check_branch
        %98 = sbr.rel (%p96) target = $region16
      $region15: #{c3_forward.1} parent=11 // pred_region
        _
      $region16: #{c3_forward.1} parent=11 // pred_fallthru
        _
    $region12: #{c3_forward.1} parent=5 // pred_fallthru
      _
    %p99 = scmp.lt.s32.totalorder %s8, 2
    // Predicated region
    $region17: #{c3_forward.1} parent=5 // pred_check
      %p100 = pneg %p99
    $region18: #{c3_forward.1} parent=5 // pred_check_branch
      %102 = sbr.rel (%p100) target = $region20
    $region19: #{c3_forward.1} parent=5 // pred_region
      // Predicated region
      $region21: #{c3_forward.1} parent=19 // pred_check
        %p103 = pneg %p28
      $region22: #{c3_forward.1} parent=19 // pred_check_branch
        %105 = sbr.rel (%p103) target = $region24
      $region23: #{c3_forward.1} parent=19 // pred_region
        %p106 = scmp.lt.s32.totalorder %s8, 1
        %s107 = scalar_select %p106, %s8, 1
        %s108 = smul.addr %s107, 16
        %s109 = smul.addr %s108, 8
        %s110 = scalar_lea.vmem %s0, %s109
      $region24: #{c3_forward.1} parent=19 // pred_fallthru
        _
    $region20: #{c3_forward.1} parent=5 // pred_fallthru
      _
    %p111 = scmp.le.s32.totalorder 1, %s8
    %p112 = scmp.lt.s32.totalorder %s8, 3
    %p113 = pnand %p111, %p112
    %p114 = pneg %p113
    // Predicated region
    $region25: #{c3_forward.1} parent=5 // pred_check
      _
    $region26: #{c3_forward.1} parent=5 // pred_check_branch
      %116 = sbr.rel (%p113) target = $region28
    $region27: #{c3_forward.1} parent=5 // pred_region
      %s117 = ssub.s32 %s8, 1
      %p118 = scmp.lt.s32.totalorder %s13, 1
      %s119 = scalar_select %p118, %s13, 1
      %s120 = smul.addr %s119, 16
      %s121 = smul.addr %s120, 8
      %s122 = scalar_lea.vmem %s0, %s121
      %p123 = pneg %p34
      %p124 = pneg %p31
      %p125 = pneg %p55
      %p126 = pneg %p52
      %p127 = pneg %p81
      %p128 = pneg %p78
      %p129 = scmp.lt.s32.totalorder %s13, 1
      %s130 = scalar_select %p129, %s13, 1
      %s131 = smul.addr %s130, 24
      %s132 = smul.addr %s131, 8
      %s133 = scalar_lea.vmem %s2, %s132
      %p134 = scmp.lt.s32.totalorder %s13, 1
      %s135 = scalar_select %p134, %s13, 1
      %s136 = smul.addr %s135, 16
      %s137 = smul.addr %s136, 8
      %s138 = scalar_lea.vmem %s0, %s137
      %p139 = scmp.lt.s32.totalorder %s13, 1
      %s140 = scalar_select %p139, %s13, 1
      %s141 = smul.addr %s140, 24
      %s142 = smul.addr %s141, 8
      %s143 = scalar_lea.vmem %s2, %s142
      %vm144 = vcmask 90112
      %145 = vst.msk [vmem:[#allocation2 + $0x96] sm:$0x1] %vm144, 1.0
      %146 = vst.msk [vmem:[#allocation2 + $0x12e] sm:$0x1] %vm144, 1.0
      %147 = vst.msk [vmem:[#allocation2 + $0x1c6] sm:$0x1] %vm144, 1.0
      %148 = vst.msk [vmem:[#allocation2 + $0x25e] sm:$0x1] %vm144, 1.0
      %149 = vst.msk [vmem:[#allocation2 + $0x2f6] sm:$0x1] %vm144, 1.0
      %150 = vst.msk [vmem:[#allocation2 + $0x38e] sm:$0x1] %vm144, 1.0
      %151 = vst.msk [vmem:[#allocation2 + $0x426] sm:$0x1] %vm144, 1.0
      %152 = vst.msk [vmem:[#allocation2 + $0x4be] sm:$0x1] %vm144, 1.0
      %153 = vst.msk [vmem:[#allocation2 + $0x556] sm:$0x1] %vm144, 1.0
      %154 = vst.msk [vmem:[#allocation2 + $0x5ee] sm:$0x1] %vm144, 1.0
      %155 = vst.msk [vmem:[#allocation2 + $0x686] sm:$0x1] %vm144, 1.0
      %156 = vst.msk [vmem:[#allocation2 + $0x71e] sm:$0x1] %vm144, 1.0
      %157 = vst.msk [vmem:[#allocation2 + $0x97] sm:$0x1] %vm144, 0.0
      %158 = vst.msk [vmem:[#allocation2 + $0x12f] sm:$0x1] %vm144, 0.0
      %159 = vst.msk [vmem:[#allocation2 + $0x1c7] sm:$0x1] %vm144, 0.0
      %160 = vst.msk [vmem:[#allocation2 + $0x25f] sm:$0x1] %vm144, 0.0
      %161 = vst.msk [vmem:[#allocation2 + $0x2f7] sm:$0x1] %vm144, 0.0
      %162 = vst.msk [vmem:[#allocation2 + $0x38f] sm:$0x1] %vm144, 0.0
      %163 = vst.msk [vmem:[#allocation2 + $0x427] sm:$0x1] %vm144, 0.0
      %164 = vst.msk [vmem:[#allocation2 + $0x4bf] sm:$0x1] %vm144, 0.0
      %165 = vst.msk [vmem:[#allocation2 + $0x557] sm:$0x1] %vm144, 0.0
      %166 = vst.msk [vmem:[#allocation2 + $0x5ef] sm:$0x1] %vm144, 0.0
      %167 = vst.msk [vmem:[#allocation2 + $0x687] sm:$0x1] %vm144, 0.0
      %168 = vst.msk [vmem:[#allocation2 + $0x71f] sm:$0x1] %vm144, 0.0
      %v169 = vld [vmem:[%s138] sm:$0x3f]
      %v170 = vld [vmem:[%s138 + $0x8] sm:$0x3f]
      %v171 = vld [vmem:[%s138 + $0x10] sm:$0x3f]
      %v172 = vld [vmem:[%s138 + $0x18] sm:$0x3f]
      %v173 = vld [vmem:[%s138 + $0x20] sm:$0x3f]
      %v174 = vld [vmem:[%s138 + $0x28] sm:$0x3f]
      %v175 = vld [vmem:[%s138 + $0x30] sm:$0x3f]
      %v176 = vld [vmem:[%s138 + $0x38] sm:$0x3f]
      %v177 = vld [vmem:[%s138 + $0x40] sm:$0x3f]
      %v178 = vld [vmem:[%s138 + $0x48] sm:$0x3f]
      %v179 = vld [vmem:[%s138 + $0x50] sm:$0x3f]
      %v180 = vld [vmem:[%s138 + $0x58] sm:$0x3f]
      %vm181 = vcmask 95232
      %182 = vst.msk [vmem:[#allocation2] sm:$0x3f] %vm181, %v169
      %183 = vst.msk [vmem:[#allocation2 + $0x98] sm:$0x3f] %vm181, %v170
      %184 = vst.msk [vmem:[#allocation2 + $0x130] sm:$0x3f] %vm181, %v171
      %185 = vst.msk [vmem:[#allocation2 + $0x1c8] sm:$0x3f] %vm181, %v172
      %186 = vst.msk [vmem:[#allocation2 + $0x260] sm:$0x3f] %vm181, %v173
      %187 = vst.msk [vmem:[#allocation2 + $0x2f8] sm:$0x3f] %vm181, %v174
      %188 = vst.msk [vmem:[#allocation2 + $0x390] sm:$0x3f] %vm181, %v175
      %189 = vst.msk [vmem:[#allocation2 + $0x428] sm:$0x3f] %vm181, %v176
      %190 = vst.msk [vmem:[#allocation2 + $0x4c0] sm:$0x3f] %vm181, %v177
      %191 = vst.msk [vmem:[#allocation2 + $0x558] sm:$0x3f] %vm181, %v178
      %192 = vst.msk [vmem:[#allocation2 + $0x5f0] sm:$0x3f] %vm181, %v179
      %193 = vst.msk [vmem:[#allocation2 + $0x688] sm:$0x3f] %vm181, %v180
      %v194 = vld [vmem:[%s138] sm:$0x3f]
      %v195 = vld [vmem:[%s138 + $0x8] sm:$0x3f]
      %v196 = vld [vmem:[%s138 + $0x10] sm:$0x3f]
      %v197 = vld [vmem:[%s138 + $0x18] sm:$0x3f]
      %v198 = vld [vmem:[%s138 + $0x20] sm:$0x3f]
      %v199 = vld [vmem:[%s138 + $0x28] sm:$0x3f]
      %v200 = vld [vmem:[%s138 + $0x30] sm:$0x3f]
      %v201 = vld [vmem:[%s138 + $0x38] sm:$0x3f]
      %v202 = vld [vmem:[%s138 + $0x40] sm:$0x3f]
      %v203 = vld [vmem:[%s138 + $0x48] sm:$0x3f]
      %v204 = vld [vmem:[%s138 + $0x50] sm:$0x3f]
      %v205 = vld [vmem:[%s138 + $0x58] sm:$0x3f]
      %218 = vrot.lane.b32.xlu0 %v194, 127
      %v219 = vpop.permute.xlu0 %218
      %220 = vrot.lane.b32.xlu0 %v195, 127
      %v221 = vpop.permute.xlu0 %220
      %222 = vrot.lane.b32.xlu0 %v196, 127
      %v223 = vpop.permute.xlu0 %222
      %224 = vrot.lane.b32.xlu0 %v197, 127
      %v225 = vpop.permute.xlu0 %224
      %226 = vrot.lane.b32.xlu0 %v198, 127
      %v227 = vpop.permute.xlu0 %226
      %228 = vrot.lane.b32.xlu0 %v199, 127
      %v229 = vpop.permute.xlu0 %228
      %230 = vrot.lane.b32.xlu0 %v200, 127
      %v231 = vpop.permute.xlu0 %230
      %232 = vrot.lane.b32.xlu0 %v201, 127
      %v233 = vpop.permute.xlu0 %232
      %234 = vrot.lane.b32.xlu0 %v202, 127
      %v235 = vpop.permute.xlu0 %234
      %236 = vrot.lane.b32.xlu0 %v203, 127
      %v237 = vpop.permute.xlu0 %236
      %238 = vrot.lane.b32.xlu0 %v204, 127
      %v239 = vpop.permute.xlu0 %238
      %240 = vrot.lane.b32.xlu0 %v205, 127
      %v241 = vpop.permute.xlu0 %240
      %254 = vst.msk [vmem:[#allocation2 + $0x6] sm:$0x3f] %vm181, %v219
      %255 = vst.msk [vmem:[#allocation2 + $0x9e] sm:$0x3f] %vm181, %v221
      %256 = vst.msk [vmem:[#allocation2 + $0x136] sm:$0x3f] %vm181, %v223
      %257 = vst.msk [vmem:[#allocation2 + $0x1ce] sm:$0x3f] %vm181, %v225
      %258 = vst.msk [vmem:[#allocation2 + $0x266] sm:$0x3f] %vm181, %v227
      %259 = vst.msk [vmem:[#allocation2 + $0x2fe] sm:$0x3f] %vm181, %v229
      %260 = vst.msk [vmem:[#allocation2 + $0x396] sm:$0x3f] %vm181, %v231
      %261 = vst.msk [vmem:[#allocation2 + $0x42e] sm:$0x3f] %vm181, %v233
      %262 = vst.msk [vmem:[#allocation2 + $0x4c6] sm:$0x3f] %vm181, %v235
      %263 = vst.msk [vmem:[#allocation2 + $0x55e] sm:$0x3f] %vm181, %v237
      %264 = vst.msk [vmem:[#allocation2 + $0x5f6] sm:$0x3f] %vm181, %v239
      %265 = vst.msk [vmem:[#allocation2 + $0x68e] sm:$0x3f] %vm181, %v241
      %v266 = vld [vmem:[%s138] sm:$0x3f]
      %v267 = vld [vmem:[%s138 + $0x8] sm:$0x3f]
      %v268 = vld [vmem:[%s138 + $0x10] sm:$0x3f]
      %v269 = vld [vmem:[%s138 + $0x18] sm:$0x3f]
      %v270 = vld [vmem:[%s138 + $0x20] sm:$0x3f]
      %v271 = vld [vmem:[%s138 + $0x28] sm:$0x3f]
      %v272 = vld [vmem:[%s138 + $0x30] sm:$0x3f]
      %v273 = vld [vmem:[%s138 + $0x38] sm:$0x3f]
      %v274 = vld [vmem:[%s138 + $0x40] sm:$0x3f]
      %v275 = vld [vmem:[%s138 + $0x48] sm:$0x3f]
      %v276 = vld [vmem:[%s138 + $0x50] sm:$0x3f]
      %v277 = vld [vmem:[%s138 + $0x58] sm:$0x3f]
      %290 = vrot.lane.b32.xlu0 %v266, 126
      %v291 = vpop.permute.xlu0 %290
      %292 = vrot.lane.b32.xlu0 %v267, 126
      %v293 = vpop.permute.xlu0 %292
      %294 = vrot.lane.b32.xlu0 %v268, 126
      %v295 = vpop.permute.xlu0 %294
      %296 = vrot.lane.b32.xlu0 %v269, 126
      %v297 = vpop.permute.xlu0 %296
      %298 = vrot.lane.b32.xlu0 %v270, 126
      %v299 = vpop.permute.xlu0 %298
      %300 = vrot.lane.b32.xlu0 %v271, 126
      %v301 = vpop.permute.xlu0 %300
      %302 = vrot.lane.b32.xlu0 %v272, 126
      %v303 = vpop.permute.xlu0 %302
      %304 = vrot.lane.b32.xlu0 %v273, 126
      %v305 = vpop.permute.xlu0 %304
      %306 = vrot.lane.b32.xlu0 %v274, 126
      %v307 = vpop.permute.xlu0 %306
      %308 = vrot.lane.b32.xlu0 %v275, 126
      %v309 = vpop.permute.xlu0 %308
      %310 = vrot.lane.b32.xlu0 %v276, 126
      %v311 = vpop.permute.xlu0 %310
      %312 = vrot.lane.b32.xlu0 %v277, 126
      %v313 = vpop.permute.xlu0 %312
      %326 = vst.msk [vmem:[#allocation2 + $0xc] sm:$0x3f] %vm181, %v291
      %327 = vst.msk [vmem:[#allocation2 + $0xa4] sm:$0x3f] %vm181, %v293
      %328 = vst.msk [vmem:[#allocation2 + $0x13c] sm:$0x3f] %vm181, %v295
      %329 = vst.msk [vmem:[#allocation2 + $0x1d4] sm:$0x3f] %vm181, %v297
      %330 = vst.msk [vmem:[#allocation2 + $0x26c] sm:$0x3f] %vm181, %v299
      %331 = vst.msk [vmem:[#allocation2 + $0x304] sm:$0x3f] %vm181, %v301
      %332 = vst.msk [vmem:[#allocation2 + $0x39c] sm:$0x3f] %vm181, %v303
      %333 = vst.msk [vmem:[#allocation2 + $0x434] sm:$0x3f] %vm181, %v305
      %334 = vst.msk [vmem:[#allocation2 + $0x4cc] sm:$0x3f] %vm181, %v307
      %335 = vst.msk [vmem:[#allocation2 + $0x564] sm:$0x3f] %vm181, %v309
      %336 = vst.msk [vmem:[#allocation2 + $0x5fc] sm:$0x3f] %vm181, %v311
      %337 = vst.msk [vmem:[#allocation2 + $0x694] sm:$0x3f] %vm181, %v313
      %v338 = vld [vmem:[%s138] sm:$0x3f]
      %v339 = vld [vmem:[%s138 + $0x8] sm:$0x3f]
      %v340 = vld [vmem:[%s138 + $0x10] sm:$0x3f]
      %v341 = vld [vmem:[%s138 + $0x18] sm:$0x3f]
      %v342 = vld [vmem:[%s138 + $0x20] sm:$0x3f]
      %v343 = vld [vmem:[%s138 + $0x28] sm:$0x3f]
      %v344 = vld [vmem:[%s138 + $0x30] sm:$0x3f]
      %v345 = vld [vmem:[%s138 + $0x38] sm:$0x3f]
      %v346 = vld [vmem:[%s138 + $0x40] sm:$0x3f]
      %v347 = vld [vmem:[%s138 + $0x48] sm:$0x3f]
      %v348 = vld [vmem:[%s138 + $0x50] sm:$0x3f]
      %v349 = vld [vmem:[%s138 + $0x58] sm:$0x3f]
      %362 = vrot.lane.b32.xlu0 %v338, 125
      %v363 = vpop.permute.xlu0 %362
      %364 = vrot.lane.b32.xlu0 %v339, 125
      %v365 = vpop.permute.xlu0 %364
      %366 = vrot.lane.b32.xlu0 %v340, 125
      %v367 = vpop.permute.xlu0 %366
      %368 = vrot.lane.b32.xlu0 %v341, 125
      %v369 = vpop.permute.xlu0 %368
      %370 = vrot.lane.b32.xlu0 %v342, 125
      %v371 = vpop.permute.xlu0 %370
      %372 = vrot.lane.b32.xlu0 %v343, 125
      %v373 = vpop.permute.xlu0 %372
      %374 = vrot.lane.b32.xlu0 %v344, 125
      %v375 = vpop.permute.xlu0 %374
      %376 = vrot.lane.b32.xlu0 %v345, 125
      %v377 = vpop.permute.xlu0 %376
      %378 = vrot.lane.b32.xlu0 %v346, 125
      %v379 = vpop.permute.xlu0 %378
      %380 = vrot.lane.b32.xlu0 %v347, 125
      %v381 = vpop.permute.xlu0 %380
      %382 = vrot.lane.b32.xlu0 %v348, 125
      %v383 = vpop.permute.xlu0 %382
      %384 = vrot.lane.b32.xlu0 %v349, 125
      %v385 = vpop.permute.xlu0 %384
      %398 = vst.msk [vmem:[#allocation2 + $0x12] sm:$0x3f] %vm181, %v363
      %399 = vst.msk [vmem:[#allocation2 + $0xaa] sm:$0x3f] %vm181, %v365
      %400 = vst.msk [vmem:[#allocation2 + $0x142] sm:$0x3f] %vm181, %v367
      %401 = vst.msk [vmem:[#allocation2 + $0x1da] sm:$0x3f] %vm181, %v369
      %402 = vst.msk [vmem:[#allocation2 + $0x272] sm:$0x3f] %vm181, %v371
      %403 = vst.msk [vmem:[#allocation2 + $0x30a] sm:$0x3f] %vm181, %v373
      %404 = vst.msk [vmem:[#allocation2 + $0x3a2] sm:$0x3f] %vm181, %v375
      %405 = vst.msk [vmem:[#allocation2 + $0x43a] sm:$0x3f] %vm181, %v377
      %406 = vst.msk [vmem:[#allocation2 + $0x4d2] sm:$0x3f] %vm181, %v379
      %407 = vst.msk [vmem:[#allocation2 + $0x56a] sm:$0x3f] %vm181, %v381
      %408 = vst.msk [vmem:[#allocation2 + $0x602] sm:$0x3f] %vm181, %v383
      %409 = vst.msk [vmem:[#allocation2 + $0x69a] sm:$0x3f] %vm181, %v385
      %v410 = vld [vmem:[%s138] sm:$0x3f]
      %v411 = vld [vmem:[%s138 + $0x8] sm:$0x3f]
      %v412 = vld [vmem:[%s138 + $0x10] sm:$0x3f]
      %v413 = vld [vmem:[%s138 + $0x18] sm:$0x3f]
      %v414 = vld [vmem:[%s138 + $0x20] sm:$0x3f]
      %v415 = vld [vmem:[%s138 + $0x28] sm:$0x3f]
      %v416 = vld [vmem:[%s138 + $0x30] sm:$0x3f]
      %v417 = vld [vmem:[%s138 + $0x38] sm:$0x3f]
      %v418 = vld [vmem:[%s138 + $0x40] sm:$0x3f]
      %v419 = vld [vmem:[%s138 + $0x48] sm:$0x3f]
      %v420 = vld [vmem:[%s138 + $0x50] sm:$0x3f]
      %v421 = vld [vmem:[%s138 + $0x58] sm:$0x3f]
      %434 = vrot.lane.b32.xlu0 %v410, 124
      %v435 = vpop.permute.xlu0 %434
      %436 = vrot.lane.b32.xlu0 %v411, 124
      %v437 = vpop.permute.xlu0 %436
      %438 = vrot.lane.b32.xlu0 %v412, 124
      %v439 = vpop.permute.xlu0 %438
      %440 = vrot.lane.b32.xlu0 %v413, 124
      %v441 = vpop.permute.xlu0 %440
      %442 = vrot.lane.b32.xlu0 %v414, 124
      %v443 = vpop.permute.xlu0 %442
      %444 = vrot.lane.b32.xlu0 %v415, 124
      %v445 = vpop.permute.xlu0 %444
      %446 = vrot.lane.b32.xlu0 %v416, 124
      %v447 = vpop.permute.xlu0 %446
      %448 = vrot.lane.b32.xlu0 %v417, 124
      %v449 = vpop.permute.xlu0 %448
      %450 = vrot.lane.b32.xlu0 %v418, 124
      %v451 = vpop.permute.xlu0 %450
      %452 = vrot.lane.b32.xlu0 %v419, 124
      %v453 = vpop.permute.xlu0 %452
      %454 = vrot.lane.b32.xlu0 %v420, 124
      %v455 = vpop.permute.xlu0 %454
      %456 = vrot.lane.b32.xlu0 %v421, 124
      %v457 = vpop.permute.xlu0 %456
      %470 = vst.msk [vmem:[#allocation2 + $0x18] sm:$0x3f] %vm181, %v435
      %471 = vst.msk [vmem:[#allocation2 + $0xb0] sm:$0x3f] %vm181, %v437
      %472 = vst.msk [vmem:[#allocation2 + $0x148] sm:$0x3f] %vm181, %v439
      %473 = vst.msk [vmem:[#allocation2 + $0x1e0] sm:$0x3f] %vm181, %v441
      %474 = vst.msk [vmem:[#allocation2 + $0x278] sm:$0x3f] %vm181, %v443
      %475 = vst.msk [vmem:[#allocation2 + $0x310] sm:$0x3f] %vm181, %v445
      %476 = vst.msk [vmem:[#allocation2 + $0x3a8] sm:$0x3f] %vm181, %v447
      %477 = vst.msk [vmem:[#allocation2 + $0x440] sm:$0x3f] %vm181, %v449
      %478 = vst.msk [vmem:[#allocation2 + $0x4d8] sm:$0x3f] %vm181, %v451
      %479 = vst.msk [vmem:[#allocation2 + $0x570] sm:$0x3f] %vm181, %v453
      %480 = vst.msk [vmem:[#allocation2 + $0x608] sm:$0x3f] %vm181, %v455
      %481 = vst.msk [vmem:[#allocation2 + $0x6a0] sm:$0x3f] %vm181, %v457
      %s482 = scalar_lea.vmem %s138, 8
      %v483 = vld [vmem:[%s482] sm:$0x3f]
      %v484 = vld [vmem:[%s482 + $0x8] sm:$0x3f]
      %v485 = vld [vmem:[%s482 + $0x10] sm:$0x3f]
      %v486 = vld [vmem:[%s482 + $0x18] sm:$0x3f]
      %v487 = vld [vmem:[%s482 + $0x20] sm:$0x3f]
      %v488 = vld [vmem:[%s482 + $0x28] sm:$0x3f]
      %v489 = vld [vmem:[%s482 + $0x30] sm:$0x3f]
      %v490 = vld [vmem:[%s482 + $0x38] sm:$0x3f]
      %v491 = vld [vmem:[%s482 + $0x40] sm:$0x3f]
      %v492 = vld [vmem:[%s482 + $0x48] sm:$0x3f]
      %v493 = vld [vmem:[%s482 + $0x50] sm:$0x3f]
      %v494 = vld [vmem:[%s482 + $0x58] sm:$0x3f]
      %495 = vst.msk [vmem:[#allocation2 + $0x1e] sm:$0x3f] %vm181, %v483
      %496 = vst.msk [vmem:[#allocation2 + $0xb6] sm:$0x3f] %vm181, %v484
      %497 = vst.msk [vmem:[#allocation2 + $0x14e] sm:$0x3f] %vm181, %v485
      %498 = vst.msk [vmem:[#allocation2 + $0x1e6] sm:$0x3f] %vm181, %v486
      %499 = vst.msk [vmem:[#allocation2 + $0x27e] sm:$0x3f] %vm181, %v487
      %500 = vst.msk [vmem:[#allocation2 + $0x316] sm:$0x3f] %vm181, %v488
      %501 = vst.msk [vmem:[#allocation2 + $0x3ae] sm:$0x3f] %vm181, %v489
      %502 = vst.msk [vmem:[#allocation2 + $0x446] sm:$0x3f] %vm181, %v490
      %503 = vst.msk [vmem:[#allocation2 + $0x4de] sm:$0x3f] %vm181, %v491
      %504 = vst.msk [vmem:[#allocation2 + $0x576] sm:$0x3f] %vm181, %v492
      %505 = vst.msk [vmem:[#allocation2 + $0x60e] sm:$0x3f] %vm181, %v493
      %506 = vst.msk [vmem:[#allocation2 + $0x6a6] sm:$0x3f] %vm181, %v494
      %v507 = vld [vmem:[%s482] sm:$0x3f]
      %v508 = vld [vmem:[%s482 + $0x8] sm:$0x3f]
      %v509 = vld [vmem:[%s482 + $0x10] sm:$0x3f]
      %v510 = vld [vmem:[%s482 + $0x18] sm:$0x3f]
      %v511 = vld [vmem:[%s482 + $0x20] sm:$0x3f]
      %v512 = vld [vmem:[%s482 + $0x28] sm:$0x3f]
      %v513 = vld [vmem:[%s482 + $0x30] sm:$0x3f]
      %v514 = vld [vmem:[%s482 + $0x38] sm:$0x3f]
      %v515 = vld [vmem:[%s482 + $0x40] sm:$0x3f]
      %v516 = vld [vmem:[%s482 + $0x48] sm:$0x3f]
      %v517 = vld [vmem:[%s482 + $0x50] sm:$0x3f]
      %v518 = vld [vmem:[%s482 + $0x58] sm:$0x3f]
      %531 = vrot.lane.b32.xlu0 %v507, 127
      %v532 = vpop.permute.xlu0 %531
      %533 = vrot.lane.b32.xlu0 %v508, 127
      %v534 = vpop.permute.xlu0 %533
      %535 = vrot.lane.b32.xlu0 %v509, 127
      %v536 = vpop.permute.xlu0 %535
      %537 = vrot.lane.b32.xlu0 %v510, 127
      %v538 = vpop.permute.xlu0 %537
      %539 = vrot.lane.b32.xlu0 %v511, 127
      %v540 = vpop.permute.xlu0 %539
      %541 = vrot.lane.b32.xlu0 %v512, 127
      %v542 = vpop.permute.xlu0 %541
      %543 = vrot.lane.b32.xlu0 %v513, 127
      %v544 = vpop.permute.xlu0 %543
      %545 = vrot.lane.b32.xlu0 %v514, 127
      %v546 = vpop.permute.xlu0 %545
      %547 = vrot.lane.b32.xlu0 %v515, 127
      %v548 = vpop.permute.xlu0 %547
      %549 = vrot.lane.b32.xlu0 %v516, 127
      %v550 = vpop.permute.xlu0 %549
      %551 = vrot.lane.b32.xlu0 %v517, 127
      %v552 = vpop.permute.xlu0 %551
      %553 = vrot.lane.b32.xlu0 %v518, 127
      %v554 = vpop.permute.xlu0 %553
      %567 = vst.msk [vmem:[#allocation2 + $0x24] sm:$0x3f] %vm181, %v532
      %568 = vst.msk [vmem:[#allocation2 + $0xbc] sm:$0x3f] %vm181, %v534
      %569 = vst.msk [vmem:[#allocation2 + $0x154] sm:$0x3f] %vm181, %v536
      %570 = vst.msk [vmem:[#allocation2 + $0x1ec] sm:$0x3f] %vm181, %v538
      %571 = vst.msk [vmem:[#allocation2 + $0x284] sm:$0x3f] %vm181, %v540
      %572 = vst.msk [vmem:[#allocation2 + $0x31c] sm:$0x3f] %vm181, %v542
      %573 = vst.msk [vmem:[#allocation2 + $0x3b4] sm:$0x3f] %vm181, %v544
      %574 = vst.msk [vmem:[#allocation2 + $0x44c] sm:$0x3f] %vm181, %v546
      %575 = vst.msk [vmem:[#allocation2 + $0x4e4] sm:$0x3f] %vm181, %v548
      %576 = vst.msk [vmem:[#allocation2 + $0x57c] sm:$0x3f] %vm181, %v550
      %577 = vst.msk [vmem:[#allocation2 + $0x614] sm:$0x3f] %vm181, %v552
      %578 = vst.msk [vmem:[#allocation2 + $0x6ac] sm:$0x3f] %vm181, %v554
      %v579 = vld [vmem:[%s482] sm:$0x3f]
      %v580 = vld [vmem:[%s482 + $0x8] sm:$0x3f]
      %v581 = vld [vmem:[%s482 + $0x10] sm:$0x3f]
      %v582 = vld [vmem:[%s482 + $0x18] sm:$0x3f]
      %v583 = vld [vmem:[%s482 + $0x20] sm:$0x3f]
      %v584 = vld [vmem:[%s482 + $0x28] sm:$0x3f]
      %v585 = vld [vmem:[%s482 + $0x30] sm:$0x3f]
      %v586 = vld [vmem:[%s482 + $0x38] sm:$0x3f]
      %v587 = vld [vmem:[%s482 + $0x40] sm:$0x3f]
      %v588 = vld [vmem:[%s482 + $0x48] sm:$0x3f]
      %v589 = vld [vmem:[%s482 + $0x50] sm:$0x3f]
      %v590 = vld [vmem:[%s482 + $0x58] sm:$0x3f]
      %603 = vrot.lane.b32.xlu0 %v579, 126
      %v604 = vpop.permute.xlu0 %603
      %605 = vrot.lane.b32.xlu0 %v580, 126
      %v606 = vpop.permute.xlu0 %605
      %607 = vrot.lane.b32.xlu0 %v581, 126
      %v608 = vpop.permute.xlu0 %607
      %609 = vrot.lane.b32.xlu0 %v582, 126
      %v610 = vpop.permute.xlu0 %609
      %611 = vrot.lane.b32.xlu0 %v583, 126
      %v612 = vpop.permute.xlu0 %611
      %613 = vrot.lane.b32.xlu0 %v584, 126
      %v614 = vpop.permute.xlu0 %613
      %615 = vrot.lane.b32.xlu0 %v585, 126
      %v616 = vpop.permute.xlu0 %615
      %617 = vrot.lane.b32.xlu0 %v586, 126
      %v618 = vpop.permute.xlu0 %617
      %619 = vrot.lane.b32.xlu0 %v587, 126
      %v620 = vpop.permute.xlu0 %619
      %621 = vrot.lane.b32.xlu0 %v588, 126
      %v622 = vpop.permute.xlu0 %621
      %623 = vrot.lane.b32.xlu0 %v589, 126
      %v624 = vpop.permute.xlu0 %623
      %625 = vrot.lane.b32.xlu0 %v590, 126
      %v626 = vpop.permute.xlu0 %625
      %639 = vst.msk [vmem:[#allocation2 + $0x2a] sm:$0x3f] %vm181, %v604
      %640 = vst.msk [vmem:[#allocation2 + $0xc2] sm:$0x3f] %vm181, %v606
      %641 = vst.msk [vmem:[#allocation2 + $0x15a] sm:$0x3f] %vm181, %v608
      %642 = vst.msk [vmem:[#allocation2 + $0x1f2] sm:$0x3f] %vm181, %v610
      %643 = vst.msk [vmem:[#allocation2 + $0x28a] sm:$0x3f] %vm181, %v612
      %644 = vst.msk [vmem:[#allocation2 + $0x322] sm:$0x3f] %vm181, %v614
      %645 = vst.msk [vmem:[#allocation2 + $0x3ba] sm:$0x3f] %vm181, %v616
      %646 = vst.msk [vmem:[#allocation2 + $0x452] sm:$0x3f] %vm181, %v618
      %647 = vst.msk [vmem:[#allocation2 + $0x4ea] sm:$0x3f] %vm181, %v620
      %648 = vst.msk [vmem:[#allocation2 + $0x582] sm:$0x3f] %vm181, %v622
      %649 = vst.msk [vmem:[#allocation2 + $0x61a] sm:$0x3f] %vm181, %v624
      %650 = vst.msk [vmem:[#allocation2 + $0x6b2] sm:$0x3f] %vm181, %v626
      %v651 = vld [vmem:[%s482] sm:$0x3f]
      %v652 = vld [vmem:[%s482 + $0x8] sm:$0x3f]
      %v653 = vld [vmem:[%s482 + $0x10] sm:$0x3f]
      %v654 = vld [vmem:[%s482 + $0x18] sm:$0x3f]
      %v655 = vld [vmem:[%s482 + $0x20] sm:$0x3f]
      %v656 = vld [vmem:[%s482 + $0x28] sm:$0x3f]
      %v657 = vld [vmem:[%s482 + $0x30] sm:$0x3f]
      %v658 = vld [vmem:[%s482 + $0x38] sm:$0x3f]
      %v659 = vld [vmem:[%s482 + $0x40] sm:$0x3f]
      %v660 = vld [vmem:[%s482 + $0x48] sm:$0x3f]
      %v661 = vld [vmem:[%s482 + $0x50] sm:$0x3f]
      %v662 = vld [vmem:[%s482 + $0x58] sm:$0x3f]
      %675 = vrot.lane.b32.xlu0 %v651, 125
      %v676 = vpop.permute.xlu0 %675
      %677 = vrot.lane.b32.xlu0 %v652, 125
      %v678 = vpop.permute.xlu0 %677
      %679 = vrot.lane.b32.xlu0 %v653, 125
      %v680 = vpop.permute.xlu0 %679
      %681 = vrot.lane.b32.xlu0 %v654, 125
      %v682 = vpop.permute.xlu0 %681
      %683 = vrot.lane.b32.xlu0 %v655, 125
      %v684 = vpop.permute.xlu0 %683
      %685 = vrot.lane.b32.xlu0 %v656, 125
      %v686 = vpop.permute.xlu0 %685
      %687 = vrot.lane.b32.xlu0 %v657, 125
      %v688 = vpop.permute.xlu0 %687
      %689 = vrot.lane.b32.xlu0 %v658, 125
      %v690 = vpop.permute.xlu0 %689
      %691 = vrot.lane.b32.xlu0 %v659, 125
      %v692 = vpop.permute.xlu0 %691
      %693 = vrot.lane.b32.xlu0 %v660, 125
      %v694 = vpop.permute.xlu0 %693
      %695 = vrot.lane.b32.xlu0 %v661, 125
      %v696 = vpop.permute.xlu0 %695
      %697 = vrot.lane.b32.xlu0 %v662, 125
      %v698 = vpop.permute.xlu0 %697
      %711 = vst.msk [vmem:[#allocation2 + $0x30] sm:$0x3f] %vm181, %v676
      %712 = vst.msk [vmem:[#allocation2 + $0xc8] sm:$0x3f] %vm181, %v678
      %713 = vst.msk [vmem:[#allocation2 + $0x160] sm:$0x3f] %vm181, %v680
      %714 = vst.msk [vmem:[#allocation2 + $0x1f8] sm:$0x3f] %vm181, %v682
      %715 = vst.msk [vmem:[#allocation2 + $0x290] sm:$0x3f] %vm181, %v684
      %716 = vst.msk [vmem:[#allocation2 + $0x328] sm:$0x3f] %vm181, %v686
      %717 = vst.msk [vmem:[#allocation2 + $0x3c0] sm:$0x3f] %vm181, %v688
      %718 = vst.msk [vmem:[#allocation2 + $0x458] sm:$0x3f] %vm181, %v690
      %719 = vst.msk [vmem:[#allocation2 + $0x4f0] sm:$0x3f] %vm181, %v692
      %720 = vst.msk [vmem:[#allocation2 + $0x588] sm:$0x3f] %vm181, %v694
      %721 = vst.msk [vmem:[#allocation2 + $0x620] sm:$0x3f] %vm181, %v696
      %722 = vst.msk [vmem:[#allocation2 + $0x6b8] sm:$0x3f] %vm181, %v698
      %v723 = vld [vmem:[%s482] sm:$0x3f]
      %v724 = vld [vmem:[%s482 + $0x8] sm:$0x3f]
      %v725 = vld [vmem:[%s482 + $0x10] sm:$0x3f]
      %v726 = vld [vmem:[%s482 + $0x18] sm:$0x3f]
      %v727 = vld [vmem:[%s482 + $0x20] sm:$0x3f]
      %v728 = vld [vmem:[%s482 + $0x28] sm:$0x3f]
      %v729 = vld [vmem:[%s482 + $0x30] sm:$0x3f]
      %v730 = vld [vmem:[%s482 + $0x38] sm:$0x3f]
      %v731 = vld [vmem:[%s482 + $0x40] sm:$0x3f]
      %v732 = vld [vmem:[%s482 + $0x48] sm:$0x3f]
      %v733 = vld [vmem:[%s482 + $0x50] sm:$0x3f]
      %v734 = vld [vmem:[%s482 + $0x58] sm:$0x3f]
      %747 = vrot.lane.b32.xlu0 %v723, 124
      %v748 = vpop.permute.xlu0 %747
      %749 = vrot.lane.b32.xlu0 %v724, 124
      %v750 = vpop.permute.xlu0 %749
      %751 = vrot.lane.b32.xlu0 %v725, 124
      %v752 = vpop.permute.xlu0 %751
      %753 = vrot.lane.b32.xlu0 %v726, 124
      %v754 = vpop.permute.xlu0 %753
      %755 = vrot.lane.b32.xlu0 %v727, 124
      %v756 = vpop.permute.xlu0 %755
      %757 = vrot.lane.b32.xlu0 %v728, 124
      %v758 = vpop.permute.xlu0 %757
      %759 = vrot.lane.b32.xlu0 %v729, 124
      %v760 = vpop.permute.xlu0 %759
      %761 = vrot.lane.b32.xlu0 %v730, 124
      %v762 = vpop.permute.xlu0 %761
      %763 = vrot.lane.b32.xlu0 %v731, 124
      %v764 = vpop.permute.xlu0 %763
      %765 = vrot.lane.b32.xlu0 %v732, 124
      %v766 = vpop.permute.xlu0 %765
      %767 = vrot.lane.b32.xlu0 %v733, 124
      %v768 = vpop.permute.xlu0 %767
      %769 = vrot.lane.b32.xlu0 %v734, 124
      %v770 = vpop.permute.xlu0 %769
      %783 = vst.msk [vmem:[#allocation2 + $0x36] sm:$0x3f] %vm181, %v748
      %784 = vst.msk [vmem:[#allocation2 + $0xce] sm:$0x3f] %vm181, %v750
      %785 = vst.msk [vmem:[#allocation2 + $0x166] sm:$0x3f] %vm181, %v752
      %786 = vst.msk [vmem:[#allocation2 + $0x1fe] sm:$0x3f] %vm181, %v754
      %787 = vst.msk [vmem:[#allocation2 + $0x296] sm:$0x3f] %vm181, %v756
      %788 = vst.msk [vmem:[#allocation2 + $0x32e] sm:$0x3f] %vm181, %v758
      %789 = vst.msk [vmem:[#allocation2 + $0x3c6] sm:$0x3f] %vm181, %v760
      %790 = vst.msk [vmem:[#allocation2 + $0x45e] sm:$0x3f] %vm181, %v762
      %791 = vst.msk [vmem:[#allocation2 + $0x4f6] sm:$0x3f] %vm181, %v764
      %792 = vst.msk [vmem:[#allocation2 + $0x58e] sm:$0x3f] %vm181, %v766
      %793 = vst.msk [vmem:[#allocation2 + $0x626] sm:$0x3f] %vm181, %v768
      %794 = vst.msk [vmem:[#allocation2 + $0x6be] sm:$0x3f] %vm181, %v770
      %s795 = scalar_lea.vmem %s138, 16
      %v796 = vld [vmem:[%s795] sm:$0x3f]
      %v797 = vld [vmem:[%s795 + $0x8] sm:$0x3f]
      %v798 = vld [vmem:[%s795 + $0x10] sm:$0x3f]
      %v799 = vld [vmem:[%s795 + $0x18] sm:$0x3f]
      %v800 = vld [vmem:[%s795 + $0x20] sm:$0x3f]
      %v801 = vld [vmem:[%s795 + $0x28] sm:$0x3f]
      %v802 = vld [vmem:[%s795 + $0x30] sm:$0x3f]
      %v803 = vld [vmem:[%s795 + $0x38] sm:$0x3f]
      %v804 = vld [vmem:[%s795 + $0x40] sm:$0x3f]
      %v805 = vld [vmem:[%s795 + $0x48] sm:$0x3f]
      %v806 = vld [vmem:[%s795 + $0x50] sm:$0x3f]
      %v807 = vld [vmem:[%s795 + $0x58] sm:$0x3f]
      %808 = vst.msk [vmem:[#allocation2 + $0x3c] sm:$0x3f] %vm181, %v796
      %809 = vst.msk [vmem:[#allocation2 + $0xd4] sm:$0x3f] %vm181, %v797
      %810 = vst.msk [vmem:[#allocation2 + $0x16c] sm:$0x3f] %vm181, %v798
      %811 = vst.msk [vmem:[#allocation2 + $0x204] sm:$0x3f] %vm181, %v799
      %812 = vst.msk [vmem:[#allocation2 + $0x29c] sm:$0x3f] %vm181, %v800
      %813 = vst.msk [vmem:[#allocation2 + $0x334] sm:$0x3f] %vm181, %v801
      %814 = vst.msk [vmem:[#allocation2 + $0x3cc] sm:$0x3f] %vm181, %v802
      %815 = vst.msk [vmem:[#allocation2 + $0x464] sm:$0x3f] %vm181, %v803
      %816 = vst.msk [vmem:[#allocation2 + $0x4fc] sm:$0x3f] %vm181, %v804
      %817 = vst.msk [vmem:[#allocation2 + $0x594] sm:$0x3f] %vm181, %v805
      %818 = vst.msk [vmem:[#allocation2 + $0x62c] sm:$0x3f] %vm181, %v806
      %819 = vst.msk [vmem:[#allocation2 + $0x6c4] sm:$0x3f] %vm181, %v807
      %v820 = vld [vmem:[%s795] sm:$0x3f]
      %v821 = vld [vmem:[%s795 + $0x8] sm:$0x3f]
      %v822 = vld [vmem:[%s795 + $0x10] sm:$0x3f]
      %v823 = vld [vmem:[%s795 + $0x18] sm:$0x3f]
      %v824 = vld [vmem:[%s795 + $0x20] sm:$0x3f]
      %v825 = vld [vmem:[%s795 + $0x28] sm:$0x3f]
      %v826 = vld [vmem:[%s795 + $0x30] sm:$0x3f]
      %v827 = vld [vmem:[%s795 + $0x38] sm:$0x3f]
      %v828 = vld [vmem:[%s795 + $0x40] sm:$0x3f]
      %v829 = vld [vmem:[%s795 + $0x48] sm:$0x3f]
      %v830 = vld [vmem:[%s795 + $0x50] sm:$0x3f]
      %v831 = vld [vmem:[%s795 + $0x58] sm:$0x3f]
      %844 = vrot.lane.b32.xlu0 %v820, 127
      %v845 = vpop.permute.xlu0 %844
      %846 = vrot.lane.b32.xlu0 %v821, 127
      %v847 = vpop.permute.xlu0 %846
      %848 = vrot.lane.b32.xlu0 %v822, 127
      %v849 = vpop.permute.xlu0 %848
      %850 = vrot.lane.b32.xlu0 %v823, 127
      %v851 = vpop.permute.xlu0 %850
      %852 = vrot.lane.b32.xlu0 %v824, 127
      %v853 = vpop.permute.xlu0 %852
      %854 = vrot.lane.b32.xlu0 %v825, 127
      %v855 = vpop.permute.xlu0 %854
      %856 = vrot.lane.b32.xlu0 %v826, 127
      %v857 = vpop.permute.xlu0 %856
      %858 = vrot.lane.b32.xlu0 %v827, 127
      %v859 = vpop.permute.xlu0 %858
      %860 = vrot.lane.b32.xlu0 %v828, 127
      %v861 = vpop.permute.xlu0 %860
      %862 = vrot.lane.b32.xlu0 %v829, 127
      %v863 = vpop.permute.xlu0 %862
      %864 = vrot.lane.b32.xlu0 %v830, 127
      %v865 = vpop.permute.xlu0 %864
      %866 = vrot.lane.b32.xlu0 %v831, 127
      %v867 = vpop.permute.xlu0 %866
      %880 = vst.msk [vmem:[#allocation2 + $0x42] sm:$0x3f] %vm181, %v845
      %881 = vst.msk [vmem:[#allocation2 + $0xda] sm:$0x3f] %vm181, %v847
      %882 = vst.msk [vmem:[#allocation2 + $0x172] sm:$0x3f] %vm181, %v849
      %883 = vst.msk [vmem:[#allocation2 + $0x20a] sm:$0x3f] %vm181, %v851
      %884 = vst.msk [vmem:[#allocation2 + $0x2a2] sm:$0x3f] %vm181, %v853
      %885 = vst.msk [vmem:[#allocation2 + $0x33a] sm:$0x3f] %vm181, %v855
      %886 = vst.msk [vmem:[#allocation2 + $0x3d2] sm:$0x3f] %vm181, %v857
      %887 = vst.msk [vmem:[#allocation2 + $0x46a] sm:$0x3f] %vm181, %v859
      %888 = vst.msk [vmem:[#allocation2 + $0x502] sm:$0x3f] %vm181, %v861
      %889 = vst.msk [vmem:[#allocation2 + $0x59a] sm:$0x3f] %vm181, %v863
      %890 = vst.msk [vmem:[#allocation2 + $0x632] sm:$0x3f] %vm181, %v865
      %891 = vst.msk [vmem:[#allocation2 + $0x6ca] sm:$0x3f] %vm181, %v867
      %v892 = vld [vmem:[%s795] sm:$0x3f]
      %v893 = vld [vmem:[%s795 + $0x8] sm:$0x3f]
      %v894 = vld [vmem:[%s795 + $0x10] sm:$0x3f]
      %v895 = vld [vmem:[%s795 + $0x18] sm:$0x3f]
      %v896 = vld [vmem:[%s795 + $0x20] sm:$0x3f]
      %v897 = vld [vmem:[%s795 + $0x28] sm:$0x3f]
      %v898 = vld [vmem:[%s795 + $0x30] sm:$0x3f]
      %v899 = vld [vmem:[%s795 + $0x38] sm:$0x3f]
      %v900 = vld [vmem:[%s795 + $0x40] sm:$0x3f]
      %v901 = vld [vmem:[%s795 + $0x48] sm:$0x3f]
      %v902 = vld [vmem:[%s795 + $0x50] sm:$0x3f]
      %v903 = vld [vmem:[%s795 + $0x58] sm:$0x3f]
      %916 = vrot.lane.b32.xlu0 %v892, 126
      %v917 = vpop.permute.xlu0 %916
      %918 = vrot.lane.b32.xlu0 %v893, 126
      %v919 = vpop.permute.xlu0 %918
      %920 = vrot.lane.b32.xlu0 %v894, 126
      %v921 = vpop.permute.xlu0 %920
      %922 = vrot.lane.b32.xlu0 %v895, 126
      %v923 = vpop.permute.xlu0 %922
      %924 = vrot.lane.b32.xlu0 %v896, 126
      %v925 = vpop.permute.xlu0 %924
      %926 = vrot.lane.b32.xlu0 %v897, 126
      %v927 = vpop.permute.xlu0 %926
      %928 = vrot.lane.b32.xlu0 %v898, 126
      %v929 = vpop.permute.xlu0 %928
      %930 = vrot.lane.b32.xlu0 %v899, 126
      %v931 = vpop.permute.xlu0 %930
      %932 = vrot.lane.b32.xlu0 %v900, 126
      %v933 = vpop.permute.xlu0 %932
      %934 = vrot.lane.b32.xlu0 %v901, 126
      %v935 = vpop.permute.xlu0 %934
      %936 = vrot.lane.b32.xlu0 %v902, 126
      %v937 = vpop.permute.xlu0 %936
      %938 = vrot.lane.b32.xlu0 %v903, 126
      %v939 = vpop.permute.xlu0 %938
      %952 = vst.msk [vmem:[#allocation2 + $0x48] sm:$0x3f] %vm181, %v917
      %953 = vst.msk [vmem:[#allocation2 + $0xe0] sm:$0x3f] %vm181, %v919
      %954 = vst.msk [vmem:[#allocation2 + $0x178] sm:$0x3f] %vm181, %v921
      %955 = vst.msk [vmem:[#allocation2 + $0x210] sm:$0x3f] %vm181, %v923
      %956 = vst.msk [vmem:[#allocation2 + $0x2a8] sm:$0x3f] %vm181, %v925
      %957 = vst.msk [vmem:[#allocation2 + $0x340] sm:$0x3f] %vm181, %v927
      %958 = vst.msk [vmem:[#allocation2 + $0x3d8] sm:$0x3f] %vm181, %v929
      %959 = vst.msk [vmem:[#allocation2 + $0x470] sm:$0x3f] %vm181, %v931
      %960 = vst.msk [vmem:[#allocation2 + $0x508] sm:$0x3f] %vm181, %v933
      %961 = vst.msk [vmem:[#allocation2 + $0x5a0] sm:$0x3f] %vm181, %v935
      %962 = vst.msk [vmem:[#allocation2 + $0x638] sm:$0x3f] %vm181, %v937
      %963 = vst.msk [vmem:[#allocation2 + $0x6d0] sm:$0x3f] %vm181, %v939
      %v964 = vld [vmem:[%s795] sm:$0x3f]
      %v965 = vld [vmem:[%s795 + $0x8] sm:$0x3f]
      %v966 = vld [vmem:[%s795 + $0x10] sm:$0x3f]
      %v967 = vld [vmem:[%s795 + $0x18] sm:$0x3f]
      %v968 = vld [vmem:[%s795 + $0x20] sm:$0x3f]
      %v969 = vld [vmem:[%s795 + $0x28] sm:$0x3f]
      %v970 = vld [vmem:[%s795 + $0x30] sm:$0x3f]
      %v971 = vld [vmem:[%s795 + $0x38] sm:$0x3f]
      %v972 = vld [vmem:[%s795 + $0x40] sm:$0x3f]
      %v973 = vld [vmem:[%s795 + $0x48] sm:$0x3f]
      %v974 = vld [vmem:[%s795 + $0x50] sm:$0x3f]
      %v975 = vld [vmem:[%s795 + $0x58] sm:$0x3f]
      %988 = vrot.lane.b32.xlu0 %v964, 125
      %v989 = vpop.permute.xlu0 %988
      %990 = vrot.lane.b32.xlu0 %v965, 125
      %v991 = vpop.permute.xlu0 %990
      %992 = vrot.lane.b32.xlu0 %v966, 125
      %v993 = vpop.permute.xlu0 %992
      %994 = vrot.lane.b32.xlu0 %v967, 125
      %v995 = vpop.permute.xlu0 %994
      %996 = vrot.lane.b32.xlu0 %v968, 125
      %v997 = vpop.permute.xlu0 %996
      %998 = vrot.lane.b32.xlu0 %v969, 125
      %v999 = vpop.permute.xlu0 %998
      %1000 = vrot.lane.b32.xlu0 %v970, 125
      %v1001 = vpop.permute.xlu0 %1000
      %1002 = vrot.lane.b32.xlu0 %v971, 125
      %v1003 = vpop.permute.xlu0 %1002
      %1004 = vrot.lane.b32.xlu0 %v972, 125
      %v1005 = vpop.permute.xlu0 %1004
      %1006 = vrot.lane.b32.xlu0 %v973, 125
      %v1007 = vpop.permute.xlu0 %1006
      %1008 = vrot.lane.b32.xlu0 %v974, 125
      %v1009 = vpop.permute.xlu0 %1008
      %1010 = vrot.lane.b32.xlu0 %v975, 125
      %v1011 = vpop.permute.xlu0 %1010
      %1024 = vst.msk [vmem:[#allocation2 + $0x4e] sm:$0x3f] %vm181, %v989
      %1025 = vst.msk [vmem:[#allocation2 + $0xe6] sm:$0x3f] %vm181, %v991
      %1026 = vst.msk [vmem:[#allocation2 + $0x17e] sm:$0x3f] %vm181, %v993
      %1027 = vst.msk [vmem:[#allocation2 + $0x216] sm:$0x3f] %vm181, %v995
      %1028 = vst.msk [vmem:[#allocation2 + $0x2ae] sm:$0x3f] %vm181, %v997
      %1029 = vst.msk [vmem:[#allocation2 + $0x346] sm:$0x3f] %vm181, %v999
      %1030 = vst.msk [vmem:[#allocation2 + $0x3de] sm:$0x3f] %vm181, %v1001
      %1031 = vst.msk [vmem:[#allocation2 + $0x476] sm:$0x3f] %vm181, %v1003
      %1032 = vst.msk [vmem:[#allocation2 + $0x50e] sm:$0x3f] %vm181, %v1005
      %1033 = vst.msk [vmem:[#allocation2 + $0x5a6] sm:$0x3f] %vm181, %v1007
      %1034 = vst.msk [vmem:[#allocation2 + $0x63e] sm:$0x3f] %vm181, %v1009
      %1035 = vst.msk [vmem:[#allocation2 + $0x6d6] sm:$0x3f] %vm181, %v1011
      %v1036 = vld [vmem:[%s795] sm:$0x3f]
      %v1037 = vld [vmem:[%s795 + $0x8] sm:$0x3f]
      %v1038 = vld [vmem:[%s795 + $0x10] sm:$0x3f]
      %v1039 = vld [vmem:[%s795 + $0x18] sm:$0x3f]
      %v1040 = vld [vmem:[%s795 + $0x20] sm:$0x3f]
      %v1041 = vld [vmem:[%s795 + $0x28] sm:$0x3f]
      %v1042 = vld [vmem:[%s795 + $0x30] sm:$0x3f]
      %v1043 = vld [vmem:[%s795 + $0x38] sm:$0x3f]
      %v1044 = vld [vmem:[%s795 + $0x40] sm:$0x3f]
      %v1045 = vld [vmem:[%s795 + $0x48] sm:$0x3f]
      %v1046 = vld [vmem:[%s795 + $0x50] sm:$0x3f]
      %v1047 = vld [vmem:[%s795 + $0x58] sm:$0x3f]
      %1060 = vrot.lane.b32.xlu0 %v1036, 124
      %v1061 = vpop.permute.xlu0 %1060
      %1062 = vrot.lane.b32.xlu0 %v1037, 124
      %v1063 = vpop.permute.xlu0 %1062
      %1064 = vrot.lane.b32.xlu0 %v1038, 124
      %v1065 = vpop.permute.xlu0 %1064
      %1066 = vrot.lane.b32.xlu0 %v1039, 124
      %v1067 = vpop.permute.xlu0 %1066
      %1068 = vrot.lane.b32.xlu0 %v1040, 124
      %v1069 = vpop.permute.xlu0 %1068
      %1070 = vrot.lane.b32.xlu0 %v1041, 124
      %v1071 = vpop.permute.xlu0 %1070
      %1072 = vrot.lane.b32.xlu0 %v1042, 124
      %v1073 = vpop.permute.xlu0 %1072
      %1074 = vrot.lane.b32.xlu0 %v1043, 124
      %v1075 = vpop.permute.xlu0 %1074
      %1076 = vrot.lane.b32.xlu0 %v1044, 124
      %v1077 = vpop.permute.xlu0 %1076
      %1078 = vrot.lane.b32.xlu0 %v1045, 124
      %v1079 = vpop.permute.xlu0 %1078
      %1080 = vrot.lane.b32.xlu0 %v1046, 124
      %v1081 = vpop.permute.xlu0 %1080
      %1082 = vrot.lane.b32.xlu0 %v1047, 124
      %v1083 = vpop.permute.xlu0 %1082
      %1096 = vst.msk [vmem:[#allocation2 + $0x54] sm:$0x3f] %vm181, %v1061
      %1097 = vst.msk [vmem:[#allocation2 + $0xec] sm:$0x3f] %vm181, %v1063
      %1098 = vst.msk [vmem:[#allocation2 + $0x184] sm:$0x3f] %vm181, %v1065
      %1099 = vst.msk [vmem:[#allocation2 + $0x21c] sm:$0x3f] %vm181, %v1067
      %1100 = vst.msk [vmem:[#allocation2 + $0x2b4] sm:$0x3f] %vm181, %v1069
      %1101 = vst.msk [vmem:[#allocation2 + $0x34c] sm:$0x3f] %vm181, %v1071
      %1102 = vst.msk [vmem:[#allocation2 + $0x3e4] sm:$0x3f] %vm181, %v1073
      %1103 = vst.msk [vmem:[#allocation2 + $0x47c] sm:$0x3f] %vm181, %v1075
      %1104 = vst.msk [vmem:[#allocation2 + $0x514] sm:$0x3f] %vm181, %v1077
      %1105 = vst.msk [vmem:[#allocation2 + $0x5ac] sm:$0x3f] %vm181, %v1079
      %1106 = vst.msk [vmem:[#allocation2 + $0x644] sm:$0x3f] %vm181, %v1081
      %1107 = vst.msk [vmem:[#allocation2 + $0x6dc] sm:$0x3f] %vm181, %v1083
      %s1108 = scalar_lea.vmem %s138, 24
      %v1109 = vld [vmem:[%s1108] sm:$0x3f]
      %v1110 = vld [vmem:[%s1108 + $0x8] sm:$0x3f]
      %v1111 = vld [vmem:[%s1108 + $0x10] sm:$0x3f]
      %v1112 = vld [vmem:[%s1108 + $0x18] sm:$0x3f]
      %v1113 = vld [vmem:[%s1108 + $0x20] sm:$0x3f]
      %v1114 = vld [vmem:[%s1108 + $0x28] sm:$0x3f]
      %v1115 = vld [vmem:[%s1108 + $0x30] sm:$0x3f]
      %v1116 = vld [vmem:[%s1108 + $0x38] sm:$0x3f]
      %v1117 = vld [vmem:[%s1108 + $0x40] sm:$0x3f]
      %v1118 = vld [vmem:[%s1108 + $0x48] sm:$0x3f]
      %v1119 = vld [vmem:[%s1108 + $0x50] sm:$0x3f]
      %v1120 = vld [vmem:[%s1108 + $0x58] sm:$0x3f]
      %1121 = vst.msk [vmem:[#allocation2 + $0x5a] sm:$0x3f] %vm181, %v1109
      %1122 = vst.msk [vmem:[#allocation2 + $0xf2] sm:$0x3f] %vm181, %v1110
      %1123 = vst.msk [vmem:[#allocation2 + $0x18a] sm:$0x3f] %vm181, %v1111
      %1124 = vst.msk [vmem:[#allocation2 + $0x222] sm:$0x3f] %vm181, %v1112
      %1125 = vst.msk [vmem:[#allocation2 + $0x2ba] sm:$0x3f] %vm181, %v1113
      %1126 = vst.msk [vmem:[#allocation2 + $0x352] sm:$0x3f] %vm181, %v1114
      %1127 = vst.msk [vmem:[#allocation2 + $0x3ea] sm:$0x3f] %vm181, %v1115
      %1128 = vst.msk [vmem:[#allocation2 + $0x482] sm:$0x3f] %vm181, %v1116
      %1129 = vst.msk [vmem:[#allocation2 + $0x51a] sm:$0x3f] %vm181, %v1117
      %1130 = vst.msk [vmem:[#allocation2 + $0x5b2] sm:$0x3f] %vm181, %v1118
      %1131 = vst.msk [vmem:[#allocation2 + $0x64a] sm:$0x3f] %vm181, %v1119
      %1132 = vst.msk [vmem:[#allocation2 + $0x6e2] sm:$0x3f] %vm181, %v1120
      %v1133 = vld [vmem:[%s1108] sm:$0x3f]
      %v1134 = vld [vmem:[%s1108 + $0x8] sm:$0x3f]
      %v1135 = vld [vmem:[%s1108 + $0x10] sm:$0x3f]
      %v1136 = vld [vmem:[%s1108 + $0x18] sm:$0x3f]
      %v1137 = vld [vmem:[%s1108 + $0x20] sm:$0x3f]
      %v1138 = vld [vmem:[%s1108 + $0x28] sm:$0x3f]
      %v1139 = vld [vmem:[%s1108 + $0x30] sm:$0x3f]
      %v1140 = vld [vmem:[%s1108 + $0x38] sm:$0x3f]
      %v1141 = vld [vmem:[%s1108 + $0x40] sm:$0x3f]
      %v1142 = vld [vmem:[%s1108 + $0x48] sm:$0x3f]
      %v1143 = vld [vmem:[%s1108 + $0x50] sm:$0x3f]
      %v1144 = vld [vmem:[%s1108 + $0x58] sm:$0x3f]
      %1157 = vrot.lane.b32.xlu0 %v1133, 127
      %v1158 = vpop.permute.xlu0 %1157
      %1159 = vrot.lane.b32.xlu0 %v1134, 127
      %v1160 = vpop.permute.xlu0 %1159
      %1161 = vrot.lane.b32.xlu0 %v1135, 127
      %v1162 = vpop.permute.xlu0 %1161
      %1163 = vrot.lane.b32.xlu0 %v1136, 127
      %v1164 = vpop.permute.xlu0 %1163
      %1165 = vrot.lane.b32.xlu0 %v1137, 127
      %v1166 = vpop.permute.xlu0 %1165
      %1167 = vrot.lane.b32.xlu0 %v1138, 127
      %v1168 = vpop.permute.xlu0 %1167
      %1169 = vrot.lane.b32.xlu0 %v1139, 127
      %v1170 = vpop.permute.xlu0 %1169
      %1171 = vrot.lane.b32.xlu0 %v1140, 127
      %v1172 = vpop.permute.xlu0 %1171
      %1173 = vrot.lane.b32.xlu0 %v1141, 127
      %v1174 = vpop.permute.xlu0 %1173
      %1175 = vrot.lane.b32.xlu0 %v1142, 127
      %v1176 = vpop.permute.xlu0 %1175
      %1177 = vrot.lane.b32.xlu0 %v1143, 127
      %v1178 = vpop.permute.xlu0 %1177
      %1179 = vrot.lane.b32.xlu0 %v1144, 127
      %v1180 = vpop.permute.xlu0 %1179
      %1193 = vst.msk [vmem:[#allocation2 + $0x60] sm:$0x3f] %vm181, %v1158
      %1194 = vst.msk [vmem:[#allocation2 + $0xf8] sm:$0x3f] %vm181, %v1160
      %1195 = vst.msk [vmem:[#allocation2 + $0x190] sm:$0x3f] %vm181, %v1162
      %1196 = vst.msk [vmem:[#allocation2 + $0x228] sm:$0x3f] %vm181, %v1164
      %1197 = vst.msk [vmem:[#allocation2 + $0x2c0] sm:$0x3f] %vm181, %v1166
      %1198 = vst.msk [vmem:[#allocation2 + $0x358] sm:$0x3f] %vm181, %v1168
      %1199 = vst.msk [vmem:[#allocation2 + $0x3f0] sm:$0x3f] %vm181, %v1170
      %1200 = vst.msk [vmem:[#allocation2 + $0x488] sm:$0x3f] %vm181, %v1172
      %1201 = vst.msk [vmem:[#allocation2 + $0x520] sm:$0x3f] %vm181, %v1174
      %1202 = vst.msk [vmem:[#allocation2 + $0x5b8] sm:$0x3f] %vm181, %v1176
      %1203 = vst.msk [vmem:[#allocation2 + $0x650] sm:$0x3f] %vm181, %v1178
      %1204 = vst.msk [vmem:[#allocation2 + $0x6e8] sm:$0x3f] %vm181, %v1180
      %v1205 = vld [vmem:[%s1108] sm:$0x3f]
      %v1206 = vld [vmem:[%s1108 + $0x8] sm:$0x3f]
      %v1207 = vld [vmem:[%s1108 + $0x10] sm:$0x3f]
      %v1208 = vld [vmem:[%s1108 + $0x18] sm:$0x3f]
      %v1209 = vld [vmem:[%s1108 + $0x20] sm:$0x3f]
      %v1210 = vld [vmem:[%s1108 + $0x28] sm:$0x3f]
      %v1211 = vld [vmem:[%s1108 + $0x30] sm:$0x3f]
      %v1212 = vld [vmem:[%s1108 + $0x38] sm:$0x3f]
      %v1213 = vld [vmem:[%s1108 + $0x40] sm:$0x3f]
      %v1214 = vld [vmem:[%s1108 + $0x48] sm:$0x3f]
      %v1215 = vld [vmem:[%s1108 + $0x50] sm:$0x3f]
      %v1216 = vld [vmem:[%s1108 + $0x58] sm:$0x3f]
      %1229 = vrot.lane.b32.xlu0 %v1205, 126
      %v1230 = vpop.permute.xlu0 %1229
      %1231 = vrot.lane.b32.xlu0 %v1206, 126
      %v1232 = vpop.permute.xlu0 %1231
      %1233 = vrot.lane.b32.xlu0 %v1207, 126
      %v1234 = vpop.permute.xlu0 %1233
      %1235 = vrot.lane.b32.xlu0 %v1208, 126
      %v1236 = vpop.permute.xlu0 %1235
      %1237 = vrot.lane.b32.xlu0 %v1209, 126
      %v1238 = vpop.permute.xlu0 %1237
      %1239 = vrot.lane.b32.xlu0 %v1210, 126
      %v1240 = vpop.permute.xlu0 %1239
      %1241 = vrot.lane.b32.xlu0 %v1211, 126
      %v1242 = vpop.permute.xlu0 %1241
      %1243 = vrot.lane.b32.xlu0 %v1212, 126
      %v1244 = vpop.permute.xlu0 %1243
      %1245 = vrot.lane.b32.xlu0 %v1213, 126
      %v1246 = vpop.permute.xlu0 %1245
      %1247 = vrot.lane.b32.xlu0 %v1214, 126
      %v1248 = vpop.permute.xlu0 %1247
      %1249 = vrot.lane.b32.xlu0 %v1215, 126
      %v1250 = vpop.permute.xlu0 %1249
      %1251 = vrot.lane.b32.xlu0 %v1216, 126
      %v1252 = vpop.permute.xlu0 %1251
      %1265 = vst.msk [vmem:[#allocation2 + $0x66] sm:$0x3f] %vm181, %v1230
      %1266 = vst.msk [vmem:[#allocation2 + $0xfe] sm:$0x3f] %vm181, %v1232
      %1267 = vst.msk [vmem:[#allocation2 + $0x196] sm:$0x3f] %vm181, %v1234
      %1268 = vst.msk [vmem:[#allocation2 + $0x22e] sm:$0x3f] %vm181, %v1236
      %1269 = vst.msk [vmem:[#allocation2 + $0x2c6] sm:$0x3f] %vm181, %v1238
      %1270 = vst.msk [vmem:[#allocation2 + $0x35e] sm:$0x3f] %vm181, %v1240
      %1271 = vst.msk [vmem:[#allocation2 + $0x3f6] sm:$0x3f] %vm181, %v1242
      %1272 = vst.msk [vmem:[#allocation2 + $0x48e] sm:$0x3f] %vm181, %v1244
      %1273 = vst.msk [vmem:[#allocation2 + $0x526] sm:$0x3f] %vm181, %v1246
      %1274 = vst.msk [vmem:[#allocation2 + $0x5be] sm:$0x3f] %vm181, %v1248
      %1275 = vst.msk [vmem:[#allocation2 + $0x656] sm:$0x3f] %vm181, %v1250
      %1276 = vst.msk [vmem:[#allocation2 + $0x6ee] sm:$0x3f] %vm181, %v1252
      %v1277 = vld [vmem:[%s1108] sm:$0x3f]
      %v1278 = vld [vmem:[%s1108 + $0x8] sm:$0x3f]
      %v1279 = vld [vmem:[%s1108 + $0x10] sm:$0x3f]
      %v1280 = vld [vmem:[%s1108 + $0x18] sm:$0x3f]
      %v1281 = vld [vmem:[%s1108 + $0x20] sm:$0x3f]
      %v1282 = vld [vmem:[%s1108 + $0x28] sm:$0x3f]
      %v1283 = vld [vmem:[%s1108 + $0x30] sm:$0x3f]
      %v1284 = vld [vmem:[%s1108 + $0x38] sm:$0x3f]
      %v1285 = vld [vmem:[%s1108 + $0x40] sm:$0x3f]
      %v1286 = vld [vmem:[%s1108 + $0x48] sm:$0x3f]
      %v1287 = vld [vmem:[%s1108 + $0x50] sm:$0x3f]
      %v1288 = vld [vmem:[%s1108 + $0x58] sm:$0x3f]
      %1301 = vrot.lane.b32.xlu0 %v1277, 125
      %v1302 = vpop.permute.xlu0 %1301
      %1303 = vrot.lane.b32.xlu0 %v1278, 125
      %v1304 = vpop.permute.xlu0 %1303
      %1305 = vrot.lane.b32.xlu0 %v1279, 125
      %v1306 = vpop.permute.xlu0 %1305
      %1307 = vrot.lane.b32.xlu0 %v1280, 125
      %v1308 = vpop.permute.xlu0 %1307
      %1309 = vrot.lane.b32.xlu0 %v1281, 125
      %v1310 = vpop.permute.xlu0 %1309
      %1311 = vrot.lane.b32.xlu0 %v1282, 125
      %v1312 = vpop.permute.xlu0 %1311
      %1313 = vrot.lane.b32.xlu0 %v1283, 125
      %v1314 = vpop.permute.xlu0 %1313
      %1315 = vrot.lane.b32.xlu0 %v1284, 125
      %v1316 = vpop.permute.xlu0 %1315
      %1317 = vrot.lane.b32.xlu0 %v1285, 125
      %v1318 = vpop.permute.xlu0 %1317
      %1319 = vrot.lane.b32.xlu0 %v1286, 125
      %v1320 = vpop.permute.xlu0 %1319
      %1321 = vrot.lane.b32.xlu0 %v1287, 125
      %v1322 = vpop.permute.xlu0 %1321
      %1323 = vrot.lane.b32.xlu0 %v1288, 125
      %v1324 = vpop.permute.xlu0 %1323
      %1337 = vst.msk [vmem:[#allocation2 + $0x6c] sm:$0x3f] %vm181, %v1302
      %1338 = vst.msk [vmem:[#allocation2 + $0x104] sm:$0x3f] %vm181, %v1304
      %1339 = vst.msk [vmem:[#allocation2 + $0x19c] sm:$0x3f] %vm181, %v1306
      %1340 = vst.msk [vmem:[#allocation2 + $0x234] sm:$0x3f] %vm181, %v1308
      %1341 = vst.msk [vmem:[#allocation2 + $0x2cc] sm:$0x3f] %vm181, %v1310
      %1342 = vst.msk [vmem:[#allocation2 + $0x364] sm:$0x3f] %vm181, %v1312
      %1343 = vst.msk [vmem:[#allocation2 + $0x3fc] sm:$0x3f] %vm181, %v1314
      %1344 = vst.msk [vmem:[#allocation2 + $0x494] sm:$0x3f] %vm181, %v1316
      %1345 = vst.msk [vmem:[#allocation2 + $0x52c] sm:$0x3f] %vm181, %v1318
      %1346 = vst.msk [vmem:[#allocation2 + $0x5c4] sm:$0x3f] %vm181, %v1320
      %1347 = vst.msk [vmem:[#allocation2 + $0x65c] sm:$0x3f] %vm181, %v1322
      %1348 = vst.msk [vmem:[#allocation2 + $0x6f4] sm:$0x3f] %vm181, %v1324
      %v1349 = vld [vmem:[%s1108] sm:$0x3f]
      %v1350 = vld [vmem:[%s1108 + $0x8] sm:$0x3f]
      %v1351 = vld [vmem:[%s1108 + $0x10] sm:$0x3f]
      %v1352 = vld [vmem:[%s1108 + $0x18] sm:$0x3f]
      %v1353 = vld [vmem:[%s1108 + $0x20] sm:$0x3f]
      %v1354 = vld [vmem:[%s1108 + $0x28] sm:$0x3f]
      %v1355 = vld [vmem:[%s1108 + $0x30] sm:$0x3f]
      %v1356 = vld [vmem:[%s1108 + $0x38] sm:$0x3f]
      %v1357 = vld [vmem:[%s1108 + $0x40] sm:$0x3f]
      %v1358 = vld [vmem:[%s1108 + $0x48] sm:$0x3f]
      %v1359 = vld [vmem:[%s1108 + $0x50] sm:$0x3f]
      %v1360 = vld [vmem:[%s1108 + $0x58] sm:$0x3f]
      %1373 = vrot.lane.b32.xlu0 %v1349, 124
      %v1374 = vpop.permute.xlu0 %1373
      %1375 = vrot.lane.b32.xlu0 %v1350, 124
      %v1376 = vpop.permute.xlu0 %1375
      %1377 = vrot.lane.b32.xlu0 %v1351, 124
      %v1378 = vpop.permute.xlu0 %1377
      %1379 = vrot.lane.b32.xlu0 %v1352, 124
      %v1380 = vpop.permute.xlu0 %1379
      %1381 = vrot.lane.b32.xlu0 %v1353, 124
      %v1382 = vpop.permute.xlu0 %1381
      %1383 = vrot.lane.b32.xlu0 %v1354, 124
      %v1384 = vpop.permute.xlu0 %1383
      %1385 = vrot.lane.b32.xlu0 %v1355, 124
      %v1386 = vpop.permute.xlu0 %1385
      %1387 = vrot.lane.b32.xlu0 %v1356, 124
      %v1388 = vpop.permute.xlu0 %1387
      %1389 = vrot.lane.b32.xlu0 %v1357, 124
      %v1390 = vpop.permute.xlu0 %1389
      %1391 = vrot.lane.b32.xlu0 %v1358, 124
      %v1392 = vpop.permute.xlu0 %1391
      %1393 = vrot.lane.b32.xlu0 %v1359, 124
      %v1394 = vpop.permute.xlu0 %1393
      %1395 = vrot.lane.b32.xlu0 %v1360, 124
      %v1396 = vpop.permute.xlu0 %1395
      %1409 = vst.msk [vmem:[#allocation2 + $0x72] sm:$0x3f] %vm181, %v1374
      %1410 = vst.msk [vmem:[#allocation2 + $0x10a] sm:$0x3f] %vm181, %v1376
      %1411 = vst.msk [vmem:[#allocation2 + $0x1a2] sm:$0x3f] %vm181, %v1378
      %1412 = vst.msk [vmem:[#allocation2 + $0x23a] sm:$0x3f] %vm181, %v1380
      %1413 = vst.msk [vmem:[#allocation2 + $0x2d2] sm:$0x3f] %vm181, %v1382
      %1414 = vst.msk [vmem:[#allocation2 + $0x36a] sm:$0x3f] %vm181, %v1384
      %1415 = vst.msk [vmem:[#allocation2 + $0x402] sm:$0x3f] %vm181, %v1386
      %1416 = vst.msk [vmem:[#allocation2 + $0x49a] sm:$0x3f] %vm181, %v1388
      %1417 = vst.msk [vmem:[#allocation2 + $0x532] sm:$0x3f] %vm181, %v1390
      %1418 = vst.msk [vmem:[#allocation2 + $0x5ca] sm:$0x3f] %vm181, %v1392
      %1419 = vst.msk [vmem:[#allocation2 + $0x662] sm:$0x3f] %vm181, %v1394
      %1420 = vst.msk [vmem:[#allocation2 + $0x6fa] sm:$0x3f] %vm181, %v1396
      %s1421 = scalar_lea.vmem %s138, 32
      %v1422 = vld [vmem:[%s1421] sm:$0x3f]
      %v1423 = vld [vmem:[%s1421 + $0x8] sm:$0x3f]
      %v1424 = vld [vmem:[%s1421 + $0x10] sm:$0x3f]
      %v1425 = vld [vmem:[%s1421 + $0x18] sm:$0x3f]
      %v1426 = vld [vmem:[%s1421 + $0x20] sm:$0x3f]
      %v1427 = vld [vmem:[%s1421 + $0x28] sm:$0x3f]
      %v1428 = vld [vmem:[%s1421 + $0x30] sm:$0x3f]
      %v1429 = vld [vmem:[%s1421 + $0x38] sm:$0x3f]
      %v1430 = vld [vmem:[%s1421 + $0x40] sm:$0x3f]
      %v1431 = vld [vmem:[%s1421 + $0x48] sm:$0x3f]
      %v1432 = vld [vmem:[%s1421 + $0x50] sm:$0x3f]
      %v1433 = vld [vmem:[%s1421 + $0x58] sm:$0x3f]
      %1434 = vst.msk [vmem:[#allocation2 + $0x78] sm:$0x3f] %vm181, %v1422
      %1435 = vst.msk [vmem:[#allocation2 + $0x110] sm:$0x3f] %vm181, %v1423
      %1436 = vst.msk [vmem:[#allocation2 + $0x1a8] sm:$0x3f] %vm181, %v1424
      %1437 = vst.msk [vmem:[#allocation2 + $0x240] sm:$0x3f] %vm181, %v1425
      %1438 = vst.msk [vmem:[#allocation2 + $0x2d8] sm:$0x3f] %vm181, %v1426
      %1439 = vst.msk [vmem:[#allocation2 + $0x370] sm:$0x3f] %vm181, %v1427
      %1440 = vst.msk [vmem:[#allocation2 + $0x408] sm:$0x3f] %vm181, %v1428
      %1441 = vst.msk [vmem:[#allocation2 + $0x4a0] sm:$0x3f] %vm181, %v1429
      %1442 = vst.msk [vmem:[#allocation2 + $0x538] sm:$0x3f] %vm181, %v1430
      %1443 = vst.msk [vmem:[#allocation2 + $0x5d0] sm:$0x3f] %vm181, %v1431
      %1444 = vst.msk [vmem:[#allocation2 + $0x668] sm:$0x3f] %vm181, %v1432
      %1445 = vst.msk [vmem:[#allocation2 + $0x700] sm:$0x3f] %vm181, %v1433
      %v1446 = vld [vmem:[%s1421] sm:$0x3f]
      %v1447 = vld [vmem:[%s1421 + $0x8] sm:$0x3f]
      %v1448 = vld [vmem:[%s1421 + $0x10] sm:$0x3f]
      %v1449 = vld [vmem:[%s1421 + $0x18] sm:$0x3f]
      %v1450 = vld [vmem:[%s1421 + $0x20] sm:$0x3f]
      %v1451 = vld [vmem:[%s1421 + $0x28] sm:$0x3f]
      %v1452 = vld [vmem:[%s1421 + $0x30] sm:$0x3f]
      %v1453 = vld [vmem:[%s1421 + $0x38] sm:$0x3f]
      %v1454 = vld [vmem:[%s1421 + $0x40] sm:$0x3f]
      %v1455 = vld [vmem:[%s1421 + $0x48] sm:$0x3f]
      %v1456 = vld [vmem:[%s1421 + $0x50] sm:$0x3f]
      %v1457 = vld [vmem:[%s1421 + $0x58] sm:$0x3f]
      %1470 = vrot.lane.b32.xlu0 %v1446, 127
      %v1471 = vpop.permute.xlu0 %1470
      %1472 = vrot.lane.b32.xlu0 %v1447, 127
      %v1473 = vpop.permute.xlu0 %1472
      %1474 = vrot.lane.b32.xlu0 %v1448, 127
      %v1475 = vpop.permute.xlu0 %1474
      %1476 = vrot.lane.b32.xlu0 %v1449, 127
      %v1477 = vpop.permute.xlu0 %1476
      %1478 = vrot.lane.b32.xlu0 %v1450, 127
      %v1479 = vpop.permute.xlu0 %1478
      %1480 = vrot.lane.b32.xlu0 %v1451, 127
      %v1481 = vpop.permute.xlu0 %1480
      %1482 = vrot.lane.b32.xlu0 %v1452, 127
      %v1483 = vpop.permute.xlu0 %1482
      %1484 = vrot.lane.b32.xlu0 %v1453, 127
      %v1485 = vpop.permute.xlu0 %1484
      %1486 = vrot.lane.b32.xlu0 %v1454, 127
      %v1487 = vpop.permute.xlu0 %1486
      %1488 = vrot.lane.b32.xlu0 %v1455, 127
      %v1489 = vpop.permute.xlu0 %1488
      %1490 = vrot.lane.b32.xlu0 %v1456, 127
      %v1491 = vpop.permute.xlu0 %1490
      %1492 = vrot.lane.b32.xlu0 %v1457, 127
      %v1493 = vpop.permute.xlu0 %1492
      %1506 = vst.msk [vmem:[#allocation2 + $0x7e] sm:$0x3f] %vm181, %v1471
      %1507 = vst.msk [vmem:[#allocation2 + $0x116] sm:$0x3f] %vm181, %v1473
      %1508 = vst.msk [vmem:[#allocation2 + $0x1ae] sm:$0x3f] %vm181, %v1475
      %1509 = vst.msk [vmem:[#allocation2 + $0x246] sm:$0x3f] %vm181, %v1477
      %1510 = vst.msk [vmem:[#allocation2 + $0x2de] sm:$0x3f] %vm181, %v1479
      %1511 = vst.msk [vmem:[#allocation2 + $0x376] sm:$0x3f] %vm181, %v1481
      %1512 = vst.msk [vmem:[#allocation2 + $0x40e] sm:$0x3f] %vm181, %v1483
      %1513 = vst.msk [vmem:[#allocation2 + $0x4a6] sm:$0x3f] %vm181, %v1485
      %1514 = vst.msk [vmem:[#allocation2 + $0x53e] sm:$0x3f] %vm181, %v1487
      %1515 = vst.msk [vmem:[#allocation2 + $0x5d6] sm:$0x3f] %vm181, %v1489
      %1516 = vst.msk [vmem:[#allocation2 + $0x66e] sm:$0x3f] %vm181, %v1491
      %1517 = vst.msk [vmem:[#allocation2 + $0x706] sm:$0x3f] %vm181, %v1493
      %v1518 = vld [vmem:[%s1421] sm:$0x3f]
      %v1519 = vld [vmem:[%s1421 + $0x8] sm:$0x3f]
      %v1520 = vld [vmem:[%s1421 + $0x10] sm:$0x3f]
      %v1521 = vld [vmem:[%s1421 + $0x18] sm:$0x3f]
      %v1522 = vld [vmem:[%s1421 + $0x20] sm:$0x3f]
      %v1523 = vld [vmem:[%s1421 + $0x28] sm:$0x3f]
      %v1524 = vld [vmem:[%s1421 + $0x30] sm:$0x3f]
      %v1525 = vld [vmem:[%s1421 + $0x38] sm:$0x3f]
      %v1526 = vld [vmem:[%s1421 + $0x40] sm:$0x3f]
      %v1527 = vld [vmem:[%s1421 + $0x48] sm:$0x3f]
      %v1528 = vld [vmem:[%s1421 + $0x50] sm:$0x3f]
      %v1529 = vld [vmem:[%s1421 + $0x58] sm:$0x3f]
      %1542 = vrot.lane.b32.xlu0 %v1518, 126
      %v1543 = vpop.permute.xlu0 %1542
      %1544 = vrot.lane.b32.xlu0 %v1519, 126
      %v1545 = vpop.permute.xlu0 %1544
      %1546 = vrot.lane.b32.xlu0 %v1520, 126
      %v1547 = vpop.permute.xlu0 %1546
      %1548 = vrot.lane.b32.xlu0 %v1521, 126
      %v1549 = vpop.permute.xlu0 %1548
      %1550 = vrot.lane.b32.xlu0 %v1522, 126
      %v1551 = vpop.permute.xlu0 %1550
      %1552 = vrot.lane.b32.xlu0 %v1523, 126
      %v1553 = vpop.permute.xlu0 %1552
      %1554 = vrot.lane.b32.xlu0 %v1524, 126
      %v1555 = vpop.permute.xlu0 %1554
      %1556 = vrot.lane.b32.xlu0 %v1525, 126
      %v1557 = vpop.permute.xlu0 %1556
      %1558 = vrot.lane.b32.xlu0 %v1526, 126
      %v1559 = vpop.permute.xlu0 %1558
      %1560 = vrot.lane.b32.xlu0 %v1527, 126
      %v1561 = vpop.permute.xlu0 %1560
      %1562 = vrot.lane.b32.xlu0 %v1528, 126
      %v1563 = vpop.permute.xlu0 %1562
      %1564 = vrot.lane.b32.xlu0 %v1529, 126
      %v1565 = vpop.permute.xlu0 %1564
      %1578 = vst.msk [vmem:[#allocation2 + $0x84] sm:$0x3f] %vm181, %v1543
      %1579 = vst.msk [vmem:[#allocation2 + $0x11c] sm:$0x3f] %vm181, %v1545
      %1580 = vst.msk [vmem:[#allocation2 + $0x1b4] sm:$0x3f] %vm181, %v1547
      %1581 = vst.msk [vmem:[#allocation2 + $0x24c] sm:$0x3f] %vm181, %v1549
      %1582 = vst.msk [vmem:[#allocation2 + $0x2e4] sm:$0x3f] %vm181, %v1551
      %1583 = vst.msk [vmem:[#allocation2 + $0x37c] sm:$0x3f] %vm181, %v1553
      %1584 = vst.msk [vmem:[#allocation2 + $0x414] sm:$0x3f] %vm181, %v1555
      %1585 = vst.msk [vmem:[#allocation2 + $0x4ac] sm:$0x3f] %vm181, %v1557
      %1586 = vst.msk [vmem:[#allocation2 + $0x544] sm:$0x3f] %vm181, %v1559
      %1587 = vst.msk [vmem:[#allocation2 + $0x5dc] sm:$0x3f] %vm181, %v1561
      %1588 = vst.msk [vmem:[#allocation2 + $0x674] sm:$0x3f] %vm181, %v1563
      %1589 = vst.msk [vmem:[#allocation2 + $0x70c] sm:$0x3f] %vm181, %v1565
      %v1590 = vld [vmem:[%s1421] sm:$0x3f]
      %v1591 = vld [vmem:[%s1421 + $0x8] sm:$0x3f]
      %v1592 = vld [vmem:[%s1421 + $0x10] sm:$0x3f]
      %v1593 = vld [vmem:[%s1421 + $0x18] sm:$0x3f]
      %v1594 = vld [vmem:[%s1421 + $0x20] sm:$0x3f]
      %v1595 = vld [vmem:[%s1421 + $0x28] sm:$0x3f]
      %v1596 = vld [vmem:[%s1421 + $0x30] sm:$0x3f]
      %v1597 = vld [vmem:[%s1421 + $0x38] sm:$0x3f]
      %v1598 = vld [vmem:[%s1421 + $0x40] sm:$0x3f]
      %v1599 = vld [vmem:[%s1421 + $0x48] sm:$0x3f]
      %v1600 = vld [vmem:[%s1421 + $0x50] sm:$0x3f]
      %v1601 = vld [vmem:[%s1421 + $0x58] sm:$0x3f]
      %1614 = vrot.lane.b32.xlu0 %v1590, 125
      %v1615 = vpop.permute.xlu0 %1614
      %1616 = vrot.lane.b32.xlu0 %v1591, 125
      %v1617 = vpop.permute.xlu0 %1616
      %1618 = vrot.lane.b32.xlu0 %v1592, 125
      %v1619 = vpop.permute.xlu0 %1618
      %1620 = vrot.lane.b32.xlu0 %v1593, 125
      %v1621 = vpop.permute.xlu0 %1620
      %1622 = vrot.lane.b32.xlu0 %v1594, 125
      %v1623 = vpop.permute.xlu0 %1622
      %1624 = vrot.lane.b32.xlu0 %v1595, 125
      %v1625 = vpop.permute.xlu0 %1624
      %1626 = vrot.lane.b32.xlu0 %v1596, 125
      %v1627 = vpop.permute.xlu0 %1626
      %1628 = vrot.lane.b32.xlu0 %v1597, 125
      %v1629 = vpop.permute.xlu0 %1628
      %1630 = vrot.lane.b32.xlu0 %v1598, 125
      %v1631 = vpop.permute.xlu0 %1630
      %1632 = vrot.lane.b32.xlu0 %v1599, 125
      %v1633 = vpop.permute.xlu0 %1632
      %1634 = vrot.lane.b32.xlu0 %v1600, 125
      %v1635 = vpop.permute.xlu0 %1634
      %1636 = vrot.lane.b32.xlu0 %v1601, 125
      %v1637 = vpop.permute.xlu0 %1636
      %1650 = vst.msk [vmem:[#allocation2 + $0x8a] sm:$0x3f] %vm181, %v1615
      %1651 = vst.msk [vmem:[#allocation2 + $0x122] sm:$0x3f] %vm181, %v1617
      %1652 = vst.msk [vmem:[#allocation2 + $0x1ba] sm:$0x3f] %vm181, %v1619
      %1653 = vst.msk [vmem:[#allocation2 + $0x252] sm:$0x3f] %vm181, %v1621
      %1654 = vst.msk [vmem:[#allocation2 + $0x2ea] sm:$0x3f] %vm181, %v1623
      %1655 = vst.msk [vmem:[#allocation2 + $0x382] sm:$0x3f] %vm181, %v1625
      %1656 = vst.msk [vmem:[#allocation2 + $0x41a] sm:$0x3f] %vm181, %v1627
      %1657 = vst.msk [vmem:[#allocation2 + $0x4b2] sm:$0x3f] %vm181, %v1629
      %1658 = vst.msk [vmem:[#allocation2 + $0x54a] sm:$0x3f] %vm181, %v1631
      %1659 = vst.msk [vmem:[#allocation2 + $0x5e2] sm:$0x3f] %vm181, %v1633
      %1660 = vst.msk [vmem:[#allocation2 + $0x67a] sm:$0x3f] %vm181, %v1635
      %1661 = vst.msk [vmem:[#allocation2 + $0x712] sm:$0x3f] %vm181, %v1637
      %v1662 = vld [vmem:[%s1421] sm:$0x3f]
      %v1663 = vld [vmem:[%s1421 + $0x8] sm:$0x3f]
      %v1664 = vld [vmem:[%s1421 + $0x10] sm:$0x3f]
      %v1665 = vld [vmem:[%s1421 + $0x18] sm:$0x3f]
      %v1666 = vld [vmem:[%s1421 + $0x20] sm:$0x3f]
      %v1667 = vld [vmem:[%s1421 + $0x28] sm:$0x3f]
      %v1668 = vld [vmem:[%s1421 + $0x30] sm:$0x3f]
      %v1669 = vld [vmem:[%s1421 + $0x38] sm:$0x3f]
      %v1670 = vld [vmem:[%s1421 + $0x40] sm:$0x3f]
      %v1671 = vld [vmem:[%s1421 + $0x48] sm:$0x3f]
      %v1672 = vld [vmem:[%s1421 + $0x50] sm:$0x3f]
      %v1673 = vld [vmem:[%s1421 + $0x58] sm:$0x3f]
      %1686 = vrot.lane.b32.xlu0 %v1662, 124
      %v1687 = vpop.permute.xlu0 %1686
      %1688 = vrot.lane.b32.xlu0 %v1663, 124
      %v1689 = vpop.permute.xlu0 %1688
      %1690 = vrot.lane.b32.xlu0 %v1664, 124
      %v1691 = vpop.permute.xlu0 %1690
      %1692 = vrot.lane.b32.xlu0 %v1665, 124
      %v1693 = vpop.permute.xlu0 %1692
      %1694 = vrot.lane.b32.xlu0 %v1666, 124
      %v1695 = vpop.permute.xlu0 %1694
      %1696 = vrot.lane.b32.xlu0 %v1667, 124
      %v1697 = vpop.permute.xlu0 %1696
      %1698 = vrot.lane.b32.xlu0 %v1668, 124
      %v1699 = vpop.permute.xlu0 %1698
      %1700 = vrot.lane.b32.xlu0 %v1669, 124
      %v1701 = vpop.permute.xlu0 %1700
      %1702 = vrot.lane.b32.xlu0 %v1670, 124
      %v1703 = vpop.permute.xlu0 %1702
      %1704 = vrot.lane.b32.xlu0 %v1671, 124
      %v1705 = vpop.permute.xlu0 %1704
      %1706 = vrot.lane.b32.xlu0 %v1672, 124
      %v1707 = vpop.permute.xlu0 %1706
      %1708 = vrot.lane.b32.xlu0 %v1673, 124
      %v1709 = vpop.permute.xlu0 %1708
      %1722 = vst.msk [vmem:[#allocation2 + $0x90] sm:$0x3f] %vm181, %v1687
      %1723 = vst.msk [vmem:[#allocation2 + $0x128] sm:$0x3f] %vm181, %v1689
      %1724 = vst.msk [vmem:[#allocation2 + $0x1c0] sm:$0x3f] %vm181, %v1691
      %1725 = vst.msk [vmem:[#allocation2 + $0x258] sm:$0x3f] %vm181, %v1693
      %1726 = vst.msk [vmem:[#allocation2 + $0x2f0] sm:$0x3f] %vm181, %v1695
      %1727 = vst.msk [vmem:[#allocation2 + $0x388] sm:$0x3f] %vm181, %v1697
      %1728 = vst.msk [vmem:[#allocation2 + $0x420] sm:$0x3f] %vm181, %v1699
      %1729 = vst.msk [vmem:[#allocation2 + $0x4b8] sm:$0x3f] %vm181, %v1701
      %1730 = vst.msk [vmem:[#allocation2 + $0x550] sm:$0x3f] %vm181, %v1703
      %1731 = vst.msk [vmem:[#allocation2 + $0x5e8] sm:$0x3f] %vm181, %v1705
      %1732 = vst.msk [vmem:[#allocation2 + $0x680] sm:$0x3f] %vm181, %v1707
      %1733 = vst.msk [vmem:[#allocation2 + $0x718] sm:$0x3f] %vm181, %v1709
      %v1734 = vld [vmem:[%s1] sm:$0xff]
      %v1735 = vld [vmem:[%s1 + $0x8] sm:$0xff]
      %v1736 = vld [vmem:[%s1 + $0x10] sm:$0xff]
      %v1737 = vld [vmem:[%s1 + $0x18] sm:$0xff]
      %v1738 = vld [vmem:[#allocation2] sm:$0xff]
      %v1739 = vld [vmem:[#allocation2 + $0x8] sm:$0xff]
      %v1740 = vld [vmem:[#allocation2 + $0x10] sm:$0xff]
      %v1741 = vld [vmem:[#allocation2 + $0x18] sm:$0xff]
      %v1742 = vld [vmem:[#allocation2 + $0x20] sm:$0xff]
      %v1743 = vld [vmem:[#allocation2 + $0x28] sm:$0xff]
      %v1744 = vld [vmem:[#allocation2 + $0x30] sm:$0xff]
      %v1745 = vld [vmem:[#allocation2 + $0x38] sm:$0xff]
      %v1746 = vld [vmem:[#allocation2 + $0x40] sm:$0xff]
      %v1747 = vld [vmem:[#allocation2 + $0x48] sm:$0xff]
      %v1748 = vld [vmem:[#allocation2 + $0x50] sm:$0xff]
      %v1749 = vld [vmem:[#allocation2 + $0x58] sm:$0xff]
      %v1750 = vld [vmem:[#allocation2 + $0x60] sm:$0xff]
      %v1751 = vld [vmem:[#allocation2 + $0x68] sm:$0xff]
      %v1752 = vld [vmem:[#allocation2 + $0x70] sm:$0xff]
      %v1753 = vld [vmem:[#allocation2 + $0x78] sm:$0xff]
      %v1754 = vld [vmem:[#allocation2 + $0x80] sm:$0xff]
      %v1755 = vld [vmem:[#allocation2 + $0x88] sm:$0xff]
      %v1756 = vld [vmem:[#allocation2 + $0x90] sm:$0xff]
      %vm1757 = vcmask 195584
      %v1759 = vsel %vm1757, %v1735, 0
      %v1762 = vsel %vm1757, %v1737, 0
      %1764 = vmatprep.subr.mxu0 0.0
      %1765 = vmatpush1.msra.mxu0 %v1753
      %1766 = vmatprep.subr.mxu0 0.0
      %1767 = vmatpush1.msra.mxu0 %v1752
      %1768 = vmatprep.subr.mxu0 0.0
      %1769 = vmatpush1.msra.mxu0 %v1751
      %1770 = vmatprep.subr.mxu0 0.0
      %1771 = vmatpush1.msra.mxu0 %v1750
      %1772 = vmatprep.subr.mxu0 0.0
      %1773 = vmatpush1.msra.mxu0 %v1749
      %1774 = vmatprep.subr.mxu0 0.0
      %1775 = vmatpush1.msra.mxu0 %v1748
      %1776 = vmatprep.subr.mxu0 0.0
      %1777 = vmatpush1.msra.mxu0 %v1747
      %1778 = vmatprep.subr.mxu0 0.0
      %1779 = vmatpush1.msra.mxu0 %v1746
      %1780 = vmatprep.subr.mxu0 0.0
      %1781 = vmatpush1.msra.mxu0 %v1745
      %1782 = vmatprep.subr.mxu0 0.0
      %1783 = vmatpush1.msra.mxu0 %v1744
      %1784 = vmatprep.subr.mxu0 0.0
      %1785 = vmatpush1.msra.mxu0 %v1743
      %1786 = vmatprep.subr.mxu0 0.0
      %1787 = vmatpush1.msra.mxu0 %v1742
      %1788 = vmatprep.subr.mxu0 0.0
      %1789 = vmatpush1.msra.mxu0 %v1741
      %1790 = vmatprep.subr.mxu0 0.0
      %1791 = vmatpush1.msra.mxu0 %v1740
      %1792 = vmatprep.subr.mxu0 0.0
      %1793 = vmatpush1.msra.mxu0 %v1739
      %1794 = vmatprep.subr.mxu0 0.0
      %1795 = vmatpush1.msra.mxu0 %v1738
      %1796 = vmatprep.subr.mxu0 0.0
      %1797 = vmatpush2.msra.mxu0 0.0
      %1798 = vmatprep.subr.mxu0 0.0
      %1799 = vmatpush2.msra.mxu0 0.0
      %1800 = vmatprep.subr.mxu0 0.0
      %1801 = vmatpush2.msra.mxu0 0.0
      %1802 = vmatprep.subr.mxu0 0.0
      %1803 = vmatpush2.msra.mxu0 0.0
      %1804 = vmatprep.subr.mxu0 0.0
      %1805 = vmatpush2.msra.mxu0 0.0
      %1806 = vmatprep.subr.mxu0 0.0
      %1807 = vmatpush2.msra.mxu0 0.0
      %1808 = vmatprep.subr.mxu0 0.0
      %1809 = vmatpush2.msra.mxu0 0.0
      %1810 = vmatprep.subr.mxu0 0.0
      %1811 = vmatpush2.msra.mxu0 0.0
      %1812 = vmatprep.subr.mxu0 0.0
      %1813 = vmatpush2.msra.mxu0 0.0
      %1814 = vmatprep.subr.mxu0 0.0
      %1815 = vmatpush2.msra.mxu0 0.0
      %1816 = vmatprep.subr.mxu0 0.0
      %1817 = vmatpush2.msra.mxu0 0.0
      %1818 = vmatprep.subr.mxu0 0.0
      %1819 = vmatpush2.msra.mxu0 0.0
      %1820 = vmatprep.subr.mxu0 0.0
      %1821 = vmatpush2.msra.mxu0 0.0
      %1822 = vmatprep.subr.mxu0 0.0
      %1823 = vmatpush2.msra.mxu0 %v1756
      %1824 = vmatprep.subr.mxu0 0.0
      %1825 = vmatpush2.msra.mxu0 %v1755
      %1826 = vmatprep.subr.mxu0 0.0
      %1827 = vmatpush2.msra.mxu0 %v1754
      %1828 = vmatprep.mubr.f32.mxu0 %v1759
      %1829 = vmatmul.mubr.f32.gmra.mxu0 %v1734
      %v1830 = vpop.f32.mrf.mxu0
      %v1831 = vadd.f32 0.0, %v1830
      %v1832 = vpop.f32.mrf.mxu0
      %1833 = vmatprep.mubr.f32.mxu0 %v1762
      %1834 = vmatmul.mubr.f32.gmra.mxu0 %v1736
      %v1835 = vpop.f32.mrf.mxu0
      %v1836 = vadd.f32 0.0, %v1835
      %v1837 = vpop.f32.mrf.mxu0
      %1838 = vdwg.mxu0
      %vm1839 = vcmask 97280
      %1840 = vst.msk [vmem:[%s143] sm:$0xff] %vm1839, %v1831
      %1841 = vst.msk [vmem:[%s143 + $0x8] sm:$0xff] %vm1839, %v1836
      %s1842 = scalar_lea.vmem [#allocation2], 152
      %v1843 = vld [vmem:[%s1842] sm:$0xff]
      %v1844 = vld [vmem:[%s1842 + $0x8] sm:$0xff]
      %v1845 = vld [vmem:[%s1842 + $0x10] sm:$0xff]
      %v1846 = vld [vmem:[%s1842 + $0x18] sm:$0xff]
      %v1847 = vld [vmem:[%s1842 + $0x20] sm:$0xff]
      %v1848 = vld [vmem:[%s1842 + $0x28] sm:$0xff]
      %v1849 = vld [vmem:[%s1842 + $0x30] sm:$0xff]
      %v1850 = vld [vmem:[%s1842 + $0x38] sm:$0xff]
      %v1851 = vld [vmem:[%s1842 + $0x40] sm:$0xff]
      %v1852 = vld [vmem:[%s1842 + $0x48] sm:$0xff]
      %v1853 = vld [vmem:[%s1842 + $0x50] sm:$0xff]
      %v1854 = vld [vmem:[%s1842 + $0x58] sm:$0xff]
      %v1855 = vld [vmem:[%s1842 + $0x60] sm:$0xff]
      %v1856 = vld [vmem:[%s1842 + $0x68] sm:$0xff]
      %v1857 = vld [vmem:[%s1842 + $0x70] sm:$0xff]
      %v1858 = vld [vmem:[%s1842 + $0x78] sm:$0xff]
      %v1859 = vld [vmem:[%s1842 + $0x80] sm:$0xff]
      %v1860 = vld [vmem:[%s1842 + $0x88] sm:$0xff]
      %v1861 = vld [vmem:[%s1842 + $0x90] sm:$0xff]
      %1862 = vmatprep.subr.mxu0 0.0
      %1863 = vmatpush1.msra.mxu0 %v1858
      %1864 = vmatprep.subr.mxu0 0.0
      %1865 = vmatpush1.msra.mxu0 %v1857
      %1866 = vmatprep.subr.mxu0 0.0
      %1867 = vmatpush1.msra.mxu0 %v1856
      %1868 = vmatprep.subr.mxu0 0.0
      %1869 = vmatpush1.msra.mxu0 %v1855
      %1870 = vmatprep.subr.mxu0 0.0
      %1871 = vmatpush1.msra.mxu0 %v1854
      %1872 = vmatprep.subr.mxu0 0.0
      %1873 = vmatpush1.msra.mxu0 %v1853
      %1874 = vmatprep.subr.mxu0 0.0
      %1875 = vmatpush1.msra.mxu0 %v1852
      %1876 = vmatprep.subr.mxu0 0.0
      %1877 = vmatpush1.msra.mxu0 %v1851
      %1878 = vmatprep.subr.mxu0 0.0
      %1879 = vmatpush1.msra.mxu0 %v1850
      %1880 = vmatprep.subr.mxu0 0.0
      %1881 = vmatpush1.msra.mxu0 %v1849
      %1882 = vmatprep.subr.mxu0 0.0
      %1883 = vmatpush1.msra.mxu0 %v1848
      %1884 = vmatprep.subr.mxu0 0.0
      %1885 = vmatpush1.msra.mxu0 %v1847
      %1886 = vmatprep.subr.mxu0 0.0
      %1887 = vmatpush1.msra.mxu0 %v1846
      %1888 = vmatprep.subr.mxu0 0.0
      %1889 = vmatpush1.msra.mxu0 %v1845
      %1890 = vmatprep.subr.mxu0 0.0
      %1891 = vmatpush1.msra.mxu0 %v1844
      %1892 = vmatprep.subr.mxu0 0.0
      %1893 = vmatpush1.msra.mxu0 %v1843
      %1894 = vmatprep.subr.mxu0 0.0
      %1895 = vmatpush2.msra.mxu0 0.0
      %1896 = vmatprep.subr.mxu0 0.0
      %1897 = vmatpush2.msra.mxu0 0.0
      %1898 = vmatprep.subr.mxu0 0.0
      %1899 = vmatpush2.msra.mxu0 0.0
      %1900 = vmatprep.subr.mxu0 0.0
      %1901 = vmatpush2.msra.mxu0 0.0
      %1902 = vmatprep.subr.mxu0 0.0
      %1903 = vmatpush2.msra.mxu0 0.0
      %1904 = vmatprep.subr.mxu0 0.0
      %1905 = vmatpush2.msra.mxu0 0.0
      %1906 = vmatprep.subr.mxu0 0.0
      %1907 = vmatpush2.msra.mxu0 0.0
      %1908 = vmatprep.subr.mxu0 0.0
      %1909 = vmatpush2.msra.mxu0 0.0
      %1910 = vmatprep.subr.mxu0 0.0
      %1911 = vmatpush2.msra.mxu0 0.0
      %1912 = vmatprep.subr.mxu0 0.0
      %1913 = vmatpush2.msra.mxu0 0.0
      %1914 = vmatprep.subr.mxu0 0.0
      %1915 = vmatpush2.msra.mxu0 0.0
      %1916 = vmatprep.subr.mxu0 0.0
      %1917 = vmatpush2.msra.mxu0 0.0
      %1918 = vmatprep.subr.mxu0 0.0
      %1919 = vmatpush2.msra.mxu0 0.0
      %1920 = vmatprep.subr.mxu0 0.0
      %1921 = vmatpush2.msra.mxu0 %v1861
      %1922 = vmatprep.subr.mxu0 0.0
      %1923 = vmatpush2.msra.mxu0 %v1860
      %1924 = vmatprep.subr.mxu0 0.0
      %1925 = vmatpush2.msra.mxu0 %v1859
      %1926 = vmatprep.mubr.f32.mxu0 %v1759
      %1927 = vmatmul.mubr.f32.gmra.mxu0 %v1734
      %v1928 = vpop.f32.mrf.mxu0
      %v1929 = vadd.f32 0.0, %v1928
      %v1930 = vpop.f32.mrf.mxu0
      %1931 = vmatprep.mubr.f32.mxu0 %v1762
      %1932 = vmatmul.mubr.f32.gmra.mxu0 %v1736
      %v1933 = vpop.f32.mrf.mxu0
      %v1934 = vadd.f32 0.0, %v1933
      %v1935 = vpop.f32.mrf.mxu0
      %1936 = vdwg.mxu0
      %s1937 = scalar_lea.vmem %s143, 16
      %1938 = vst.msk [vmem:[%s1937] sm:$0xff] %vm1839, %v1929
      %1939 = vst.msk [vmem:[%s1937 + $0x8] sm:$0xff] %vm1839, %v1934
      %s1940 = scalar_lea.vmem [#allocation2], 304
      %v1941 = vld [vmem:[%s1940] sm:$0xff]
      %v1942 = vld [vmem:[%s1940 + $0x8] sm:$0xff]
      %v1943 = vld [vmem:[%s1940 + $0x10] sm:$0xff]
      %v1944 = vld [vmem:[%s1940 + $0x18] sm:$0xff]
      %v1945 = vld [vmem:[%s1940 + $0x20] sm:$0xff]
      %v1946 = vld [vmem:[%s1940 + $0x28] sm:$0xff]
      %v1947 = vld [vmem:[%s1940 + $0x30] sm:$0xff]
      %v1948 = vld [vmem:[%s1940 + $0x38] sm:$0xff]
      %v1949 = vld [vmem:[%s1940 + $0x40] sm:$0xff]
      %v1950 = vld [vmem:[%s1940 + $0x48] sm:$0xff]
      %v1951 = vld [vmem:[%s1940 + $0x50] sm:$0xff]
      %v1952 = vld [vmem:[%s1940 + $0x58] sm:$0xff]
      %v1953 = vld [vmem:[%s1940 + $0x60] sm:$0xff]
      %v1954 = vld [vmem:[%s1940 + $0x68] sm:$0xff]
      %v1955 = vld [vmem:[%s1940 + $0x70] sm:$0xff]
      %v1956 = vld [vmem:[%s1940 + $0x78] sm:$0xff]
      %v1957 = vld [vmem:[%s1940 + $0x80] sm:$0xff]
      %v1958 = vld [vmem:[%s1940 + $0x88] sm:$0xff]
      %v1959 = vld [vmem:[%s1940 + $0x90] sm:$0xff]
      %1960 = vmatprep.subr.mxu0 0.0
      %1961 = vmatpush1.msra.mxu0 %v1956
      %1962 = vmatprep.subr.mxu0 0.0
      %1963 = vmatpush1.msra.mxu0 %v1955
      %1964 = vmatprep.subr.mxu0 0.0
      %1965 = vmatpush1.msra.mxu0 %v1954
      %1966 = vmatprep.subr.mxu0 0.0
      %1967 = vmatpush1.msra.mxu0 %v1953
      %1968 = vmatprep.subr.mxu0 0.0
      %1969 = vmatpush1.msra.mxu0 %v1952
      %1970 = vmatprep.subr.mxu0 0.0
      %1971 = vmatpush1.msra.mxu0 %v1951
      %1972 = vmatprep.subr.mxu0 0.0
      %1973 = vmatpush1.msra.mxu0 %v1950
      %1974 = vmatprep.subr.mxu0 0.0
      %1975 = vmatpush1.msra.mxu0 %v1949
      %1976 = vmatprep.subr.mxu0 0.0
      %1977 = vmatpush1.msra.mxu0 %v1948
      %1978 = vmatprep.subr.mxu0 0.0
      %1979 = vmatpush1.msra.mxu0 %v1947
      %1980 = vmatprep.subr.mxu0 0.0
      %1981 = vmatpush1.msra.mxu0 %v1946
      %1982 = vmatprep.subr.mxu0 0.0
      %1983 = vmatpush1.msra.mxu0 %v1945
      %1984 = vmatprep.subr.mxu0 0.0
      %1985 = vmatpush1.msra.mxu0 %v1944
      %1986 = vmatprep.subr.mxu0 0.0
      %1987 = vmatpush1.msra.mxu0 %v1943
      %1988 = vmatprep.subr.mxu0 0.0
      %1989 = vmatpush1.msra.mxu0 %v1942
      %1990 = vmatprep.subr.mxu0 0.0
      %1991 = vmatpush1.msra.mxu0 %v1941
      %1992 = vmatprep.subr.mxu0 0.0
      %1993 = vmatpush2.msra.mxu0 0.0
      %1994 = vmatprep.subr.mxu0 0.0
      %1995 = vmatpush2.msra.mxu0 0.0
      %1996 = vmatprep.subr.mxu0 0.0
      %1997 = vmatpush2.msra.mxu0 0.0
      %1998 = vmatprep.subr.mxu0 0.0
      %1999 = vmatpush2.msra.mxu0 0.0
      %2000 = vmatprep.subr.mxu0 0.0
      %2001 = vmatpush2.msra.mxu0 0.0
      %2002 = vmatprep.subr.mxu0 0.0
      %2003 = vmatpush2.msra.mxu0 0.0
      %2004 = vmatprep.subr.mxu0 0.0
      %2005 = vmatpush2.msra.mxu0 0.0
      %2006 = vmatprep.subr.mxu0 0.0
      %2007 = vmatpush2.msra.mxu0 0.0
      %2008 = vmatprep.subr.mxu0 0.0
      %2009 = vmatpush2.msra.mxu0 0.0
      %2010 = vmatprep.subr.mxu0 0.0
      %2011 = vmatpush2.msra.mxu0 0.0
      %2012 = vmatprep.subr.mxu0 0.0
      %2013 = vmatpush2.msra.mxu0 0.0
      %2014 = vmatprep.subr.mxu0 0.0
      %2015 = vmatpush2.msra.mxu0 0.0
      %2016 = vmatprep.subr.mxu0 0.0
      %2017 = vmatpush2.msra.mxu0 0.0
      %2018 = vmatprep.subr.mxu0 0.0
      %2019 = vmatpush2.msra.mxu0 %v1959
      %2020 = vmatprep.subr.mxu0 0.0
      %2021 = vmatpush2.msra.mxu0 %v1958
      %2022 = vmatprep.subr.mxu0 0.0
      %2023 = vmatpush2.msra.mxu0 %v1957
      %2024 = vmatprep.mubr.f32.mxu0 %v1759
      %2025 = vmatmul.mubr.f32.gmra.mxu0 %v1734
      %v2026 = vpop.f32.mrf.mxu0
      %v2027 = vadd.f32 0.0, %v2026
      %v2028 = vpop.f32.mrf.mxu0
      %2029 = vmatprep.mubr.f32.mxu0 %v1762
      %2030 = vmatmul.mubr.f32.gmra.mxu0 %v1736
      %v2031 = vpop.f32.mrf.mxu0
      %v2032 = vadd.f32 0.0, %v2031
      %v2033 = vpop.f32.mrf.mxu0
      %2034 = vdwg.mxu0
      %s2035 = scalar_lea.vmem %s143, 32
      %2036 = vst.msk [vmem:[%s2035] sm:$0xff] %vm1839, %v2027
      %2037 = vst.msk [vmem:[%s2035 + $0x8] sm:$0xff] %vm1839, %v2032
      %s2038 = scalar_lea.vmem [#allocation2], 456
      %v2039 = vld [vmem:[%s2038] sm:$0xff]
      %v2040 = vld [vmem:[%s2038 + $0x8] sm:$0xff]
      %v2041 = vld [vmem:[%s2038 + $0x10] sm:$0xff]
      %v2042 = vld [vmem:[%s2038 + $0x18] sm:$0xff]
      %v2043 = vld [vmem:[%s2038 + $0x20] sm:$0xff]
      %v2044 = vld [vmem:[%s2038 + $0x28] sm:$0xff]
      %v2045 = vld [vmem:[%s2038 + $0x30] sm:$0xff]
      %v2046 = vld [vmem:[%s2038 + $0x38] sm:$0xff]
      %v2047 = vld [vmem:[%s2038 + $0x40] sm:$0xff]
      %v2048 = vld [vmem:[%s2038 + $0x48] sm:$0xff]
      %v2049 = vld [vmem:[%s2038 + $0x50] sm:$0xff]
      %v2050 = vld [vmem:[%s2038 + $0x58] sm:$0xff]
      %v2051 = vld [vmem:[%s2038 + $0x60] sm:$0xff]
      %v2052 = vld [vmem:[%s2038 + $0x68] sm:$0xff]
      %v2053 = vld [vmem:[%s2038 + $0x70] sm:$0xff]
      %v2054 = vld [vmem:[%s2038 + $0x78] sm:$0xff]
      %v2055 = vld [vmem:[%s2038 + $0x80] sm:$0xff]
      %v2056 = vld [vmem:[%s2038 + $0x88] sm:$0xff]
      %v2057 = vld [vmem:[%s2038 + $0x90] sm:$0xff]
      %2058 = vmatprep.subr.mxu0 0.0
      %2059 = vmatpush1.msra.mxu0 %v2054
      %2060 = vmatprep.subr.mxu0 0.0
      %2061 = vmatpush1.msra.mxu0 %v2053
      %2062 = vmatprep.subr.mxu0 0.0
      %2063 = vmatpush1.msra.mxu0 %v2052
      %2064 = vmatprep.subr.mxu0 0.0
      %2065 = vmatpush1.msra.mxu0 %v2051
      %2066 = vmatprep.subr.mxu0 0.0
      %2067 = vmatpush1.msra.mxu0 %v2050
      %2068 = vmatprep.subr.mxu0 0.0
      %2069 = vmatpush1.msra.mxu0 %v2049
      %2070 = vmatprep.subr.mxu0 0.0
      %2071 = vmatpush1.msra.mxu0 %v2048
      %2072 = vmatprep.subr.mxu0 0.0
      %2073 = vmatpush1.msra.mxu0 %v2047
      %2074 = vmatprep.subr.mxu0 0.0
      %2075 = vmatpush1.msra.mxu0 %v2046
      %2076 = vmatprep.subr.mxu0 0.0
      %2077 = vmatpush1.msra.mxu0 %v2045
      %2078 = vmatprep.subr.mxu0 0.0
      %2079 = vmatpush1.msra.mxu0 %v2044
      %2080 = vmatprep.subr.mxu0 0.0
      %2081 = vmatpush1.msra.mxu0 %v2043
      %2082 = vmatprep.subr.mxu0 0.0
      %2083 = vmatpush1.msra.mxu0 %v2042
      %2084 = vmatprep.subr.mxu0 0.0
      %2085 = vmatpush1.msra.mxu0 %v2041
      %2086 = vmatprep.subr.mxu0 0.0
      %2087 = vmatpush1.msra.mxu0 %v2040
      %2088 = vmatprep.subr.mxu0 0.0
      %2089 = vmatpush1.msra.mxu0 %v2039
      %2090 = vmatprep.subr.mxu0 0.0
      %2091 = vmatpush2.msra.mxu0 0.0
      %2092 = vmatprep.subr.mxu0 0.0
      %2093 = vmatpush2.msra.mxu0 0.0
      %2094 = vmatprep.subr.mxu0 0.0
      %2095 = vmatpush2.msra.mxu0 0.0
      %2096 = vmatprep.subr.mxu0 0.0
      %2097 = vmatpush2.msra.mxu0 0.0
      %2098 = vmatprep.subr.mxu0 0.0
      %2099 = vmatpush2.msra.mxu0 0.0
      %2100 = vmatprep.subr.mxu0 0.0
      %2101 = vmatpush2.msra.mxu0 0.0
      %2102 = vmatprep.subr.mxu0 0.0
      %2103 = vmatpush2.msra.mxu0 0.0
      %2104 = vmatprep.subr.mxu0 0.0
      %2105 = vmatpush2.msra.mxu0 0.0
      %2106 = vmatprep.subr.mxu0 0.0
      %2107 = vmatpush2.msra.mxu0 0.0
      %2108 = vmatprep.subr.mxu0 0.0
      %2109 = vmatpush2.msra.mxu0 0.0
      %2110 = vmatprep.subr.mxu0 0.0
      %2111 = vmatpush2.msra.mxu0 0.0
      %2112 = vmatprep.subr.mxu0 0.0
      %2113 = vmatpush2.msra.mxu0 0.0
      %2114 = vmatprep.subr.mxu0 0.0
      %2115 = vmatpush2.msra.mxu0 0.0
      %2116 = vmatprep.subr.mxu0 0.0
      %2117 = vmatpush2.msra.mxu0 %v2057
      %2118 = vmatprep.subr.mxu0 0.0
      %2119 = vmatpush2.msra.mxu0 %v2056
      %2120 = vmatprep.subr.mxu0 0.0
      %2121 = vmatpush2.msra.mxu0 %v2055
      %2122 = vmatprep.mubr.f32.mxu0 %v1759
      %2123 = vmatmul.mubr.f32.gmra.mxu0 %v1734
      %v2124 = vpop.f32.mrf.mxu0
      %v2125 = vadd.f32 0.0, %v2124
      %v2126 = vpop.f32.mrf.mxu0
      %2127 = vmatprep.mubr.f32.mxu0 %v1762
      %2128 = vmatmul.mubr.f32.gmra.mxu0 %v1736
      %v2129 = vpop.f32.mrf.mxu0
      %v2130 = vadd.f32 0.0, %v2129
      %v2131 = vpop.f32.mrf.mxu0
      %2132 = vdwg.mxu0
      %s2133 = scalar_lea.vmem %s143, 48
      %2134 = vst.msk [vmem:[%s2133] sm:$0xff] %vm1839, %v2125
      %2135 = vst.msk [vmem:[%s2133 + $0x8] sm:$0xff] %vm1839, %v2130
      %s2136 = scalar_lea.vmem [#allocation2], 608
      %v2137 = vld [vmem:[%s2136] sm:$0xff]
      %v2138 = vld [vmem:[%s2136 + $0x8] sm:$0xff]
      %v2139 = vld [vmem:[%s2136 + $0x10] sm:$0xff]
      %v2140 = vld [vmem:[%s2136 + $0x18] sm:$0xff]
      %v2141 = vld [vmem:[%s2136 + $0x20] sm:$0xff]
      %v2142 = vld [vmem:[%s2136 + $0x28] sm:$0xff]
      %v2143 = vld [vmem:[%s2136 + $0x30] sm:$0xff]
      %v2144 = vld [vmem:[%s2136 + $0x38] sm:$0xff]
      %v2145 = vld [vmem:[%s2136 + $0x40] sm:$0xff]
      %v2146 = vld [vmem:[%s2136 + $0x48] sm:$0xff]
      %v2147 = vld [vmem:[%s2136 + $0x50] sm:$0xff]
      %v2148 = vld [vmem:[%s2136 + $0x58] sm:$0xff]
      %v2149 = vld [vmem:[%s2136 + $0x60] sm:$0xff]
      %v2150 = vld [vmem:[%s2136 + $0x68] sm:$0xff]
      %v2151 = vld [vmem:[%s2136 + $0x70] sm:$0xff]
      %v2152 = vld [vmem:[%s2136 + $0x78] sm:$0xff]
      %v2153 = vld [vmem:[%s2136 + $0x80] sm:$0xff]
      %v2154 = vld [vmem:[%s2136 + $0x88] sm:$0xff]
      %v2155 = vld [vmem:[%s2136 + $0x90] sm:$0xff]
      %2156 = vmatprep.subr.mxu0 0.0
      %2157 = vmatpush1.msra.mxu0 %v2152
      %2158 = vmatprep.subr.mxu0 0.0
      %2159 = vmatpush1.msra.mxu0 %v2151
      %2160 = vmatprep.subr.mxu0 0.0
      %2161 = vmatpush1.msra.mxu0 %v2150
      %2162 = vmatprep.subr.mxu0 0.0
      %2163 = vmatpush1.msra.mxu0 %v2149
      %2164 = vmatprep.subr.mxu0 0.0
      %2165 = vmatpush1.msra.mxu0 %v2148
      %2166 = vmatprep.subr.mxu0 0.0
      %2167 = vmatpush1.msra.mxu0 %v2147
      %2168 = vmatprep.subr.mxu0 0.0
      %2169 = vmatpush1.msra.mxu0 %v2146
      %2170 = vmatprep.subr.mxu0 0.0
      %2171 = vmatpush1.msra.mxu0 %v2145
      %2172 = vmatprep.subr.mxu0 0.0
      %2173 = vmatpush1.msra.mxu0 %v2144
      %2174 = vmatprep.subr.mxu0 0.0
      %2175 = vmatpush1.msra.mxu0 %v2143
      %2176 = vmatprep.subr.mxu0 0.0
      %2177 = vmatpush1.msra.mxu0 %v2142
      %2178 = vmatprep.subr.mxu0 0.0
      %2179 = vmatpush1.msra.mxu0 %v2141
      %2180 = vmatprep.subr.mxu0 0.0
      %2181 = vmatpush1.msra.mxu0 %v2140
      %2182 = vmatprep.subr.mxu0 0.0
      %2183 = vmatpush1.msra.mxu0 %v2139
      %2184 = vmatprep.subr.mxu0 0.0
      %2185 = vmatpush1.msra.mxu0 %v2138
      %2186 = vmatprep.subr.mxu0 0.0
      %2187 = vmatpush1.msra.mxu0 %v2137
      %2188 = vmatprep.subr.mxu0 0.0
      %2189 = vmatpush2.msra.mxu0 0.0
      %2190 = vmatprep.subr.mxu0 0.0
      %2191 = vmatpush2.msra.mxu0 0.0
      %2192 = vmatprep.subr.mxu0 0.0
      %2193 = vmatpush2.msra.mxu0 0.0
      %2194 = vmatprep.subr.mxu0 0.0
      %2195 = vmatpush2.msra.mxu0 0.0
      %2196 = vmatprep.subr.mxu0 0.0
      %2197 = vmatpush2.msra.mxu0 0.0
      %2198 = vmatprep.subr.mxu0 0.0
      %2199 = vmatpush2.msra.mxu0 0.0
      %2200 = vmatprep.subr.mxu0 0.0
      %2201 = vmatpush2.msra.mxu0 0.0
      %2202 = vmatprep.subr.mxu0 0.0
      %2203 = vmatpush2.msra.mxu0 0.0
      %2204 = vmatprep.subr.mxu0 0.0
      %2205 = vmatpush2.msra.mxu0 0.0
      %2206 = vmatprep.subr.mxu0 0.0
      %2207 = vmatpush2.msra.mxu0 0.0
      %2208 = vmatprep.subr.mxu0 0.0
      %2209 = vmatpush2.msra.mxu0 0.0
      %2210 = vmatprep.subr.mxu0 0.0
      %2211 = vmatpush2.msra.mxu0 0.0
      %2212 = vmatprep.subr.mxu0 0.0
      %2213 = vmatpush2.msra.mxu0 0.0
      %2214 = vmatprep.subr.mxu0 0.0
      %2215 = vmatpush2.msra.mxu0 %v2155
      %2216 = vmatprep.subr.mxu0 0.0
      %2217 = vmatpush2.msra.mxu0 %v2154
      %2218 = vmatprep.subr.mxu0 0.0
      %2219 = vmatpush2.msra.mxu0 %v2153
      %2220 = vmatprep.mubr.f32.mxu0 %v1759
      %2221 = vmatmul.mubr.f32.gmra.mxu0 %v1734
      %v2222 = vpop.f32.mrf.mxu0
      %v2223 = vadd.f32 0.0, %v2222
      %v2224 = vpop.f32.mrf.mxu0
      %2225 = vmatprep.mubr.f32.mxu0 %v1762
      %2226 = vmatmul.mubr.f32.gmra.mxu0 %v1736
      %v2227 = vpop.f32.mrf.mxu0
      %v2228 = vadd.f32 0.0, %v2227
      %v2229 = vpop.f32.mrf.mxu0
      %2230 = vdwg.mxu0
      %s2231 = scalar_lea.vmem %s143, 64
      %2232 = vst.msk [vmem:[%s2231] sm:$0xff] %vm1839, %v2223
      %2233 = vst.msk [vmem:[%s2231 + $0x8] sm:$0xff] %vm1839, %v2228
      %s2234 = scalar_lea.vmem [#allocation2], 760
      %v2235 = vld [vmem:[%s2234] sm:$0xff]
      %v2236 = vld [vmem:[%s2234 + $0x8] sm:$0xff]
      %v2237 = vld [vmem:[%s2234 + $0x10] sm:$0xff]
      %v2238 = vld [vmem:[%s2234 + $0x18] sm:$0xff]
      %v2239 = vld [vmem:[%s2234 + $0x20] sm:$0xff]
      %v2240 = vld [vmem:[%s2234 + $0x28] sm:$0xff]
      %v2241 = vld [vmem:[%s2234 + $0x30] sm:$0xff]
      %v2242 = vld [vmem:[%s2234 + $0x38] sm:$0xff]
      %v2243 = vld [vmem:[%s2234 + $0x40] sm:$0xff]
      %v2244 = vld [vmem:[%s2234 + $0x48] sm:$0xff]
      %v2245 = vld [vmem:[%s2234 + $0x50] sm:$0xff]
      %v2246 = vld [vmem:[%s2234 + $0x58] sm:$0xff]
      %v2247 = vld [vmem:[%s2234 + $0x60] sm:$0xff]
      %v2248 = vld [vmem:[%s2234 + $0x68] sm:$0xff]
      %v2249 = vld [vmem:[%s2234 + $0x70] sm:$0xff]
      %v2250 = vld [vmem:[%s2234 + $0x78] sm:$0xff]
      %v2251 = vld [vmem:[%s2234 + $0x80] sm:$0xff]
      %v2252 = vld [vmem:[%s2234 + $0x88] sm:$0xff]
      %v2253 = vld [vmem:[%s2234 + $0x90] sm:$0xff]
      %2254 = vmatprep.subr.mxu0 0.0
      %2255 = vmatpush1.msra.mxu0 %v2250
      %2256 = vmatprep.subr.mxu0 0.0
      %2257 = vmatpush1.msra.mxu0 %v2249
      %2258 = vmatprep.subr.mxu0 0.0
      %2259 = vmatpush1.msra.mxu0 %v2248
      %2260 = vmatprep.subr.mxu0 0.0
      %2261 = vmatpush1.msra.mxu0 %v2247
      %2262 = vmatprep.subr.mxu0 0.0
      %2263 = vmatpush1.msra.mxu0 %v2246
      %2264 = vmatprep.subr.mxu0 0.0
      %2265 = vmatpush1.msra.mxu0 %v2245
      %2266 = vmatprep.subr.mxu0 0.0
      %2267 = vmatpush1.msra.mxu0 %v2244
      %2268 = vmatprep.subr.mxu0 0.0
      %2269 = vmatpush1.msra.mxu0 %v2243
      %2270 = vmatprep.subr.mxu0 0.0
      %2271 = vmatpush1.msra.mxu0 %v2242
      %2272 = vmatprep.subr.mxu0 0.0
      %2273 = vmatpush1.msra.mxu0 %v2241
      %2274 = vmatprep.subr.mxu0 0.0
      %2275 = vmatpush1.msra.mxu0 %v2240
      %2276 = vmatprep.subr.mxu0 0.0
      %2277 = vmatpush1.msra.mxu0 %v2239
      %2278 = vmatprep.subr.mxu0 0.0
      %2279 = vmatpush1.msra.mxu0 %v2238
      %2280 = vmatprep.subr.mxu0 0.0
      %2281 = vmatpush1.msra.mxu0 %v2237
      %2282 = vmatprep.subr.mxu0 0.0
      %2283 = vmatpush1.msra.mxu0 %v2236
      %2284 = vmatprep.subr.mxu0 0.0
      %2285 = vmatpush1.msra.mxu0 %v2235
      %2286 = vmatprep.subr.mxu0 0.0
      %2287 = vmatpush2.msra.mxu0 0.0
      %2288 = vmatprep.subr.mxu0 0.0
      %2289 = vmatpush2.msra.mxu0 0.0
      %2290 = vmatprep.subr.mxu0 0.0
      %2291 = vmatpush2.msra.mxu0 0.0
      %2292 = vmatprep.subr.mxu0 0.0
      %2293 = vmatpush2.msra.mxu0 0.0
      %2294 = vmatprep.subr.mxu0 0.0
      %2295 = vmatpush2.msra.mxu0 0.0
      %2296 = vmatprep.subr.mxu0 0.0
      %2297 = vmatpush2.msra.mxu0 0.0
      %2298 = vmatprep.subr.mxu0 0.0
      %2299 = vmatpush2.msra.mxu0 0.0
      %2300 = vmatprep.subr.mxu0 0.0
      %2301 = vmatpush2.msra.mxu0 0.0
      %2302 = vmatprep.subr.mxu0 0.0
      %2303 = vmatpush2.msra.mxu0 0.0
      %2304 = vmatprep.subr.mxu0 0.0
      %2305 = vmatpush2.msra.mxu0 0.0
      %2306 = vmatprep.subr.mxu0 0.0
      %2307 = vmatpush2.msra.mxu0 0.0
      %2308 = vmatprep.subr.mxu0 0.0
      %2309 = vmatpush2.msra.mxu0 0.0
      %2310 = vmatprep.subr.mxu0 0.0
      %2311 = vmatpush2.msra.mxu0 0.0
      %2312 = vmatprep.subr.mxu0 0.0
      %2313 = vmatpush2.msra.mxu0 %v2253
      %2314 = vmatprep.subr.mxu0 0.0
      %2315 = vmatpush2.msra.mxu0 %v2252
      %2316 = vmatprep.subr.mxu0 0.0
      %2317 = vmatpush2.msra.mxu0 %v2251
      %2318 = vmatprep.mubr.f32.mxu0 %v1759
      %2319 = vmatmul.mubr.f32.gmra.mxu0 %v1734
      %v2320 = vpop.f32.mrf.mxu0
      %v2321 = vadd.f32 0.0, %v2320
      %v2322 = vpop.f32.mrf.mxu0
      %2323 = vmatprep.mubr.f32.mxu0 %v1762
      %2324 = vmatmul.mubr.f32.gmra.mxu0 %v1736
      %v2325 = vpop.f32.mrf.mxu0
      %v2326 = vadd.f32 0.0, %v2325
      %v2327 = vpop.f32.mrf.mxu0
      %2328 = vdwg.mxu0
      %s2329 = scalar_lea.vmem %s143, 80
      %2330 = vst.msk [vmem:[%s2329] sm:$0xff] %vm1839, %v2321
      %2331 = vst.msk [vmem:[%s2329 + $0x8] sm:$0xff] %vm1839, %v2326
      %s2332 = scalar_lea.vmem [#allocation2], 912
      %v2333 = vld [vmem:[%s2332] sm:$0xff]
      %v2334 = vld [vmem:[%s2332 + $0x8] sm:$0xff]
      %v2335 = vld [vmem:[%s2332 + $0x10] sm:$0xff]
      %v2336 = vld [vmem:[%s2332 + $0x18] sm:$0xff]
      %v2337 = vld [vmem:[%s2332 + $0x20] sm:$0xff]
      %v2338 = vld [vmem:[%s2332 + $0x28] sm:$0xff]
      %v2339 = vld [vmem:[%s2332 + $0x30] sm:$0xff]
      %v2340 = vld [vmem:[%s2332 + $0x38] sm:$0xff]
      %v2341 = vld [vmem:[%s2332 + $0x40] sm:$0xff]
      %v2342 = vld [vmem:[%s2332 + $0x48] sm:$0xff]
      %v2343 = vld [vmem:[%s2332 + $0x50] sm:$0xff]
      %v2344 = vld [vmem:[%s2332 + $0x58] sm:$0xff]
      %v2345 = vld [vmem:[%s2332 + $0x60] sm:$0xff]
      %v2346 = vld [vmem:[%s2332 + $0x68] sm:$0xff]
      %v2347 = vld [vmem:[%s2332 + $0x70] sm:$0xff]
      %v2348 = vld [vmem:[%s2332 + $0x78] sm:$0xff]
      %v2349 = vld [vmem:[%s2332 + $0x80] sm:$0xff]
      %v2350 = vld [vmem:[%s2332 + $0x88] sm:$0xff]
      %v2351 = vld [vmem:[%s2332 + $0x90] sm:$0xff]
      %2352 = vmatprep.subr.mxu0 0.0
      %2353 = vmatpush1.msra.mxu0 %v2348
      %2354 = vmatprep.subr.mxu0 0.0
      %2355 = vmatpush1.msra.mxu0 %v2347
      %2356 = vmatprep.subr.mxu0 0.0
      %2357 = vmatpush1.msra.mxu0 %v2346
      %2358 = vmatprep.subr.mxu0 0.0
      %2359 = vmatpush1.msra.mxu0 %v2345
      %2360 = vmatprep.subr.mxu0 0.0
      %2361 = vmatpush1.msra.mxu0 %v2344
      %2362 = vmatprep.subr.mxu0 0.0
      %2363 = vmatpush1.msra.mxu0 %v2343
      %2364 = vmatprep.subr.mxu0 0.0
      %2365 = vmatpush1.msra.mxu0 %v2342
      %2366 = vmatprep.subr.mxu0 0.0
      %2367 = vmatpush1.msra.mxu0 %v2341
      %2368 = vmatprep.subr.mxu0 0.0
      %2369 = vmatpush1.msra.mxu0 %v2340
      %2370 = vmatprep.subr.mxu0 0.0
      %2371 = vmatpush1.msra.mxu0 %v2339
      %2372 = vmatprep.subr.mxu0 0.0
      %2373 = vmatpush1.msra.mxu0 %v2338
      %2374 = vmatprep.subr.mxu0 0.0
      %2375 = vmatpush1.msra.mxu0 %v2337
      %2376 = vmatprep.subr.mxu0 0.0
      %2377 = vmatpush1.msra.mxu0 %v2336
      %2378 = vmatprep.subr.mxu0 0.0
      %2379 = vmatpush1.msra.mxu0 %v2335
      %2380 = vmatprep.subr.mxu0 0.0
      %2381 = vmatpush1.msra.mxu0 %v2334
      %2382 = vmatprep.subr.mxu0 0.0
      %2383 = vmatpush1.msra.mxu0 %v2333
      %2384 = vmatprep.subr.mxu0 0.0
      %2385 = vmatpush2.msra.mxu0 0.0
      %2386 = vmatprep.subr.mxu0 0.0
      %2387 = vmatpush2.msra.mxu0 0.0
      %2388 = vmatprep.subr.mxu0 0.0
      %2389 = vmatpush2.msra.mxu0 0.0
      %2390 = vmatprep.subr.mxu0 0.0
      %2391 = vmatpush2.msra.mxu0 0.0
      %2392 = vmatprep.subr.mxu0 0.0
      %2393 = vmatpush2.msra.mxu0 0.0
      %2394 = vmatprep.subr.mxu0 0.0
      %2395 = vmatpush2.msra.mxu0 0.0
      %2396 = vmatprep.subr.mxu0 0.0
      %2397 = vmatpush2.msra.mxu0 0.0
      %2398 = vmatprep.subr.mxu0 0.0
      %2399 = vmatpush2.msra.mxu0 0.0
      %2400 = vmatprep.subr.mxu0 0.0
      %2401 = vmatpush2.msra.mxu0 0.0
      %2402 = vmatprep.subr.mxu0 0.0
      %2403 = vmatpush2.msra.mxu0 0.0
      %2404 = vmatprep.subr.mxu0 0.0
      %2405 = vmatpush2.msra.mxu0 0.0
      %2406 = vmatprep.subr.mxu0 0.0
      %2407 = vmatpush2.msra.mxu0 0.0
      %2408 = vmatprep.subr.mxu0 0.0
      %2409 = vmatpush2.msra.mxu0 0.0
      %2410 = vmatprep.subr.mxu0 0.0
      %2411 = vmatpush2.msra.mxu0 %v2351
      %2412 = vmatprep.subr.mxu0 0.0
      %2413 = vmatpush2.msra.mxu0 %v2350
      %2414 = vmatprep.subr.mxu0 0.0
      %2415 = vmatpush2.msra.mxu0 %v2349
      %2416 = vmatprep.mubr.f32.mxu0 %v1759
      %2417 = vmatmul.mubr.f32.gmra.mxu0 %v1734
      %v2418 = vpop.f32.mrf.mxu0
      %v2419 = vadd.f32 0.0, %v2418
      %v2420 = vpop.f32.mrf.mxu0
      %2421 = vmatprep.mubr.f32.mxu0 %v1762
      %2422 = vmatmul.mubr.f32.gmra.mxu0 %v1736
      %v2423 = vpop.f32.mrf.mxu0
      %v2424 = vadd.f32 0.0, %v2423
      %v2425 = vpop.f32.mrf.mxu0
      %2426 = vdwg.mxu0
      %s2427 = scalar_lea.vmem %s143, 96
      %2428 = vst.msk [vmem:[%s2427] sm:$0xff] %vm1839, %v2419
      %2429 = vst.msk [vmem:[%s2427 + $0x8] sm:$0xff] %vm1839, %v2424
      %s2430 = scalar_lea.vmem [#allocation2], 1064
      %v2431 = vld [vmem:[%s2430] sm:$0xff]
      %v2432 = vld [vmem:[%s2430 + $0x8] sm:$0xff]
      %v2433 = vld [vmem:[%s2430 + $0x10] sm:$0xff]
      %v2434 = vld [vmem:[%s2430 + $0x18] sm:$0xff]
      %v2435 = vld [vmem:[%s2430 + $0x20] sm:$0xff]
      %v2436 = vld [vmem:[%s2430 + $0x28] sm:$0xff]
      %v2437 = vld [vmem:[%s2430 + $0x30] sm:$0xff]
      %v2438 = vld [vmem:[%s2430 + $0x38] sm:$0xff]
      %v2439 = vld [vmem:[%s2430 + $0x40] sm:$0xff]
      %v2440 = vld [vmem:[%s2430 + $0x48] sm:$0xff]
      %v2441 = vld [vmem:[%s2430 + $0x50] sm:$0xff]
      %v2442 = vld [vmem:[%s2430 + $0x58] sm:$0xff]
      %v2443 = vld [vmem:[%s2430 + $0x60] sm:$0xff]
      %v2444 = vld [vmem:[%s2430 + $0x68] sm:$0xff]
      %v2445 = vld [vmem:[%s2430 + $0x70] sm:$0xff]
      %v2446 = vld [vmem:[%s2430 + $0x78] sm:$0xff]
      %v2447 = vld [vmem:[%s2430 + $0x80] sm:$0xff]
      %v2448 = vld [vmem:[%s2430 + $0x88] sm:$0xff]
      %v2449 = vld [vmem:[%s2430 + $0x90] sm:$0xff]
      %2450 = vmatprep.subr.mxu0 0.0
      %2451 = vmatpush1.msra.mxu0 %v2446
      %2452 = vmatprep.subr.mxu0 0.0
      %2453 = vmatpush1.msra.mxu0 %v2445
      %2454 = vmatprep.subr.mxu0 0.0
      %2455 = vmatpush1.msra.mxu0 %v2444
      %2456 = vmatprep.subr.mxu0 0.0
      %2457 = vmatpush1.msra.mxu0 %v2443
      %2458 = vmatprep.subr.mxu0 0.0
      %2459 = vmatpush1.msra.mxu0 %v2442
      %2460 = vmatprep.subr.mxu0 0.0
      %2461 = vmatpush1.msra.mxu0 %v2441
      %2462 = vmatprep.subr.mxu0 0.0
      %2463 = vmatpush1.msra.mxu0 %v2440
      %2464 = vmatprep.subr.mxu0 0.0
      %2465 = vmatpush1.msra.mxu0 %v2439
      %2466 = vmatprep.subr.mxu0 0.0
      %2467 = vmatpush1.msra.mxu0 %v2438
      %2468 = vmatprep.subr.mxu0 0.0
      %2469 = vmatpush1.msra.mxu0 %v2437
      %2470 = vmatprep.subr.mxu0 0.0
      %2471 = vmatpush1.msra.mxu0 %v2436
      %2472 = vmatprep.subr.mxu0 0.0
      %2473 = vmatpush1.msra.mxu0 %v2435
      %2474 = vmatprep.subr.mxu0 0.0
      %2475 = vmatpush1.msra.mxu0 %v2434
      %2476 = vmatprep.subr.mxu0 0.0
      %2477 = vmatpush1.msra.mxu0 %v2433
      %2478 = vmatprep.subr.mxu0 0.0
      %2479 = vmatpush1.msra.mxu0 %v2432
      %2480 = vmatprep.subr.mxu0 0.0
      %2481 = vmatpush1.msra.mxu0 %v2431
      %2482 = vmatprep.subr.mxu0 0.0
      %2483 = vmatpush2.msra.mxu0 0.0
      %2484 = vmatprep.subr.mxu0 0.0
      %2485 = vmatpush2.msra.mxu0 0.0
      %2486 = vmatprep.subr.mxu0 0.0
      %2487 = vmatpush2.msra.mxu0 0.0
      %2488 = vmatprep.subr.mxu0 0.0
      %2489 = vmatpush2.msra.mxu0 0.0
      %2490 = vmatprep.subr.mxu0 0.0
      %2491 = vmatpush2.msra.mxu0 0.0
      %2492 = vmatprep.subr.mxu0 0.0
      %2493 = vmatpush2.msra.mxu0 0.0
      %2494 = vmatprep.subr.mxu0 0.0
      %2495 = vmatpush2.msra.mxu0 0.0
      %2496 = vmatprep.subr.mxu0 0.0
      %2497 = vmatpush2.msra.mxu0 0.0
      %2498 = vmatprep.subr.mxu0 0.0
      %2499 = vmatpush2.msra.mxu0 0.0
      %2500 = vmatprep.subr.mxu0 0.0
      %2501 = vmatpush2.msra.mxu0 0.0
      %2502 = vmatprep.subr.mxu0 0.0
      %2503 = vmatpush2.msra.mxu0 0.0
      %2504 = vmatprep.subr.mxu0 0.0
      %2505 = vmatpush2.msra.mxu0 0.0
      %2506 = vmatprep.subr.mxu0 0.0
      %2507 = vmatpush2.msra.mxu0 0.0
      %2508 = vmatprep.subr.mxu0 0.0
      %2509 = vmatpush2.msra.mxu0 %v2449
      %2510 = vmatprep.subr.mxu0 0.0
      %2511 = vmatpush2.msra.mxu0 %v2448
      %2512 = vmatprep.subr.mxu0 0.0
      %2513 = vmatpush2.msra.mxu0 %v2447
      %2514 = vmatprep.mubr.f32.mxu0 %v1759
      %2515 = vmatmul.mubr.f32.gmra.mxu0 %v1734
      %v2516 = vpop.f32.mrf.mxu0
      %v2517 = vadd.f32 0.0, %v2516
      %v2518 = vpop.f32.mrf.mxu0
      %2519 = vmatprep.mubr.f32.mxu0 %v1762
      %2520 = vmatmul.mubr.f32.gmra.mxu0 %v1736
      %v2521 = vpop.f32.mrf.mxu0
      %v2522 = vadd.f32 0.0, %v2521
      %v2523 = vpop.f32.mrf.mxu0
      %2524 = vdwg.mxu0
      %s2525 = scalar_lea.vmem %s143, 112
      %2526 = vst.msk [vmem:[%s2525] sm:$0xff] %vm1839, %v2517
      %2527 = vst.msk [vmem:[%s2525 + $0x8] sm:$0xff] %vm1839, %v2522
      %s2528 = scalar_lea.vmem [#allocation2], 1216
      %v2529 = vld [vmem:[%s2528] sm:$0xff]
      %v2530 = vld [vmem:[%s2528 + $0x8] sm:$0xff]
      %v2531 = vld [vmem:[%s2528 + $0x10] sm:$0xff]
      %v2532 = vld [vmem:[%s2528 + $0x18] sm:$0xff]
      %v2533 = vld [vmem:[%s2528 + $0x20] sm:$0xff]
      %v2534 = vld [vmem:[%s2528 + $0x28] sm:$0xff]
      %v2535 = vld [vmem:[%s2528 + $0x30] sm:$0xff]
      %v2536 = vld [vmem:[%s2528 + $0x38] sm:$0xff]
      %v2537 = vld [vmem:[%s2528 + $0x40] sm:$0xff]
      %v2538 = vld [vmem:[%s2528 + $0x48] sm:$0xff]
      %v2539 = vld [vmem:[%s2528 + $0x50] sm:$0xff]
      %v2540 = vld [vmem:[%s2528 + $0x58] sm:$0xff]
      %v2541 = vld [vmem:[%s2528 + $0x60] sm:$0xff]
      %v2542 = vld [vmem:[%s2528 + $0x68] sm:$0xff]
      %v2543 = vld [vmem:[%s2528 + $0x70] sm:$0xff]
      %v2544 = vld [vmem:[%s2528 + $0x78] sm:$0xff]
      %v2545 = vld [vmem:[%s2528 + $0x80] sm:$0xff]
      %v2546 = vld [vmem:[%s2528 + $0x88] sm:$0xff]
      %v2547 = vld [vmem:[%s2528 + $0x90] sm:$0xff]
      %2548 = vmatprep.subr.mxu0 0.0
      %2549 = vmatpush1.msra.mxu0 %v2544
      %2550 = vmatprep.subr.mxu0 0.0
      %2551 = vmatpush1.msra.mxu0 %v2543
      %2552 = vmatprep.subr.mxu0 0.0
      %2553 = vmatpush1.msra.mxu0 %v2542
      %2554 = vmatprep.subr.mxu0 0.0
      %2555 = vmatpush1.msra.mxu0 %v2541
      %2556 = vmatprep.subr.mxu0 0.0
      %2557 = vmatpush1.msra.mxu0 %v2540
      %2558 = vmatprep.subr.mxu0 0.0
      %2559 = vmatpush1.msra.mxu0 %v2539
      %2560 = vmatprep.subr.mxu0 0.0
      %2561 = vmatpush1.msra.mxu0 %v2538
      %2562 = vmatprep.subr.mxu0 0.0
      %2563 = vmatpush1.msra.mxu0 %v2537
      %2564 = vmatprep.subr.mxu0 0.0
      %2565 = vmatpush1.msra.mxu0 %v2536
      %2566 = vmatprep.subr.mxu0 0.0
      %2567 = vmatpush1.msra.mxu0 %v2535
      %2568 = vmatprep.subr.mxu0 0.0
      %2569 = vmatpush1.msra.mxu0 %v2534
      %2570 = vmatprep.subr.mxu0 0.0
      %2571 = vmatpush1.msra.mxu0 %v2533
      %2572 = vmatprep.subr.mxu0 0.0
      %2573 = vmatpush1.msra.mxu0 %v2532
      %2574 = vmatprep.subr.mxu0 0.0
      %2575 = vmatpush1.msra.mxu0 %v2531
      %2576 = vmatprep.subr.mxu0 0.0
      %2577 = vmatpush1.msra.mxu0 %v2530
      %2578 = vmatprep.subr.mxu0 0.0
      %2579 = vmatpush1.msra.mxu0 %v2529
      %2580 = vmatprep.subr.mxu0 0.0
      %2581 = vmatpush2.msra.mxu0 0.0
      %2582 = vmatprep.subr.mxu0 0.0
      %2583 = vmatpush2.msra.mxu0 0.0
      %2584 = vmatprep.subr.mxu0 0.0
      %2585 = vmatpush2.msra.mxu0 0.0
      %2586 = vmatprep.subr.mxu0 0.0
      %2587 = vmatpush2.msra.mxu0 0.0
      %2588 = vmatprep.subr.mxu0 0.0
      %2589 = vmatpush2.msra.mxu0 0.0
      %2590 = vmatprep.subr.mxu0 0.0
      %2591 = vmatpush2.msra.mxu0 0.0
      %2592 = vmatprep.subr.mxu0 0.0
      %2593 = vmatpush2.msra.mxu0 0.0
      %2594 = vmatprep.subr.mxu0 0.0
      %2595 = vmatpush2.msra.mxu0 0.0
      %2596 = vmatprep.subr.mxu0 0.0
      %2597 = vmatpush2.msra.mxu0 0.0
      %2598 = vmatprep.subr.mxu0 0.0
      %2599 = vmatpush2.msra.mxu0 0.0
      %2600 = vmatprep.subr.mxu0 0.0
      %2601 = vmatpush2.msra.mxu0 0.0
      %2602 = vmatprep.subr.mxu0 0.0
      %2603 = vmatpush2.msra.mxu0 0.0
      %2604 = vmatprep.subr.mxu0 0.0
      %2605 = vmatpush2.msra.mxu0 0.0
      %2606 = vmatprep.subr.mxu0 0.0
      %2607 = vmatpush2.msra.mxu0 %v2547
      %2608 = vmatprep.subr.mxu0 0.0
      %2609 = vmatpush2.msra.mxu0 %v2546
      %2610 = vmatprep.subr.mxu0 0.0
      %2611 = vmatpush2.msra.mxu0 %v2545
      %2612 = vmatprep.mubr.f32.mxu0 %v1759
      %2613 = vmatmul.mubr.f32.gmra.mxu0 %v1734
      %v2614 = vpop.f32.mrf.mxu0
      %v2615 = vadd.f32 0.0, %v2614
      %v2616 = vpop.f32.mrf.mxu0
      %2617 = vmatprep.mubr.f32.mxu0 %v1762
      %2618 = vmatmul.mubr.f32.gmra.mxu0 %v1736
      %v2619 = vpop.f32.mrf.mxu0
      %v2620 = vadd.f32 0.0, %v2619
      %v2621 = vpop.f32.mrf.mxu0
      %2622 = vdwg.mxu0
      %s2623 = scalar_lea.vmem %s143, 128
      %2624 = vst.msk [vmem:[%s2623] sm:$0xff] %vm1839, %v2615
      %2625 = vst.msk [vmem:[%s2623 + $0x8] sm:$0xff] %vm1839, %v2620
      %s2626 = scalar_lea.vmem [#allocation2], 1368
      %v2627 = vld [vmem:[%s2626] sm:$0xff]
      %v2628 = vld [vmem:[%s2626 + $0x8] sm:$0xff]
      %v2629 = vld [vmem:[%s2626 + $0x10] sm:$0xff]
      %v2630 = vld [vmem:[%s2626 + $0x18] sm:$0xff]
      %v2631 = vld [vmem:[%s2626 + $0x20] sm:$0xff]
      %v2632 = vld [vmem:[%s2626 + $0x28] sm:$0xff]
      %v2633 = vld [vmem:[%s2626 + $0x30] sm:$0xff]
      %v2634 = vld [vmem:[%s2626 + $0x38] sm:$0xff]
      %v2635 = vld [vmem:[%s2626 + $0x40] sm:$0xff]
      %v2636 = vld [vmem:[%s2626 + $0x48] sm:$0xff]
      %v2637 = vld [vmem:[%s2626 + $0x50] sm:$0xff]
      %v2638 = vld [vmem:[%s2626 + $0x58] sm:$0xff]
      %v2639 = vld [vmem:[%s2626 + $0x60] sm:$0xff]
      %v2640 = vld [vmem:[%s2626 + $0x68] sm:$0xff]
      %v2641 = vld [vmem:[%s2626 + $0x70] sm:$0xff]
      %v2642 = vld [vmem:[%s2626 + $0x78] sm:$0xff]
      %v2643 = vld [vmem:[%s2626 + $0x80] sm:$0xff]
      %v2644 = vld [vmem:[%s2626 + $0x88] sm:$0xff]
      %v2645 = vld [vmem:[%s2626 + $0x90] sm:$0xff]
      %2646 = vmatprep.subr.mxu0 0.0
      %2647 = vmatpush1.msra.mxu0 %v2642
      %2648 = vmatprep.subr.mxu0 0.0
      %2649 = vmatpush1.msra.mxu0 %v2641
      %2650 = vmatprep.subr.mxu0 0.0
      %2651 = vmatpush1.msra.mxu0 %v2640
      %2652 = vmatprep.subr.mxu0 0.0
      %2653 = vmatpush1.msra.mxu0 %v2639
      %2654 = vmatprep.subr.mxu0 0.0
      %2655 = vmatpush1.msra.mxu0 %v2638
      %2656 = vmatprep.subr.mxu0 0.0
      %2657 = vmatpush1.msra.mxu0 %v2637
      %2658 = vmatprep.subr.mxu0 0.0
      %2659 = vmatpush1.msra.mxu0 %v2636
      %2660 = vmatprep.subr.mxu0 0.0
      %2661 = vmatpush1.msra.mxu0 %v2635
      %2662 = vmatprep.subr.mxu0 0.0
      %2663 = vmatpush1.msra.mxu0 %v2634
      %2664 = vmatprep.subr.mxu0 0.0
      %2665 = vmatpush1.msra.mxu0 %v2633
      %2666 = vmatprep.subr.mxu0 0.0
      %2667 = vmatpush1.msra.mxu0 %v2632
      %2668 = vmatprep.subr.mxu0 0.0
      %2669 = vmatpush1.msra.mxu0 %v2631
      %2670 = vmatprep.subr.mxu0 0.0
      %2671 = vmatpush1.msra.mxu0 %v2630
      %2672 = vmatprep.subr.mxu0 0.0
      %2673 = vmatpush1.msra.mxu0 %v2629
      %2674 = vmatprep.subr.mxu0 0.0
      %2675 = vmatpush1.msra.mxu0 %v2628
      %2676 = vmatprep.subr.mxu0 0.0
      %2677 = vmatpush1.msra.mxu0 %v2627
      %2678 = vmatprep.subr.mxu0 0.0
      %2679 = vmatpush2.msra.mxu0 0.0
      %2680 = vmatprep.subr.mxu0 0.0
      %2681 = vmatpush2.msra.mxu0 0.0
      %2682 = vmatprep.subr.mxu0 0.0
      %2683 = vmatpush2.msra.mxu0 0.0
      %2684 = vmatprep.subr.mxu0 0.0
      %2685 = vmatpush2.msra.mxu0 0.0
      %2686 = vmatprep.subr.mxu0 0.0
      %2687 = vmatpush2.msra.mxu0 0.0
      %2688 = vmatprep.subr.mxu0 0.0
      %2689 = vmatpush2.msra.mxu0 0.0
      %2690 = vmatprep.subr.mxu0 0.0
      %2691 = vmatpush2.msra.mxu0 0.0
      %2692 = vmatprep.subr.mxu0 0.0
      %2693 = vmatpush2.msra.mxu0 0.0
      %2694 = vmatprep.subr.mxu0 0.0
      %2695 = vmatpush2.msra.mxu0 0.0
      %2696 = vmatprep.subr.mxu0 0.0
      %2697 = vmatpush2.msra.mxu0 0.0
      %2698 = vmatprep.subr.mxu0 0.0
      %2699 = vmatpush2.msra.mxu0 0.0
      %2700 = vmatprep.subr.mxu0 0.0
      %2701 = vmatpush2.msra.mxu0 0.0
      %2702 = vmatprep.subr.mxu0 0.0
      %2703 = vmatpush2.msra.mxu0 0.0
      %2704 = vmatprep.subr.mxu0 0.0
      %2705 = vmatpush2.msra.mxu0 %v2645
      %2706 = vmatprep.subr.mxu0 0.0
      %2707 = vmatpush2.msra.mxu0 %v2644
      %2708 = vmatprep.subr.mxu0 0.0
      %2709 = vmatpush2.msra.mxu0 %v2643
      %2710 = vmatprep.mubr.f32.mxu0 %v1759
      %2711 = vmatmul.mubr.f32.gmra.mxu0 %v1734
      %v2712 = vpop.f32.mrf.mxu0
      %v2713 = vadd.f32 0.0, %v2712
      %v2714 = vpop.f32.mrf.mxu0
      %2715 = vmatprep.mubr.f32.mxu0 %v1762
      %2716 = vmatmul.mubr.f32.gmra.mxu0 %v1736
      %v2717 = vpop.f32.mrf.mxu0
      %v2718 = vadd.f32 0.0, %v2717
      %v2719 = vpop.f32.mrf.mxu0
      %2720 = vdwg.mxu0
      %s2721 = scalar_lea.vmem %s143, 144
      %2722 = vst.msk [vmem:[%s2721] sm:$0xff] %vm1839, %v2713
      %2723 = vst.msk [vmem:[%s2721 + $0x8] sm:$0xff] %vm1839, %v2718
      %s2724 = scalar_lea.vmem [#allocation2], 1520
      %v2725 = vld [vmem:[%s2724] sm:$0xff]
      %v2726 = vld [vmem:[%s2724 + $0x8] sm:$0xff]
      %v2727 = vld [vmem:[%s2724 + $0x10] sm:$0xff]
      %v2728 = vld [vmem:[%s2724 + $0x18] sm:$0xff]
      %v2729 = vld [vmem:[%s2724 + $0x20] sm:$0xff]
      %v2730 = vld [vmem:[%s2724 + $0x28] sm:$0xff]
      %v2731 = vld [vmem:[%s2724 + $0x30] sm:$0xff]
      %v2732 = vld [vmem:[%s2724 + $0x38] sm:$0xff]
      %v2733 = vld [vmem:[%s2724 + $0x40] sm:$0xff]
      %v2734 = vld [vmem:[%s2724 + $0x48] sm:$0xff]
      %v2735 = vld [vmem:[%s2724 + $0x50] sm:$0xff]
      %v2736 = vld [vmem:[%s2724 + $0x58] sm:$0xff]
      %v2737 = vld [vmem:[%s2724 + $0x60] sm:$0xff]
      %v2738 = vld [vmem:[%s2724 + $0x68] sm:$0xff]
      %v2739 = vld [vmem:[%s2724 + $0x70] sm:$0xff]
      %v2740 = vld [vmem:[%s2724 + $0x78] sm:$0xff]
      %v2741 = vld [vmem:[%s2724 + $0x80] sm:$0xff]
      %v2742 = vld [vmem:[%s2724 + $0x88] sm:$0xff]
      %v2743 = vld [vmem:[%s2724 + $0x90] sm:$0xff]
      %2744 = vmatprep.subr.mxu0 0.0
      %2745 = vmatpush1.msra.mxu0 %v2740
      %2746 = vmatprep.subr.mxu0 0.0
      %2747 = vmatpush1.msra.mxu0 %v2739
      %2748 = vmatprep.subr.mxu0 0.0
      %2749 = vmatpush1.msra.mxu0 %v2738
      %2750 = vmatprep.subr.mxu0 0.0
      %2751 = vmatpush1.msra.mxu0 %v2737
      %2752 = vmatprep.subr.mxu0 0.0
      %2753 = vmatpush1.msra.mxu0 %v2736
      %2754 = vmatprep.subr.mxu0 0.0
      %2755 = vmatpush1.msra.mxu0 %v2735
      %2756 = vmatprep.subr.mxu0 0.0
      %2757 = vmatpush1.msra.mxu0 %v2734
      %2758 = vmatprep.subr.mxu0 0.0
      %2759 = vmatpush1.msra.mxu0 %v2733
      %2760 = vmatprep.subr.mxu0 0.0
      %2761 = vmatpush1.msra.mxu0 %v2732
      %2762 = vmatprep.subr.mxu0 0.0
      %2763 = vmatpush1.msra.mxu0 %v2731
      %2764 = vmatprep.subr.mxu0 0.0
      %2765 = vmatpush1.msra.mxu0 %v2730
      %2766 = vmatprep.subr.mxu0 0.0
      %2767 = vmatpush1.msra.mxu0 %v2729
      %2768 = vmatprep.subr.mxu0 0.0
      %2769 = vmatpush1.msra.mxu0 %v2728
      %2770 = vmatprep.subr.mxu0 0.0
      %2771 = vmatpush1.msra.mxu0 %v2727
      %2772 = vmatprep.subr.mxu0 0.0
      %2773 = vmatpush1.msra.mxu0 %v2726
      %2774 = vmatprep.subr.mxu0 0.0
      %2775 = vmatpush1.msra.mxu0 %v2725
      %2776 = vmatprep.subr.mxu0 0.0
      %2777 = vmatpush2.msra.mxu0 0.0
      %2778 = vmatprep.subr.mxu0 0.0
      %2779 = vmatpush2.msra.mxu0 0.0
      %2780 = vmatprep.subr.mxu0 0.0
      %2781 = vmatpush2.msra.mxu0 0.0
      %2782 = vmatprep.subr.mxu0 0.0
      %2783 = vmatpush2.msra.mxu0 0.0
      %2784 = vmatprep.subr.mxu0 0.0
      %2785 = vmatpush2.msra.mxu0 0.0
      %2786 = vmatprep.subr.mxu0 0.0
      %2787 = vmatpush2.msra.mxu0 0.0
      %2788 = vmatprep.subr.mxu0 0.0
      %2789 = vmatpush2.msra.mxu0 0.0
      %2790 = vmatprep.subr.mxu0 0.0
      %2791 = vmatpush2.msra.mxu0 0.0
      %2792 = vmatprep.subr.mxu0 0.0
      %2793 = vmatpush2.msra.mxu0 0.0
      %2794 = vmatprep.subr.mxu0 0.0
      %2795 = vmatpush2.msra.mxu0 0.0
      %2796 = vmatprep.subr.mxu0 0.0
      %2797 = vmatpush2.msra.mxu0 0.0
      %2798 = vmatprep.subr.mxu0 0.0
      %2799 = vmatpush2.msra.mxu0 0.0
      %2800 = vmatprep.subr.mxu0 0.0
      %2801 = vmatpush2.msra.mxu0 0.0
      %2802 = vmatprep.subr.mxu0 0.0
      %2803 = vmatpush2.msra.mxu0 %v2743
      %2804 = vmatprep.subr.mxu0 0.0
      %2805 = vmatpush2.msra.mxu0 %v2742
      %2806 = vmatprep.subr.mxu0 0.0
      %2807 = vmatpush2.msra.mxu0 %v2741
      %2808 = vmatprep.mubr.f32.mxu0 %v1759
      %2809 = vmatmul.mubr.f32.gmra.mxu0 %v1734
      %v2810 = vpop.f32.mrf.mxu0
      %v2811 = vadd.f32 0.0, %v2810
      %v2812 = vpop.f32.mrf.mxu0
      %2813 = vmatprep.mubr.f32.mxu0 %v1762
      %2814 = vmatmul.mubr.f32.gmra.mxu0 %v1736
      %v2815 = vpop.f32.mrf.mxu0
      %v2816 = vadd.f32 0.0, %v2815
      %v2817 = vpop.f32.mrf.mxu0
      %2818 = vdwg.mxu0
      %s2819 = scalar_lea.vmem %s143, 160
      %2820 = vst.msk [vmem:[%s2819] sm:$0xff] %vm1839, %v2811
      %2821 = vst.msk [vmem:[%s2819 + $0x8] sm:$0xff] %vm1839, %v2816
      %s2822 = scalar_lea.vmem [#allocation2], 1672
      %v2823 = vld [vmem:[%s2822] sm:$0xff]
      %v2824 = vld [vmem:[%s2822 + $0x8] sm:$0xff]
      %v2825 = vld [vmem:[%s2822 + $0x10] sm:$0xff]
      %v2826 = vld [vmem:[%s2822 + $0x18] sm:$0xff]
      %v2827 = vld [vmem:[%s2822 + $0x20] sm:$0xff]
      %v2828 = vld [vmem:[%s2822 + $0x28] sm:$0xff]
      %v2829 = vld [vmem:[%s2822 + $0x30] sm:$0xff]
      %v2830 = vld [vmem:[%s2822 + $0x38] sm:$0xff]
      %v2831 = vld [vmem:[%s2822 + $0x40] sm:$0xff]
      %v2832 = vld [vmem:[%s2822 + $0x48] sm:$0xff]
      %v2833 = vld [vmem:[%s2822 + $0x50] sm:$0xff]
      %v2834 = vld [vmem:[%s2822 + $0x58] sm:$0xff]
      %v2835 = vld [vmem:[%s2822 + $0x60] sm:$0xff]
      %v2836 = vld [vmem:[%s2822 + $0x68] sm:$0xff]
      %v2837 = vld [vmem:[%s2822 + $0x70] sm:$0xff]
      %v2838 = vld [vmem:[%s2822 + $0x78] sm:$0xff]
      %v2839 = vld [vmem:[%s2822 + $0x80] sm:$0xff]
      %v2840 = vld [vmem:[%s2822 + $0x88] sm:$0xff]
      %v2841 = vld [vmem:[%s2822 + $0x90] sm:$0xff]
      %2842 = vmatprep.subr.mxu0 0.0
      %2843 = vmatpush1.msra.mxu0 %v2838
      %2844 = vmatprep.subr.mxu0 0.0
      %2845 = vmatpush1.msra.mxu0 %v2837
      %2846 = vmatprep.subr.mxu0 0.0
      %2847 = vmatpush1.msra.mxu0 %v2836
      %2848 = vmatprep.subr.mxu0 0.0
      %2849 = vmatpush1.msra.mxu0 %v2835
      %2850 = vmatprep.subr.mxu0 0.0
      %2851 = vmatpush1.msra.mxu0 %v2834
      %2852 = vmatprep.subr.mxu0 0.0
      %2853 = vmatpush1.msra.mxu0 %v2833
      %2854 = vmatprep.subr.mxu0 0.0
      %2855 = vmatpush1.msra.mxu0 %v2832
      %2856 = vmatprep.subr.mxu0 0.0
      %2857 = vmatpush1.msra.mxu0 %v2831
      %2858 = vmatprep.subr.mxu0 0.0
      %2859 = vmatpush1.msra.mxu0 %v2830
      %2860 = vmatprep.subr.mxu0 0.0
      %2861 = vmatpush1.msra.mxu0 %v2829
      %2862 = vmatprep.subr.mxu0 0.0
      %2863 = vmatpush1.msra.mxu0 %v2828
      %2864 = vmatprep.subr.mxu0 0.0
      %2865 = vmatpush1.msra.mxu0 %v2827
      %2866 = vmatprep.subr.mxu0 0.0
      %2867 = vmatpush1.msra.mxu0 %v2826
      %2868 = vmatprep.subr.mxu0 0.0
      %2869 = vmatpush1.msra.mxu0 %v2825
      %2870 = vmatprep.subr.mxu0 0.0
      %2871 = vmatpush1.msra.mxu0 %v2824
      %2872 = vmatprep.subr.mxu0 0.0
      %2873 = vmatpush1.msra.mxu0 %v2823
      %2874 = vmatprep.subr.mxu0 0.0
      %2875 = vmatpush2.msra.mxu0 0.0
      %2876 = vmatprep.subr.mxu0 0.0
      %2877 = vmatpush2.msra.mxu0 0.0
      %2878 = vmatprep.subr.mxu0 0.0
      %2879 = vmatpush2.msra.mxu0 0.0
      %2880 = vmatprep.subr.mxu0 0.0
      %2881 = vmatpush2.msra.mxu0 0.0
      %2882 = vmatprep.subr.mxu0 0.0
      %2883 = vmatpush2.msra.mxu0 0.0
      %2884 = vmatprep.subr.mxu0 0.0
      %2885 = vmatpush2.msra.mxu0 0.0
      %2886 = vmatprep.subr.mxu0 0.0
      %2887 = vmatpush2.msra.mxu0 0.0
      %2888 = vmatprep.subr.mxu0 0.0
      %2889 = vmatpush2.msra.mxu0 0.0
      %2890 = vmatprep.subr.mxu0 0.0
      %2891 = vmatpush2.msra.mxu0 0.0
      %2892 = vmatprep.subr.mxu0 0.0
      %2893 = vmatpush2.msra.mxu0 0.0
      %2894 = vmatprep.subr.mxu0 0.0
      %2895 = vmatpush2.msra.mxu0 0.0
      %2896 = vmatprep.subr.mxu0 0.0
      %2897 = vmatpush2.msra.mxu0 0.0
      %2898 = vmatprep.subr.mxu0 0.0
      %2899 = vmatpush2.msra.mxu0 0.0
      %2900 = vmatprep.subr.mxu0 0.0
      %2901 = vmatpush2.msra.mxu0 %v2841
      %2902 = vmatprep.subr.mxu0 0.0
      %2903 = vmatpush2.msra.mxu0 %v2840
      %2904 = vmatprep.subr.mxu0 0.0
      %2905 = vmatpush2.msra.mxu0 %v2839
      %2906 = vmatprep.mubr.f32.mxu0 %v1759
      %2907 = vmatmul.mubr.f32.gmra.mxu0 %v1734
      %v2908 = vpop.f32.mrf.mxu0
      %v2909 = vadd.f32 0.0, %v2908
      %v2910 = vpop.f32.mrf.mxu0
      %2911 = vmatprep.mubr.f32.mxu0 %v1762
      %2912 = vmatmul.mubr.f32.gmra.mxu0 %v1736
      %v2913 = vpop.f32.mrf.mxu0
      %v2914 = vadd.f32 0.0, %v2913
      %v2915 = vpop.f32.mrf.mxu0
      %2916 = vdwg.mxu0
      %s2917 = scalar_lea.vmem %s143, 176
      %2918 = vst.msk [vmem:[%s2917] sm:$0xff] %vm1839, %v2909
      %2919 = vst.msk [vmem:[%s2917 + $0x8] sm:$0xff] %vm1839, %v2914
      %p2920 = scmp.lt.s32.totalorder %s13, 1
      %s2921 = scalar_select %p2920, %s13, 1
      %s2922 = smul.addr %s2921, 24
      %s2923 = smul.addr %s2922, 8
      %s2924 = scalar_lea.vmem %s2, %s2923
      // Predicated region
      $region29: #{c3_forward.1} parent=27 // pred_check
        %p2925 = pneg %p78
      $region30: #{c3_forward.1} parent=27 // pred_check_branch
        %2927 = sbr.rel (%p2925) target = $region32
      $region31: #{c3_forward.1} parent=27 // pred_region
        _
      $region32: #{c3_forward.1} parent=27 // pred_fallthru
        _
    $region28: #{c3_forward.1} parent=5 // pred_fallthru
      _
    %p2928 = scmp.le.s32.totalorder 2, %s8
    // Predicated region
    $region33: #{c3_forward.1} parent=5 // pred_check
      %p2929 = pneg %p2928
    $region34: #{c3_forward.1} parent=5 // pred_check_branch
      %2931 = sbr.rel (%p2929) target = $region36
    $region35: #{c3_forward.1} parent=5 // pred_region
      %s2932 = ssub.s32 %s8, 2
      // Predicated region
      $region37: #{c3_forward.1} parent=35 // pred_check
        %p2933 = pneg %p84
      $region38: #{c3_forward.1} parent=35 // pred_check_branch
        %2935 = sbr.rel (%p2933) target = $region40
      $region39: #{c3_forward.1} parent=35 // pred_region
        %p2936 = scmp.lt.s32.totalorder %s14, 1
        %s2937 = scalar_select %p2936, %s14, 1
        %s2938 = smul.addr %s2937, 24
        %s2939 = smul.addr %s2938, 8
        %s2940 = scalar_lea.vmem %s2, %s2939
      $region40: #{c3_forward.1} parent=35 // pred_fallthru
        _
    $region36: #{c3_forward.1} parent=5 // pred_fallthru
      _
  $region6: #{c3_forward.1} parent=0 // loop_footer
    %s12 = sadd.s32 1, %s8
  $region7: #{c3_forward.1} parent=0 // loop_footer_branch
    %7 = sbr.rel target = $region3
  $region8: #{c3_forward.1} parent=0 // loop_exit
    _

</llo_original>
